<compile_context>
chip_gen: v5e
topology: v5e:2x2
jax: 0.10.0
libtpu: 0.0.40
codegen_flags: <defaults>
</compile_context>

<pallas_src>
import functools

import jax
import jax.numpy as jnp
from jax import lax
from jax.experimental import pallas as pl
from jax.experimental.pallas import tpu as pltpu

# ----------------------------- small synthetic config -----------------------------
BATCH = 2
CHANNELS = 3
IMAGE = 16
PATCH = 4
NUM_PATCHES = (IMAGE // PATCH) ** 2          # 16
SEQ = NUM_PATCHES + 1                        # 17 (CLS + patches)
SEQ_PAD = ((SEQ + 7) // 8) * 8               # 24 (sublane-aligned tokens per image)
HIDDEN = 32                                  # vision hidden size
NUM_HEADS = 4
HEAD_DIM = HIDDEN // NUM_HEADS               # 8
INTERMEDIATE = 64                            # vision MLP hidden
NUM_LAYERS = 2                               # encoder layers
TEXT_HIDDEN = 48                             # projector output (LLM hidden)
CPP = CHANNELS * PATCH * PATCH               # 48 (im2col row width)
LN_EPS = 1e-5
NEG_INF = -1e30


# ----------------------------- fused Pallas kernel -----------------------------
def _fused_encoder_kernel(
    x_tok_ref, patch_w_ref, base_ref, attn_bias_ref, kv_mask_ref, seg_ones_ref,
    pre_g_ref, pre_b_ref,
    ln1_g_ref, ln1_b_ref,
    q_w_ref, q_b_ref, k_w_ref, k_b_ref, v_w_ref, v_b_ref,
    o_w_ref, o_b_ref,
    ln2_g_ref, ln2_b_ref, fc1_w_ref, fc1_b_ref, fc2_w_ref, fc2_b_ref,
    p1_w_ref, p1_b_ref, p2_w_ref, p2_b_ref,
    out_ref,
    *, num_layers, num_heads):
    f32 = jnp.float32
    bf16 = jnp.bfloat16

    def layer_norm(x, g, b):
        # single-pass: var = E[x^2] - mean^2 (one dependent XLU reduce chain)
        mean = jnp.mean(x, axis=-1, keepdims=True)
        mean_sq = jnp.mean(x * x, axis=-1, keepdims=True)
        var = mean_sq - mean * mean
        return (x - mean) * lax.rsqrt(var + LN_EPS) * g + b

    attn_bias = attn_bias_ref[...]                  # (T, NH*T)  pad-key mask, tiled per head
    kv_mask = kv_mask_ref[...]                      # (NH*T, HIDDEN) head-selection mask
    seg_ones = seg_ones_ref[...]                    # (NH*T, NH*T) block-diag ones (bf16)

    # ---- patch embedding (stride-P conv as matmul); CLS + pos emb folded via `base` ----
    h = jnp.dot(x_tok_ref[0].astype(bf16), patch_w_ref[...], preferred_element_type=f32)
    h = h + base_ref[...]

    # ---- CLIP pre-layernorm ----
    h = layer_norm(h, pre_g_ref[...], pre_b_ref[...])

    # ---- transformer encoder layers (statically unrolled; weights stacked on dim 0) ----
    for l in range(num_layers):
        resid = h
        xn = layer_norm(h, ln1_g_ref[l], ln1_b_ref[l])
        xb = xn.astype(bf16)

        # lane-aligned Q/K/V projections (scale folded into q_w/q_b at pack time)
        q = jnp.dot(xb, q_w_ref[l], preferred_element_type=f32) + q_b_ref[l]
        k = jnp.dot(xb, k_w_ref[l], preferred_element_type=f32) + k_b_ref[l]
        v = jnp.dot(xb, v_w_ref[l], preferred_element_type=f32) + v_b_ref[l]

        # head-batched attention: K/V tiled along sublanes and masked per head
        # gives a block-diagonal layout, so one matmul computes all heads' scores
        # and one matmul computes the already-concatenated multi-head output.
        k_exp = (jnp.concatenate([k] * num_heads, axis=0) * kv_mask).astype(bf16)  # (NH*T, H)
        v_exp = (jnp.concatenate([v] * num_heads, axis=0) * kv_mask).astype(bf16)  # (NH*T, H)

        s = lax.dot_general(q.astype(bf16), k_exp, (((1,), (1,)), ((), ())),
                            preferred_element_type=f32)                            # (T, NH*T)
        s = s + attn_bias
        # global row max: per-segment softmax is invariant to a row-constant shift
        s = s - jnp.max(s, axis=-1, keepdims=True)
        p = jnp.exp(s)
        # per-head segment row-sums, broadcast back over each segment, in one matmul
        denom = jnp.dot(p.astype(bf16), seg_ones, preferred_element_type=f32)      # (T, NH*T)
        p = p * pl.reciprocal(denom, approx=True)
        attn = jnp.dot(p.astype(bf16), v_exp, preferred_element_type=f32)          # (T, HIDDEN)

        # O-projection with the residual add folded into the epilogue
        h = resid + jnp.dot(attn.astype(bf16), o_w_ref[l],
                            preferred_element_type=f32) + o_b_ref[l]

        resid = h
        xn = layer_norm(h, ln2_g_ref[l], ln2_b_ref[l])
        y = jnp.dot(xn.astype(bf16), fc1_w_ref[l], preferred_element_type=f32) + fc1_b_ref[l]
        y = y * jax.nn.sigmoid(1.702 * y)                                           # CLIP quick_gelu
        h = resid + jnp.dot(y.astype(bf16), fc2_w_ref[l],
                            preferred_element_type=f32) + fc2_b_ref[l]

    # ---- LLaVA multi-modal projector: linear_1 -> gelu -> linear_2 ----
    y = jnp.dot(h.astype(bf16), p1_w_ref[...], preferred_element_type=f32) + p1_b_ref[...]
    # TODO(synk): HF projector "gelu" is exact-erf GELU; tanh approximation (EUP path) used here.
    y = jax.nn.gelu(y, approximate=True)
    y = jnp.dot(y.astype(bf16), p2_w_ref[...], preferred_element_type=f32) + p2_b_ref[...]
    out_ref[0] = y.astype(out_ref.dtype)


# ----------------------------- parameters -----------------------------
def init_params(key):
    keys = iter(jax.random.split(key, 128))

    def w(shape, scale=0.02):
        return jax.random.normal(next(keys), shape, jnp.float32) * scale

    params = {
        # patch embedding: conv(stride=P, kernel=P, bias=False) as a matmul
        "patch_w": w((CPP, HIDDEN)),
        "class_emb": w((HIDDEN,)),
        "pos_emb": w((SEQ, HIDDEN)),
        "pre_ln_g": jnp.ones((HIDDEN,), jnp.float32),
        "pre_ln_b": jnp.zeros((HIDDEN,), jnp.float32),
        "layers": [],
        # LLaVA multi_modal_projector: linear_1 -> gelu -> linear_2
        "proj1_w": w((HIDDEN, TEXT_HIDDEN)),
        "proj1_b": w((TEXT_HIDDEN,)),
        "proj2_w": w((TEXT_HIDDEN, TEXT_HIDDEN)),
        "proj2_b": w((TEXT_HIDDEN,)),
    }
    for _ in range(NUM_LAYERS):
        params["layers"].append({
            "ln1_g": jnp.ones((HIDDEN,), jnp.float32),
            "ln1_b": jnp.zeros((HIDDEN,), jnp.float32),
            "q_w": w((HIDDEN, HIDDEN)), "q_b": w((HIDDEN,)),
            "k_w": w((HIDDEN, HIDDEN)), "k_b": w((HIDDEN,)),
            "v_w": w((HIDDEN, HIDDEN)), "v_b": w((HIDDEN,)),
            "o_w": w((HIDDEN, HIDDEN)), "o_b": w((HIDDEN,)),
            "ln2_g": jnp.ones((HIDDEN,), jnp.float32),
            "ln2_b": jnp.zeros((HIDDEN,), jnp.float32),
            "fc1_w": w((HIDDEN, INTERMEDIATE)), "fc1_b": w((INTERMEDIATE,)),
            "fc2_w": w((INTERMEDIATE, HIDDEN)), "fc2_b": w((HIDDEN,)),
        })
    return params


def pack_params(params):
    """One-time packing: stack layers, bf16 matmul weights, fold scale/CLS, build masks."""
    bf16 = jnp.bfloat16
    layers = params["layers"]
    scale = HEAD_DIM ** -0.5
    nht = NUM_HEADS * SEQ_PAD

    def stack(name):
        return jnp.stack([l[name] for l in layers])

    row = lambda x: x.reshape(1, -1)
    lrow = lambda x: x.reshape(NUM_LAYERS, 1, -1)

    # CLS folded into pos-emb row 0; pad rows (SEQ..SEQ_PAD-1) are zero.
    base = params["pos_emb"].at[0].add(params["class_emb"])
    base = jnp.pad(base, ((0, SEQ_PAD - SEQ), (0, 0)))                 # (SEQ_PAD, HIDDEN)

    # pad-key attention bias, tiled per head segment: (SEQ_PAD, NUM_HEADS*SEQ_PAD)
    key_pos = jnp.arange(nht) % SEQ_PAD
    attn_bias = jnp.where(key_pos[None, :] < SEQ, 0.0, NEG_INF).astype(jnp.float32)
    attn_bias = jnp.broadcast_to(attn_bias, (SEQ_PAD, nht))

    # head-selection mask for tiled K/V: rows [h*T:(h+1)*T] keep lanes of head h.
    row_head = jnp.arange(nht)[:, None] // SEQ_PAD
    lane_head = jnp.arange(HIDDEN)[None, :] // HEAD_DIM
    kv_mask = (row_head == lane_head).astype(jnp.float32)              # (NH*T, HIDDEN)

    # block-diagonal ones (per head segment) for segmented softmax denominators.
    seg_r = jnp.arange(nht)[:, None] // SEQ_PAD
    seg_c = jnp.arange(nht)[None, :] // SEQ_PAD
    seg_ones = (seg_r == seg_c).astype(bf16)                           # (NH*T, NH*T)

    return {
        "patch_w": params["patch_w"].astype(bf16),
        "base": base,
        "attn_bias": attn_bias,
        "kv_mask": kv_mask,
        "seg_ones": seg_ones,
        "pre_ln_g": row(params["pre_ln_g"]),
        "pre_ln_b": row(params["pre_ln_b"]),
        "ln1_g": lrow(stack("ln1_g")), "ln1_b": lrow(stack("ln1_b")),
        # attention scale folded into q projection
        "q_w": (stack("q_w") * scale).astype(bf16), "q_b": lrow(stack("q_b") * scale),
        "k_w": stack("k_w").astype(bf16), "k_b": lrow(stack("k_b")),
        "v_w": stack("v_w").astype(bf16), "v_b": lrow(stack("v_b")),
        "o_w": stack("o_w").astype(bf16), "o_b": lrow(stack("o_b")),
        "ln2_g": lrow(stack("ln2_g")), "ln2_b": lrow(stack("ln2_b")),
        "fc1_w": stack("fc1_w").astype(bf16), "fc1_b": lrow(stack("fc1_b")),
        "fc2_w": stack("fc2_w").astype(bf16), "fc2_b": lrow(stack("fc2_b")),
        "proj1_w": params["proj1_w"].astype(bf16), "proj1_b": row(params["proj1_b"]),
        "proj2_w": params["proj2_w"].astype(bf16), "proj2_b": row(params["proj2_b"]),
    }


# ----------------------------- forward pass -----------------------------
def _rep_spec(a):
    """Full-array block, same for every grid step."""
    nd = a.ndim
    return pl.BlockSpec(a.shape, lambda b, _nd=nd: (0,) * _nd)


def llava_phi_vision_encoder(packed, images):
    """images: (B, C, H, W) float32 (NCHW, as in PyTorch). Returns (B, SEQ, TEXT_HIDDEN)."""
    B, C, Himg, Wimg = images.shape
    hp, wp = Himg // PATCH, Wimg // PATCH
    n_patches = hp * wp
    assert n_patches == NUM_PATCHES and C == CHANNELS

    # im2col for the stride-P conv + zero row 0 (CLS placeholder) + zero pad rows.
    x = images.reshape(B, C, hp, PATCH, wp, PATCH)
    x = x.transpose(0, 2, 4, 1, 3, 5).reshape(B, n_patches, CPP)
    x_tok = jnp.pad(x, ((0, 0), (1, SEQ_PAD - 1 - n_patches), (0, 0)))   # (B, SEQ_PAD, CPP)

    shared = [
        packed["patch_w"], packed["base"], packed["attn_bias"],
        packed["kv_mask"], packed["seg_ones"],
        packed["pre_ln_g"], packed["pre_ln_b"],
        packed["ln1_g"], packed["ln1_b"],
        packed["q_w"], packed["q_b"], packed["k_w"], packed["k_b"],
        packed["v_w"], packed["v_b"],
        packed["o_w"], packed["o_b"],
        packed["ln2_g"], packed["ln2_b"],
        packed["fc1_w"], packed["fc1_b"], packed["fc2_w"], packed["fc2_b"],
        packed["proj1_w"], packed["proj1_b"], packed["proj2_w"], packed["proj2_b"],
    ]

    kernel = functools.partial(
        _fused_encoder_kernel, num_layers=NUM_LAYERS, num_heads=NUM_HEADS)

    out = pl.pallas_call(
        kernel,
        out_shape=jax.ShapeDtypeStruct((B, SEQ_PAD, TEXT_HIDDEN), jnp.float32),
        grid=(B,),
        in_specs=[pl.BlockSpec((1, SEQ_PAD, CPP), lambda b: (b, 0, 0))]
                 + [_rep_spec(a) for a in shared],
        out_specs=pl.BlockSpec((1, SEQ_PAD, TEXT_HIDDEN), lambda b: (b, 0, 0)),
        compiler_params=pltpu.CompilerParams(dimension_semantics=("parallel",)),
    )(x_tok, *shared)

    # drop padded token rows; CLIPVisionTransformer.last_hidden_state keeps CLS + patches.
    return out[:, :SEQ, :]


# ----------------------------- main -----------------------------
if __name__ == "__main__":
    key = jax.random.PRNGKey(0)
    pkey, ikey = jax.random.split(key)
    params = init_params(pkey)
    packed = pack_params(params)     # one-time weight packing (outside the hot path)
    images = jax.random.normal(ikey, (BATCH, CHANNELS, IMAGE, IMAGE), jnp.float32)

    out = jax.jit(llava_phi_vision_encoder)(packed, images)
    out = jax.block_until_ready(out)
    assert out.shape == (BATCH, SEQ, TEXT_HIDDEN), out.shape
    assert bool(jnp.all(jnp.isfinite(out)))
    print("KERNEL_OK")
</pallas_src>

<mosaic_0001>
module attributes {stable_mosaic.version = 11 : i64} {
  func.func @_fused_encoder_kernel(%arg0: i32, %arg1: memref<1x24x48xf32, #tpu.memory_space<vmem>>, %arg2: memref<48x32xbf16, #tpu.memory_space<vmem>>, %arg3: memref<24x32xf32, #tpu.memory_space<vmem>>, %arg4: memref<24x96xf32, #tpu.memory_space<vmem>>, %arg5: memref<96x32xf32, #tpu.memory_space<vmem>>, %arg6: memref<96x96xbf16, #tpu.memory_space<vmem>>, %arg7: memref<1x32xf32, #tpu.memory_space<vmem>>, %arg8: memref<1x32xf32, #tpu.memory_space<vmem>>, %arg9: memref<2x1x32xf32, #tpu.memory_space<vmem>>, %arg10: memref<2x1x32xf32, #tpu.memory_space<vmem>>, %arg11: memref<2x32x32xbf16, #tpu.memory_space<vmem>>, %arg12: memref<2x1x32xf32, #tpu.memory_space<vmem>>, %arg13: memref<2x32x32xbf16, #tpu.memory_space<vmem>>, %arg14: memref<2x1x32xf32, #tpu.memory_space<vmem>>, %arg15: memref<2x32x32xbf16, #tpu.memory_space<vmem>>, %arg16: memref<2x1x32xf32, #tpu.memory_space<vmem>>, %arg17: memref<2x32x32xbf16, #tpu.memory_space<vmem>>, %arg18: memref<2x1x32xf32, #tpu.memory_space<vmem>>, %arg19: memref<2x1x32xf32, #tpu.memory_space<vmem>>, %arg20: memref<2x1x32xf32, #tpu.memory_space<vmem>>, %arg21: memref<2x32x64xbf16, #tpu.memory_space<vmem>>, %arg22: memref<2x1x64xf32, #tpu.memory_space<vmem>>, %arg23: memref<2x64x32xbf16, #tpu.memory_space<vmem>>, %arg24: memref<2x1x32xf32, #tpu.memory_space<vmem>>, %arg25: memref<32x48xbf16, #tpu.memory_space<vmem>>, %arg26: memref<1x48xf32, #tpu.memory_space<vmem>>, %arg27: memref<48x48xbf16, #tpu.memory_space<vmem>>, %arg28: memref<1x48xf32, #tpu.memory_space<vmem>>, %arg29: memref<1x24x48xf32, #tpu.memory_space<vmem>>) attributes {dimension_semantics = [#tpu.dimension_semantics<parallel>], iteration_bounds = array<i64: 2>, scalar_prefetch = 0 : i64, scratch_operands = 0 : i64, tpu.core_type = #tpu.core_type<tc>, window_params = [{transform_indices = @transform_0, window_bounds = array<i64: 1, 24, 48>}, {pipeline_mode = #tpu.pipeline_mode<synchronous>, transform_indices = @transform_1, window_bounds = array<i64: 48, 32>}, {pipeline_mode = #tpu.pipeline_mode<synchronous>, transform_indices = @transform_2, window_bounds = array<i64: 24, 32>}, {pipeline_mode = #tpu.pipeline_mode<synchronous>, transform_indices = @transform_3, window_bounds = array<i64: 24, 96>}, {pipeline_mode = #tpu.pipeline_mode<synchronous>, transform_indices = @transform_4, window_bounds = array<i64: 96, 32>}, {pipeline_mode = #tpu.pipeline_mode<synchronous>, transform_indices = @transform_5, window_bounds = array<i64: 96, 96>}, {pipeline_mode = #tpu.pipeline_mode<synchronous>, transform_indices = @transform_6, window_bounds = array<i64: 1, 32>}, {pipeline_mode = #tpu.pipeline_mode<synchronous>, transform_indices = @transform_7, window_bounds = array<i64: 1, 32>}, {pipeline_mode = #tpu.pipeline_mode<synchronous>, transform_indices = @transform_8, window_bounds = array<i64: 2, 1, 32>}, {pipeline_mode = #tpu.pipeline_mode<synchronous>, transform_indices = @transform_9, window_bounds = array<i64: 2, 1, 32>}, {pipeline_mode = #tpu.pipeline_mode<synchronous>, transform_indices = @transform_10, window_bounds = array<i64: 2, 32, 32>}, {pipeline_mode = #tpu.pipeline_mode<synchronous>, transform_indices = @transform_11, window_bounds = array<i64: 2, 1, 32>}, {pipeline_mode = #tpu.pipeline_mode<synchronous>, transform_indices = @transform_12, window_bounds = array<i64: 2, 32, 32>}, {pipeline_mode = #tpu.pipeline_mode<synchronous>, transform_indices = @transform_13, window_bounds = array<i64: 2, 1, 32>}, {pipeline_mode = #tpu.pipeline_mode<synchronous>, transform_indices = @transform_14, window_bounds = array<i64: 2, 32, 32>}, {pipeline_mode = #tpu.pipeline_mode<synchronous>, transform_indices = @transform_15, window_bounds = array<i64: 2, 1, 32>}, {pipeline_mode = #tpu.pipeline_mode<synchronous>, transform_indices = @transform_16, window_bounds = array<i64: 2, 32, 32>}, {pipeline_mode = #tpu.pipeline_mode<synchronous>, transform_indices = @transform_17, window_bounds = array<i64: 2, 1, 32>}, {pipeline_mode = #tpu.pipeline_mode<synchronous>, transform_indices = @transform_18, window_bounds = array<i64: 2, 1, 32>}, {pipeline_mode = #tpu.pipeline_mode<synchronous>, transform_indices = @transform_19, window_bounds = array<i64: 2, 1, 32>}, {pipeline_mode = #tpu.pipeline_mode<synchronous>, transform_indices = @transform_20, window_bounds = array<i64: 2, 32, 64>}, {pipeline_mode = #tpu.pipeline_mode<synchronous>, transform_indices = @transform_21, window_bounds = array<i64: 2, 1, 64>}, {pipeline_mode = #tpu.pipeline_mode<synchronous>, transform_indices = @transform_22, window_bounds = array<i64: 2, 64, 32>}, {pipeline_mode = #tpu.pipeline_mode<synchronous>, transform_indices = @transform_23, window_bounds = array<i64: 2, 1, 32>}, {pipeline_mode = #tpu.pipeline_mode<synchronous>, transform_indices = @transform_24, window_bounds = array<i64: 32, 48>}, {pipeline_mode = #tpu.pipeline_mode<synchronous>, transform_indices = @transform_25, window_bounds = array<i64: 1, 48>}, {pipeline_mode = #tpu.pipeline_mode<synchronous>, transform_indices = @transform_26, window_bounds = array<i64: 48, 48>}, {pipeline_mode = #tpu.pipeline_mode<synchronous>, transform_indices = @transform_27, window_bounds = array<i64: 1, 48>}, {transform_indices = @transform_28, window_bounds = array<i64: 1, 24, 48>}]} {
    %c0 = arith.constant 0 : index
    %c0_0 = arith.constant 0 : index
    %0 = vector.load %arg4[%c0, %c0_0] : memref<24x96xf32, #tpu.memory_space<vmem>>, vector<24x96xf32>
    %c0_1 = arith.constant 0 : index
    %c0_2 = arith.constant 0 : index
    %1 = vector.load %arg5[%c0_1, %c0_2] : memref<96x32xf32, #tpu.memory_space<vmem>>, vector<96x32xf32>
    %c0_3 = arith.constant 0 : index
    %c0_4 = arith.constant 0 : index
    %2 = vector.load %arg6[%c0_3, %c0_4] : memref<96x96xbf16, #tpu.memory_space<vmem>>, vector<96x96xbf16>
    %c0_5 = arith.constant 0 : index
    %c0_6 = arith.constant 0 : index
    %c0_7 = arith.constant 0 : index
    %3 = vector.load %arg1[%c0_5, %c0_6, %c0_7] : memref<1x24x48xf32, #tpu.memory_space<vmem>>, vector<1x24x48xf32>
    %4 = vector.shape_cast %3 : vector<1x24x48xf32> to vector<24x48xf32>
    %5 = arith.truncf %4 : vector<24x48xf32> to vector<24x48xbf16>
    %c0_8 = arith.constant 0 : index
    %c0_9 = arith.constant 0 : index
    %6 = vector.load %arg2[%c0_8, %c0_9] : memref<48x32xbf16, #tpu.memory_space<vmem>>, vector<48x32xbf16>
    %cst = arith.constant dense<0.000000e+00> : vector<24x32xf32>
    %7 = tpu.matmul %5, %6, %cst {dimension_numbers = #tpu.dot_dimension_numbers<[1], [0], [0], [1], [0, 0, 1, 1], [], []>} : vector<24x48xbf16>, vector<48x32xbf16>, vector<24x32xf32> -> vector<24x32xf32>
    %c0_10 = arith.constant 0 : index
    %c0_11 = arith.constant 0 : index
    %8 = vector.load %arg3[%c0_10, %c0_11] : memref<24x32xf32, #tpu.memory_space<vmem>>, vector<24x32xf32>
    %9 = arith.addf %7, %8 : vector<24x32xf32>
    %c0_12 = arith.constant 0 : index
    %c0_13 = arith.constant 0 : index
    %10 = vector.load %arg7[%c0_12, %c0_13] : memref<1x32xf32, #tpu.memory_space<vmem>>, vector<1x32xf32>
    %c0_14 = arith.constant 0 : index
    %c0_15 = arith.constant 0 : index
    %11 = vector.load %arg8[%c0_14, %c0_15] : memref<1x32xf32, #tpu.memory_space<vmem>>, vector<1x32xf32>
    %cst_16 = arith.constant dense<0.000000e+00> : vector<24xf32>
    %12 = vector.multi_reduction <add>, %9, %cst_16 [1] : vector<24x32xf32> to vector<24xf32>
    %13 = vector.shape_cast %12 : vector<24xf32> to vector<24x1xf32>
    %cst_17 = arith.constant 3.200000e+01 : f32
    %14 = vector.broadcast %cst_17 : f32 to vector<24x1xf32>
    %15 = arith.divf %13, %14 : vector<24x1xf32>
    %16 = arith.mulf %9, %9 : vector<24x32xf32>
    %cst_18 = arith.constant dense<0.000000e+00> : vector<24xf32>
    %17 = vector.multi_reduction <add>, %16, %cst_18 [1] : vector<24x32xf32> to vector<24xf32>
    %18 = vector.shape_cast %17 : vector<24xf32> to vector<24x1xf32>
    %cst_19 = arith.constant 3.200000e+01 : f32
    %19 = vector.broadcast %cst_19 : f32 to vector<24x1xf32>
    %20 = arith.divf %18, %19 : vector<24x1xf32>
    %21 = arith.mulf %15, %15 : vector<24x1xf32>
    %22 = arith.subf %20, %21 : vector<24x1xf32>
    %23 = vector.broadcast %15 : vector<24x1xf32> to vector<24x32xf32>
    %24 = arith.subf %9, %23 : vector<24x32xf32>
    %cst_20 = arith.constant 9.99999974E-6 : f32
    %25 = vector.broadcast %cst_20 : f32 to vector<24x1xf32>
    %26 = arith.addf %22, %25 : vector<24x1xf32>
    %27 = math.rsqrt %26 : vector<24x1xf32>
    %28 = vector.broadcast %27 : vector<24x1xf32> to vector<24x32xf32>
    %29 = arith.mulf %24, %28 : vector<24x32xf32>
    %30 = vector.broadcast %10 : vector<1x32xf32> to vector<24x32xf32>
    %31 = arith.mulf %29, %30 : vector<24x32xf32>
    %32 = vector.broadcast %11 : vector<1x32xf32> to vector<24x32xf32>
    %33 = arith.addf %31, %32 : vector<24x32xf32>
    %c0_21 = arith.constant 0 : index
    %c0_22 = arith.constant 0 : index
    %c0_23 = arith.constant 0 : index
    %34 = vector.load %arg9[%c0_21, %c0_22, %c0_23] : memref<2x1x32xf32, #tpu.memory_space<vmem>>, vector<1x1x32xf32>
    %35 = vector.shape_cast %34 : vector<1x1x32xf32> to vector<1x32xf32>
    %c0_24 = arith.constant 0 : index
    %c0_25 = arith.constant 0 : index
    %c0_26 = arith.constant 0 : index
    %36 = vector.load %arg10[%c0_24, %c0_25, %c0_26] : memref<2x1x32xf32, #tpu.memory_space<vmem>>, vector<1x1x32xf32>
    %37 = vector.shape_cast %36 : vector<1x1x32xf32> to vector<1x32xf32>
    %cst_27 = arith.constant dense<0.000000e+00> : vector<24xf32>
    %38 = vector.multi_reduction <add>, %33, %cst_27 [1] : vector<24x32xf32> to vector<24xf32>
    %39 = vector.shape_cast %38 : vector<24xf32> to vector<24x1xf32>
    %cst_28 = arith.constant 3.200000e+01 : f32
    %40 = vector.broadcast %cst_28 : f32 to vector<24x1xf32>
    %41 = arith.divf %39, %40 : vector<24x1xf32>
    %42 = arith.mulf %33, %33 : vector<24x32xf32>
    %cst_29 = arith.constant dense<0.000000e+00> : vector<24xf32>
    %43 = vector.multi_reduction <add>, %42, %cst_29 [1] : vector<24x32xf32> to vector<24xf32>
    %44 = vector.shape_cast %43 : vector<24xf32> to vector<24x1xf32>
    %cst_30 = arith.constant 3.200000e+01 : f32
    %45 = vector.broadcast %cst_30 : f32 to vector<24x1xf32>
    %46 = arith.divf %44, %45 : vector<24x1xf32>
    %47 = arith.mulf %41, %41 : vector<24x1xf32>
    %48 = arith.subf %46, %47 : vector<24x1xf32>
    %49 = vector.broadcast %41 : vector<24x1xf32> to vector<24x32xf32>
    %50 = arith.subf %33, %49 : vector<24x32xf32>
    %cst_31 = arith.constant 9.99999974E-6 : f32
    %51 = vector.broadcast %cst_31 : f32 to vector<24x1xf32>
    %52 = arith.addf %48, %51 : vector<24x1xf32>
    %53 = math.rsqrt %52 : vector<24x1xf32>
    %54 = vector.broadcast %53 : vector<24x1xf32> to vector<24x32xf32>
    %55 = arith.mulf %50, %54 : vector<24x32xf32>
    %56 = vector.broadcast %35 : vector<1x32xf32> to vector<24x32xf32>
    %57 = arith.mulf %55, %56 : vector<24x32xf32>
    %58 = vector.broadcast %37 : vector<1x32xf32> to vector<24x32xf32>
    %59 = arith.addf %57, %58 : vector<24x32xf32>
    %60 = arith.truncf %59 : vector<24x32xf32> to vector<24x32xbf16>
    %c0_32 = arith.constant 0 : index
    %c0_33 = arith.constant 0 : index
    %c0_34 = arith.constant 0 : index
    %61 = vector.load %arg11[%c0_32, %c0_33, %c0_34] : memref<2x32x32xbf16, #tpu.memory_space<vmem>>, vector<1x32x32xbf16>
    %62 = vector.shape_cast %61 : vector<1x32x32xbf16> to vector<32x32xbf16>
    %cst_35 = arith.constant dense<0.000000e+00> : vector<24x32xf32>
    %63 = tpu.matmul %60, %62, %cst_35 {dimension_numbers = #tpu.dot_dimension_numbers<[1], [0], [0], [1], [0, 0, 1, 1], [], []>} : vector<24x32xbf16>, vector<32x32xbf16>, vector<24x32xf32> -> vector<24x32xf32>
    %c0_36 = arith.constant 0 : index
    %c0_37 = arith.constant 0 : index
    %c0_38 = arith.constant 0 : index
    %64 = vector.load %arg12[%c0_36, %c0_37, %c0_38] : memref<2x1x32xf32, #tpu.memory_space<vmem>>, vector<1x1x32xf32>
    %65 = vector.shape_cast %64 : vector<1x1x32xf32> to vector<1x32xf32>
    %66 = vector.broadcast %65 : vector<1x32xf32> to vector<24x32xf32>
    %67 = arith.addf %63, %66 : vector<24x32xf32>
    %c0_39 = arith.constant 0 : index
    %c0_40 = arith.constant 0 : index
    %c0_41 = arith.constant 0 : index
    %68 = vector.load %arg13[%c0_39, %c0_40, %c0_41] : memref<2x32x32xbf16, #tpu.memory_space<vmem>>, vector<1x32x32xbf16>
    %69 = vector.shape_cast %68 : vector<1x32x32xbf16> to vector<32x32xbf16>
    %cst_42 = arith.constant dense<0.000000e+00> : vector<24x32xf32>
    %70 = tpu.matmul %60, %69, %cst_42 {dimension_numbers = #tpu.dot_dimension_numbers<[1], [0], [0], [1], [0, 0, 1, 1], [], []>} : vector<24x32xbf16>, vector<32x32xbf16>, vector<24x32xf32> -> vector<24x32xf32>
    %c0_43 = arith.constant 0 : index
    %c0_44 = arith.constant 0 : index
    %c0_45 = arith.constant 0 : index
    %71 = vector.load %arg14[%c0_43, %c0_44, %c0_45] : memref<2x1x32xf32, #tpu.memory_space<vmem>>, vector<1x1x32xf32>
    %72 = vector.shape_cast %71 : vector<1x1x32xf32> to vector<1x32xf32>
    %73 = vector.broadcast %72 : vector<1x32xf32> to vector<24x32xf32>
    %74 = arith.addf %70, %73 : vector<24x32xf32>
    %c0_46 = arith.constant 0 : index
    %c0_47 = arith.constant 0 : index
    %c0_48 = arith.constant 0 : index
    %75 = vector.load %arg15[%c0_46, %c0_47, %c0_48] : memref<2x32x32xbf16, #tpu.memory_space<vmem>>, vector<1x32x32xbf16>
    %76 = vector.shape_cast %75 : vector<1x32x32xbf16> to vector<32x32xbf16>
    %cst_49 = arith.constant dense<0.000000e+00> : vector<24x32xf32>
    %77 = tpu.matmul %60, %76, %cst_49 {dimension_numbers = #tpu.dot_dimension_numbers<[1], [0], [0], [1], [0, 0, 1, 1], [], []>} : vector<24x32xbf16>, vector<32x32xbf16>, vector<24x32xf32> -> vector<24x32xf32>
    %c0_50 = arith.constant 0 : index
    %c0_51 = arith.constant 0 : index
    %c0_52 = arith.constant 0 : index
    %78 = vector.load %arg16[%c0_50, %c0_51, %c0_52] : memref<2x1x32xf32, #tpu.memory_space<vmem>>, vector<1x1x32xf32>
    %79 = vector.shape_cast %78 : vector<1x1x32xf32> to vector<1x32xf32>
    %80 = vector.broadcast %79 : vector<1x32xf32> to vector<24x32xf32>
    %81 = arith.addf %77, %80 : vector<24x32xf32>
    %82 = tpu.concatenate %74, %74, %74, %74 in 0 : vector<24x32xf32>, vector<24x32xf32>, vector<24x32xf32>, vector<24x32xf32> -> vector<96x32xf32>
    %83 = arith.mulf %82, %1 : vector<96x32xf32>
    %84 = arith.truncf %83 : vector<96x32xf32> to vector<96x32xbf16>
    %85 = tpu.concatenate %81, %81, %81, %81 in 0 : vector<24x32xf32>, vector<24x32xf32>, vector<24x32xf32>, vector<24x32xf32> -> vector<96x32xf32>
    %86 = arith.mulf %85, %1 : vector<96x32xf32>
    %87 = arith.truncf %86 : vector<96x32xf32> to vector<96x32xbf16>
    %88 = arith.truncf %67 : vector<24x32xf32> to vector<24x32xbf16>
    %cst_53 = arith.constant dense<0.000000e+00> : vector<24x96xf32>
    %89 = tpu.matmul %88, %84, %cst_53 {dimension_numbers = #tpu.dot_dimension_numbers<[1], [1], [0], [0], [0, 0, 1, 0], [], []>} : vector<24x32xbf16>, vector<96x32xbf16>, vector<24x96xf32> -> vector<24x96xf32>
    %90 = arith.addf %89, %0 : vector<24x96xf32>
    %cst_54 = arith.constant dense<0xFF800000> : vector<24xf32>
    %91 = vector.multi_reduction <maximumf>, %90, %cst_54 [1] : vector<24x96xf32> to vector<24xf32>
    %92 = vector.shape_cast %91 : vector<24xf32> to vector<24x1xf32>
    %93 = vector.broadcast %92 : vector<24x1xf32> to vector<24x96xf32>
    %94 = arith.subf %90, %93 : vector<24x96xf32>
    %95 = math.exp %94 : vector<24x96xf32>
    %96 = arith.truncf %95 : vector<24x96xf32> to vector<24x96xbf16>
    %cst_55 = arith.constant dense<0.000000e+00> : vector<24x96xf32>
    %97 = tpu.matmul %96, %2, %cst_55 {dimension_numbers = #tpu.dot_dimension_numbers<[1], [0], [0], [1], [0, 0, 1, 1], [], []>} : vector<24x96xbf16>, vector<96x96xbf16>, vector<24x96xf32> -> vector<24x96xf32>
    %98 = tpu.reciprocal %97 {approx = true} : vector<24x96xf32> -> vector<24x96xf32>
    %99 = arith.mulf %95, %98 : vector<24x96xf32>
    %100 = arith.truncf %99 : vector<24x96xf32> to vector<24x96xbf16>
    %cst_56 = arith.constant dense<0.000000e+00> : vector<24x32xf32>
    %101 = tpu.matmul %100, %87, %cst_56 {dimension_numbers = #tpu.dot_dimension_numbers<[1], [0], [0], [1], [0, 0, 1, 1], [], []>} : vector<24x96xbf16>, vector<96x32xbf16>, vector<24x32xf32> -> vector<24x32xf32>
    %102 = arith.truncf %101 : vector<24x32xf32> to vector<24x32xbf16>
    %c0_57 = arith.constant 0 : index
    %c0_58 = arith.constant 0 : index
    %c0_59 = arith.constant 0 : index
    %103 = vector.load %arg17[%c0_57, %c0_58, %c0_59] : memref<2x32x32xbf16, #tpu.memory_space<vmem>>, vector<1x32x32xbf16>
    %104 = vector.shape_cast %103 : vector<1x32x32xbf16> to vector<32x32xbf16>
    %cst_60 = arith.constant dense<0.000000e+00> : vector<24x32xf32>
    %105 = tpu.matmul %102, %104, %cst_60 {dimension_numbers = #tpu.dot_dimension_numbers<[1], [0], [0], [1], [0, 0, 1, 1], [], []>} : vector<24x32xbf16>, vector<32x32xbf16>, vector<24x32xf32> -> vector<24x32xf32>
    %106 = arith.addf %33, %105 : vector<24x32xf32>
    %c0_61 = arith.constant 0 : index
    %c0_62 = arith.constant 0 : index
    %c0_63 = arith.constant 0 : index
    %107 = vector.load %arg18[%c0_61, %c0_62, %c0_63] : memref<2x1x32xf32, #tpu.memory_space<vmem>>, vector<1x1x32xf32>
    %108 = vector.shape_cast %107 : vector<1x1x32xf32> to vector<1x32xf32>
    %109 = vector.broadcast %108 : vector<1x32xf32> to vector<24x32xf32>
    %110 = arith.addf %106, %109 : vector<24x32xf32>
    %c0_64 = arith.constant 0 : index
    %c0_65 = arith.constant 0 : index
    %c0_66 = arith.constant 0 : index
    %111 = vector.load %arg19[%c0_64, %c0_65, %c0_66] : memref<2x1x32xf32, #tpu.memory_space<vmem>>, vector<1x1x32xf32>
    %112 = vector.shape_cast %111 : vector<1x1x32xf32> to vector<1x32xf32>
    %c0_67 = arith.constant 0 : index
    %c0_68 = arith.constant 0 : index
    %c0_69 = arith.constant 0 : index
    %113 = vector.load %arg20[%c0_67, %c0_68, %c0_69] : memref<2x1x32xf32, #tpu.memory_space<vmem>>, vector<1x1x32xf32>
    %114 = vector.shape_cast %113 : vector<1x1x32xf32> to vector<1x32xf32>
    %cst_70 = arith.constant dense<0.000000e+00> : vector<24xf32>
    %115 = vector.multi_reduction <add>, %110, %cst_70 [1] : vector<24x32xf32> to vector<24xf32>
    %116 = vector.shape_cast %115 : vector<24xf32> to vector<24x1xf32>
    %cst_71 = arith.constant 3.200000e+01 : f32
    %117 = vector.broadcast %cst_71 : f32 to vector<24x1xf32>
    %118 = arith.divf %116, %117 : vector<24x1xf32>
    %119 = arith.mulf %110, %110 : vector<24x32xf32>
    %cst_72 = arith.constant dense<0.000000e+00> : vector<24xf32>
    %120 = vector.multi_reduction <add>, %119, %cst_72 [1] : vector<24x32xf32> to vector<24xf32>
    %121 = vector.shape_cast %120 : vector<24xf32> to vector<24x1xf32>
    %cst_73 = arith.constant 3.200000e+01 : f32
    %122 = vector.broadcast %cst_73 : f32 to vector<24x1xf32>
    %123 = arith.divf %121, %122 : vector<24x1xf32>
    %124 = arith.mulf %118, %118 : vector<24x1xf32>
    %125 = arith.subf %123, %124 : vector<24x1xf32>
    %126 = vector.broadcast %118 : vector<24x1xf32> to vector<24x32xf32>
    %127 = arith.subf %110, %126 : vector<24x32xf32>
    %cst_74 = arith.constant 9.99999974E-6 : f32
    %128 = vector.broadcast %cst_74 : f32 to vector<24x1xf32>
    %129 = arith.addf %125, %128 : vector<24x1xf32>
    %130 = math.rsqrt %129 : vector<24x1xf32>
    %131 = vector.broadcast %130 : vector<24x1xf32> to vector<24x32xf32>
    %132 = arith.mulf %127, %131 : vector<24x32xf32>
    %133 = vector.broadcast %112 : vector<1x32xf32> to vector<24x32xf32>
    %134 = arith.mulf %132, %133 : vector<24x32xf32>
    %135 = vector.broadcast %114 : vector<1x32xf32> to vector<24x32xf32>
    %136 = arith.addf %134, %135 : vector<24x32xf32>
    %137 = arith.truncf %136 : vector<24x32xf32> to vector<24x32xbf16>
    %c0_75 = arith.constant 0 : index
    %c0_76 = arith.constant 0 : index
    %c0_77 = arith.constant 0 : index
    %138 = vector.load %arg21[%c0_75, %c0_76, %c0_77] : memref<2x32x64xbf16, #tpu.memory_space<vmem>>, vector<1x32x64xbf16>
    %139 = vector.shape_cast %138 : vector<1x32x64xbf16> to vector<32x64xbf16>
    %cst_78 = arith.constant dense<0.000000e+00> : vector<24x64xf32>
    %140 = tpu.matmul %137, %139, %cst_78 {dimension_numbers = #tpu.dot_dimension_numbers<[1], [0], [0], [1], [0, 0, 1, 1], [], []>} : vector<24x32xbf16>, vector<32x64xbf16>, vector<24x64xf32> -> vector<24x64xf32>
    %c0_79 = arith.constant 0 : index
    %c0_80 = arith.constant 0 : index
    %c0_81 = arith.constant 0 : index
    %141 = vector.load %arg22[%c0_79, %c0_80, %c0_81] : memref<2x1x64xf32, #tpu.memory_space<vmem>>, vector<1x1x64xf32>
    %142 = vector.shape_cast %141 : vector<1x1x64xf32> to vector<1x64xf32>
    %143 = vector.broadcast %142 : vector<1x64xf32> to vector<24x64xf32>
    %144 = arith.addf %140, %143 : vector<24x64xf32>
    %cst_82 = arith.constant 1.702000e+00 : f32
    %145 = vector.broadcast %cst_82 : f32 to vector<24x64xf32>
    %146 = arith.mulf %145, %144 : vector<24x64xf32>
    %147 = arith.negf %146 : vector<24x64xf32>
    %148 = math.exp %147 : vector<24x64xf32>
    %cst_83 = arith.constant 1.000000e+00 : f32
    %149 = vector.broadcast %cst_83 : f32 to vector<24x64xf32>
    %150 = arith.addf %149, %148 : vector<24x64xf32>
    %151 = arith.divf %149, %150 : vector<24x64xf32>
    %152 = arith.mulf %144, %151 : vector<24x64xf32>
    %153 = arith.truncf %152 : vector<24x64xf32> to vector<24x64xbf16>
    %c0_84 = arith.constant 0 : index
    %c0_85 = arith.constant 0 : index
    %c0_86 = arith.constant 0 : index
    %154 = vector.load %arg23[%c0_84, %c0_85, %c0_86] : memref<2x64x32xbf16, #tpu.memory_space<vmem>>, vector<1x64x32xbf16>
    %155 = vector.shape_cast %154 : vector<1x64x32xbf16> to vector<64x32xbf16>
    %cst_87 = arith.constant dense<0.000000e+00> : vector<24x32xf32>
    %156 = tpu.matmul %153, %155, %cst_87 {dimension_numbers = #tpu.dot_dimension_numbers<[1], [0], [0], [1], [0, 0, 1, 1], [], []>} : vector<24x64xbf16>, vector<64x32xbf16>, vector<24x32xf32> -> vector<24x32xf32>
    %157 = arith.addf %110, %156 : vector<24x32xf32>
    %c0_88 = arith.constant 0 : index
    %c0_89 = arith.constant 0 : index
    %c0_90 = arith.constant 0 : index
    %158 = vector.load %arg24[%c0_88, %c0_89, %c0_90] : memref<2x1x32xf32, #tpu.memory_space<vmem>>, vector<1x1x32xf32>
    %159 = vector.shape_cast %158 : vector<1x1x32xf32> to vector<1x32xf32>
    %160 = vector.broadcast %159 : vector<1x32xf32> to vector<24x32xf32>
    %161 = arith.addf %157, %160 : vector<24x32xf32>
    %c1 = arith.constant 1 : index
    %c0_91 = arith.constant 0 : index
    %c0_92 = arith.constant 0 : index
    %162 = vector.load %arg9[%c1, %c0_91, %c0_92] : memref<2x1x32xf32, #tpu.memory_space<vmem>>, vector<1x1x32xf32>
    %163 = vector.shape_cast %162 : vector<1x1x32xf32> to vector<1x32xf32>
    %c1_93 = arith.constant 1 : index
    %c0_94 = arith.constant 0 : index
    %c0_95 = arith.constant 0 : index
    %164 = vector.load %arg10[%c1_93, %c0_94, %c0_95] : memref<2x1x32xf32, #tpu.memory_space<vmem>>, vector<1x1x32xf32>
    %165 = vector.shape_cast %164 : vector<1x1x32xf32> to vector<1x32xf32>
    %cst_96 = arith.constant dense<0.000000e+00> : vector<24xf32>
    %166 = vector.multi_reduction <add>, %161, %cst_96 [1] : vector<24x32xf32> to vector<24xf32>
    %167 = vector.shape_cast %166 : vector<24xf32> to vector<24x1xf32>
    %cst_97 = arith.constant 3.200000e+01 : f32
    %168 = vector.broadcast %cst_97 : f32 to vector<24x1xf32>
    %169 = arith.divf %167, %168 : vector<24x1xf32>
    %170 = arith.mulf %161, %161 : vector<24x32xf32>
    %cst_98 = arith.constant dense<0.000000e+00> : vector<24xf32>
    %171 = vector.multi_reduction <add>, %170, %cst_98 [1] : vector<24x32xf32> to vector<24xf32>
    %172 = vector.shape_cast %171 : vector<24xf32> to vector<24x1xf32>
    %cst_99 = arith.constant 3.200000e+01 : f32
    %173 = vector.broadcast %cst_99 : f32 to vector<24x1xf32>
    %174 = arith.divf %172, %173 : vector<24x1xf32>
    %175 = arith.mulf %169, %169 : vector<24x1xf32>
    %176 = arith.subf %174, %175 : vector<24x1xf32>
    %177 = vector.broadcast %169 : vector<24x1xf32> to vector<24x32xf32>
    %178 = arith.subf %161, %177 : vector<24x32xf32>
    %cst_100 = arith.constant 9.99999974E-6 : f32
    %179 = vector.broadcast %cst_100 : f32 to vector<24x1xf32>
    %180 = arith.addf %176, %179 : vector<24x1xf32>
    %181 = math.rsqrt %180 : vector<24x1xf32>
    %182 = vector.broadcast %181 : vector<24x1xf32> to vector<24x32xf32>
    %183 = arith.mulf %178, %182 : vector<24x32xf32>
    %184 = vector.broadcast %163 : vector<1x32xf32> to vector<24x32xf32>
    %185 = arith.mulf %183, %184 : vector<24x32xf32>
    %186 = vector.broadcast %165 : vector<1x32xf32> to vector<24x32xf32>
    %187 = arith.addf %185, %186 : vector<24x32xf32>
    %188 = arith.truncf %187 : vector<24x32xf32> to vector<24x32xbf16>
    %c1_101 = arith.constant 1 : index
    %c0_102 = arith.constant 0 : index
    %c0_103 = arith.constant 0 : index
    %189 = vector.load %arg11[%c1_101, %c0_102, %c0_103] : memref<2x32x32xbf16, #tpu.memory_space<vmem>>, vector<1x32x32xbf16>
    %190 = vector.shape_cast %189 : vector<1x32x32xbf16> to vector<32x32xbf16>
    %cst_104 = arith.constant dense<0.000000e+00> : vector<24x32xf32>
    %191 = tpu.matmul %188, %190, %cst_104 {dimension_numbers = #tpu.dot_dimension_numbers<[1], [0], [0], [1], [0, 0, 1, 1], [], []>} : vector<24x32xbf16>, vector<32x32xbf16>, vector<24x32xf32> -> vector<24x32xf32>
    %c1_105 = arith.constant 1 : index
    %c0_106 = arith.constant 0 : index
    %c0_107 = arith.constant 0 : index
    %192 = vector.load %arg12[%c1_105, %c0_106, %c0_107] : memref<2x1x32xf32, #tpu.memory_space<vmem>>, vector<1x1x32xf32>
    %193 = vector.shape_cast %192 : vector<1x1x32xf32> to vector<1x32xf32>
    %194 = vector.broadcast %193 : vector<1x32xf32> to vector<24x32xf32>
    %195 = arith.addf %191, %194 : vector<24x32xf32>
    %c1_108 = arith.constant 1 : index
    %c0_109 = arith.constant 0 : index
    %c0_110 = arith.constant 0 : index
    %196 = vector.load %arg13[%c1_108, %c0_109, %c0_110] : memref<2x32x32xbf16, #tpu.memory_space<vmem>>, vector<1x32x32xbf16>
    %197 = vector.shape_cast %196 : vector<1x32x32xbf16> to vector<32x32xbf16>
    %cst_111 = arith.constant dense<0.000000e+00> : vector<24x32xf32>
    %198 = tpu.matmul %188, %197, %cst_111 {dimension_numbers = #tpu.dot_dimension_numbers<[1], [0], [0], [1], [0, 0, 1, 1], [], []>} : vector<24x32xbf16>, vector<32x32xbf16>, vector<24x32xf32> -> vector<24x32xf32>
    %c1_112 = arith.constant 1 : index
    %c0_113 = arith.constant 0 : index
    %c0_114 = arith.constant 0 : index
    %199 = vector.load %arg14[%c1_112, %c0_113, %c0_114] : memref<2x1x32xf32, #tpu.memory_space<vmem>>, vector<1x1x32xf32>
    %200 = vector.shape_cast %199 : vector<1x1x32xf32> to vector<1x32xf32>
    %201 = vector.broadcast %200 : vector<1x32xf32> to vector<24x32xf32>
    %202 = arith.addf %198, %201 : vector<24x32xf32>
    %c1_115 = arith.constant 1 : index
    %c0_116 = arith.constant 0 : index
    %c0_117 = arith.constant 0 : index
    %203 = vector.load %arg15[%c1_115, %c0_116, %c0_117] : memref<2x32x32xbf16, #tpu.memory_space<vmem>>, vector<1x32x32xbf16>
    %204 = vector.shape_cast %203 : vector<1x32x32xbf16> to vector<32x32xbf16>
    %cst_118 = arith.constant dense<0.000000e+00> : vector<24x32xf32>
    %205 = tpu.matmul %188, %204, %cst_118 {dimension_numbers = #tpu.dot_dimension_numbers<[1], [0], [0], [1], [0, 0, 1, 1], [], []>} : vector<24x32xbf16>, vector<32x32xbf16>, vector<24x32xf32> -> vector<24x32xf32>
    %c1_119 = arith.constant 1 : index
    %c0_120 = arith.constant 0 : index
    %c0_121 = arith.constant 0 : index
    %206 = vector.load %arg16[%c1_119, %c0_120, %c0_121] : memref<2x1x32xf32, #tpu.memory_space<vmem>>, vector<1x1x32xf32>
    %207 = vector.shape_cast %206 : vector<1x1x32xf32> to vector<1x32xf32>
    %208 = vector.broadcast %207 : vector<1x32xf32> to vector<24x32xf32>
    %209 = arith.addf %205, %208 : vector<24x32xf32>
    %210 = tpu.concatenate %202, %202, %202, %202 in 0 : vector<24x32xf32>, vector<24x32xf32>, vector<24x32xf32>, vector<24x32xf32> -> vector<96x32xf32>
    %211 = arith.mulf %210, %1 : vector<96x32xf32>
    %212 = arith.truncf %211 : vector<96x32xf32> to vector<96x32xbf16>
    %213 = tpu.concatenate %209, %209, %209, %209 in 0 : vector<24x32xf32>, vector<24x32xf32>, vector<24x32xf32>, vector<24x32xf32> -> vector<96x32xf32>
    %214 = arith.mulf %213, %1 : vector<96x32xf32>
    %215 = arith.truncf %214 : vector<96x32xf32> to vector<96x32xbf16>
    %216 = arith.truncf %195 : vector<24x32xf32> to vector<24x32xbf16>
    %cst_122 = arith.constant dense<0.000000e+00> : vector<24x96xf32>
    %217 = tpu.matmul %216, %212, %cst_122 {dimension_numbers = #tpu.dot_dimension_numbers<[1], [1], [0], [0], [0, 0, 1, 0], [], []>} : vector<24x32xbf16>, vector<96x32xbf16>, vector<24x96xf32> -> vector<24x96xf32>
    %218 = arith.addf %217, %0 : vector<24x96xf32>
    %cst_123 = arith.constant dense<0xFF800000> : vector<24xf32>
    %219 = vector.multi_reduction <maximumf>, %218, %cst_123 [1] : vector<24x96xf32> to vector<24xf32>
    %220 = vector.shape_cast %219 : vector<24xf32> to vector<24x1xf32>
    %221 = vector.broadcast %220 : vector<24x1xf32> to vector<24x96xf32>
    %222 = arith.subf %218, %221 : vector<24x96xf32>
    %223 = math.exp %222 : vector<24x96xf32>
    %224 = arith.truncf %223 : vector<24x96xf32> to vector<24x96xbf16>
    %cst_124 = arith.constant dense<0.000000e+00> : vector<24x96xf32>
    %225 = tpu.matmul %224, %2, %cst_124 {dimension_numbers = #tpu.dot_dimension_numbers<[1], [0], [0], [1], [0, 0, 1, 1], [], []>} : vector<24x96xbf16>, vector<96x96xbf16>, vector<24x96xf32> -> vector<24x96xf32>
    %226 = tpu.reciprocal %225 {approx = true} : vector<24x96xf32> -> vector<24x96xf32>
    %227 = arith.mulf %223, %226 : vector<24x96xf32>
    %228 = arith.truncf %227 : vector<24x96xf32> to vector<24x96xbf16>
    %cst_125 = arith.constant dense<0.000000e+00> : vector<24x32xf32>
    %229 = tpu.matmul %228, %215, %cst_125 {dimension_numbers = #tpu.dot_dimension_numbers<[1], [0], [0], [1], [0, 0, 1, 1], [], []>} : vector<24x96xbf16>, vector<96x32xbf16>, vector<24x32xf32> -> vector<24x32xf32>
    %230 = arith.truncf %229 : vector<24x32xf32> to vector<24x32xbf16>
    %c1_126 = arith.constant 1 : index
    %c0_127 = arith.constant 0 : index
    %c0_128 = arith.constant 0 : index
    %231 = vector.load %arg17[%c1_126, %c0_127, %c0_128] : memref<2x32x32xbf16, #tpu.memory_space<vmem>>, vector<1x32x32xbf16>
    %232 = vector.shape_cast %231 : vector<1x32x32xbf16> to vector<32x32xbf16>
    %cst_129 = arith.constant dense<0.000000e+00> : vector<24x32xf32>
    %233 = tpu.matmul %230, %232, %cst_129 {dimension_numbers = #tpu.dot_dimension_numbers<[1], [0], [0], [1], [0, 0, 1, 1], [], []>} : vector<24x32xbf16>, vector<32x32xbf16>, vector<24x32xf32> -> vector<24x32xf32>
    %234 = arith.addf %161, %233 : vector<24x32xf32>
    %c1_130 = arith.constant 1 : index
    %c0_131 = arith.constant 0 : index
    %c0_132 = arith.constant 0 : index
    %235 = vector.load %arg18[%c1_130, %c0_131, %c0_132] : memref<2x1x32xf32, #tpu.memory_space<vmem>>, vector<1x1x32xf32>
    %236 = vector.shape_cast %235 : vector<1x1x32xf32> to vector<1x32xf32>
    %237 = vector.broadcast %236 : vector<1x32xf32> to vector<24x32xf32>
    %238 = arith.addf %234, %237 : vector<24x32xf32>
    %c1_133 = arith.constant 1 : index
    %c0_134 = arith.constant 0 : index
    %c0_135 = arith.constant 0 : index
    %239 = vector.load %arg19[%c1_133, %c0_134, %c0_135] : memref<2x1x32xf32, #tpu.memory_space<vmem>>, vector<1x1x32xf32>
    %240 = vector.shape_cast %239 : vector<1x1x32xf32> to vector<1x32xf32>
    %c1_136 = arith.constant 1 : index
    %c0_137 = arith.constant 0 : index
    %c0_138 = arith.constant 0 : index
    %241 = vector.load %arg20[%c1_136, %c0_137, %c0_138] : memref<2x1x32xf32, #tpu.memory_space<vmem>>, vector<1x1x32xf32>
    %242 = vector.shape_cast %241 : vector<1x1x32xf32> to vector<1x32xf32>
    %cst_139 = arith.constant dense<0.000000e+00> : vector<24xf32>
    %243 = vector.multi_reduction <add>, %238, %cst_139 [1] : vector<24x32xf32> to vector<24xf32>
    %244 = vector.shape_cast %243 : vector<24xf32> to vector<24x1xf32>
    %cst_140 = arith.constant 3.200000e+01 : f32
    %245 = vector.broadcast %cst_140 : f32 to vector<24x1xf32>
    %246 = arith.divf %244, %245 : vector<24x1xf32>
    %247 = arith.mulf %238, %238 : vector<24x32xf32>
    %cst_141 = arith.constant dense<0.000000e+00> : vector<24xf32>
    %248 = vector.multi_reduction <add>, %247, %cst_141 [1] : vector<24x32xf32> to vector<24xf32>
    %249 = vector.shape_cast %248 : vector<24xf32> to vector<24x1xf32>
    %cst_142 = arith.constant 3.200000e+01 : f32
    %250 = vector.broadcast %cst_142 : f32 to vector<24x1xf32>
    %251 = arith.divf %249, %250 : vector<24x1xf32>
    %252 = arith.mulf %246, %246 : vector<24x1xf32>
    %253 = arith.subf %251, %252 : vector<24x1xf32>
    %254 = vector.broadcast %246 : vector<24x1xf32> to vector<24x32xf32>
    %255 = arith.subf %238, %254 : vector<24x32xf32>
    %cst_143 = arith.constant 9.99999974E-6 : f32
    %256 = vector.broadcast %cst_143 : f32 to vector<24x1xf32>
    %257 = arith.addf %253, %256 : vector<24x1xf32>
    %258 = math.rsqrt %257 : vector<24x1xf32>
    %259 = vector.broadcast %258 : vector<24x1xf32> to vector<24x32xf32>
    %260 = arith.mulf %255, %259 : vector<24x32xf32>
    %261 = vector.broadcast %240 : vector<1x32xf32> to vector<24x32xf32>
    %262 = arith.mulf %260, %261 : vector<24x32xf32>
    %263 = vector.broadcast %242 : vector<1x32xf32> to vector<24x32xf32>
    %264 = arith.addf %262, %263 : vector<24x32xf32>
    %265 = arith.truncf %264 : vector<24x32xf32> to vector<24x32xbf16>
    %c1_144 = arith.constant 1 : index
    %c0_145 = arith.constant 0 : index
    %c0_146 = arith.constant 0 : index
    %266 = vector.load %arg21[%c1_144, %c0_145, %c0_146] : memref<2x32x64xbf16, #tpu.memory_space<vmem>>, vector<1x32x64xbf16>
    %267 = vector.shape_cast %266 : vector<1x32x64xbf16> to vector<32x64xbf16>
    %cst_147 = arith.constant dense<0.000000e+00> : vector<24x64xf32>
    %268 = tpu.matmul %265, %267, %cst_147 {dimension_numbers = #tpu.dot_dimension_numbers<[1], [0], [0], [1], [0, 0, 1, 1], [], []>} : vector<24x32xbf16>, vector<32x64xbf16>, vector<24x64xf32> -> vector<24x64xf32>
    %c1_148 = arith.constant 1 : index
    %c0_149 = arith.constant 0 : index
    %c0_150 = arith.constant 0 : index
    %269 = vector.load %arg22[%c1_148, %c0_149, %c0_150] : memref<2x1x64xf32, #tpu.memory_space<vmem>>, vector<1x1x64xf32>
    %270 = vector.shape_cast %269 : vector<1x1x64xf32> to vector<1x64xf32>
    %271 = vector.broadcast %270 : vector<1x64xf32> to vector<24x64xf32>
    %272 = arith.addf %268, %271 : vector<24x64xf32>
    %cst_151 = arith.constant 1.702000e+00 : f32
    %273 = vector.broadcast %cst_151 : f32 to vector<24x64xf32>
    %274 = arith.mulf %273, %272 : vector<24x64xf32>
    %275 = arith.negf %274 : vector<24x64xf32>
    %276 = math.exp %275 : vector<24x64xf32>
    %cst_152 = arith.constant 1.000000e+00 : f32
    %277 = vector.broadcast %cst_152 : f32 to vector<24x64xf32>
    %278 = arith.addf %277, %276 : vector<24x64xf32>
    %279 = arith.divf %277, %278 : vector<24x64xf32>
    %280 = arith.mulf %272, %279 : vector<24x64xf32>
    %281 = arith.truncf %280 : vector<24x64xf32> to vector<24x64xbf16>
    %c1_153 = arith.constant 1 : index
    %c0_154 = arith.constant 0 : index
    %c0_155 = arith.constant 0 : index
    %282 = vector.load %arg23[%c1_153, %c0_154, %c0_155] : memref<2x64x32xbf16, #tpu.memory_space<vmem>>, vector<1x64x32xbf16>
    %283 = vector.shape_cast %282 : vector<1x64x32xbf16> to vector<64x32xbf16>
    %cst_156 = arith.constant dense<0.000000e+00> : vector<24x32xf32>
    %284 = tpu.matmul %281, %283, %cst_156 {dimension_numbers = #tpu.dot_dimension_numbers<[1], [0], [0], [1], [0, 0, 1, 1], [], []>} : vector<24x64xbf16>, vector<64x32xbf16>, vector<24x32xf32> -> vector<24x32xf32>
    %285 = arith.addf %238, %284 : vector<24x32xf32>
    %c1_157 = arith.constant 1 : index
    %c0_158 = arith.constant 0 : index
    %c0_159 = arith.constant 0 : index
    %286 = vector.load %arg24[%c1_157, %c0_158, %c0_159] : memref<2x1x32xf32, #tpu.memory_space<vmem>>, vector<1x1x32xf32>
    %287 = vector.shape_cast %286 : vector<1x1x32xf32> to vector<1x32xf32>
    %288 = vector.broadcast %287 : vector<1x32xf32> to vector<24x32xf32>
    %289 = arith.addf %285, %288 : vector<24x32xf32>
    %290 = arith.truncf %289 : vector<24x32xf32> to vector<24x32xbf16>
    %c0_160 = arith.constant 0 : index
    %c0_161 = arith.constant 0 : index
    %291 = vector.load %arg25[%c0_160, %c0_161] : memref<32x48xbf16, #tpu.memory_space<vmem>>, vector<32x48xbf16>
    %cst_162 = arith.constant dense<0.000000e+00> : vector<24x48xf32>
    %292 = tpu.matmul %290, %291, %cst_162 {dimension_numbers = #tpu.dot_dimension_numbers<[1], [0], [0], [1], [0, 0, 1, 1], [], []>} : vector<24x32xbf16>, vector<32x48xbf16>, vector<24x48xf32> -> vector<24x48xf32>
    %c0_163 = arith.constant 0 : index
    %c0_164 = arith.constant 0 : index
    %293 = vector.load %arg26[%c0_163, %c0_164] : memref<1x48xf32, #tpu.memory_space<vmem>>, vector<1x48xf32>
    %294 = vector.broadcast %293 : vector<1x48xf32> to vector<24x48xf32>
    %295 = arith.addf %292, %294 : vector<24x48xf32>
    %296 = arith.mulf %295, %295 : vector<24x48xf32>
    %297 = arith.mulf %295, %296 : vector<24x48xf32>
    %cst_165 = arith.constant 4.471500e-02 : f32
    %298 = vector.broadcast %cst_165 : f32 to vector<24x48xf32>
    %299 = arith.mulf %298, %297 : vector<24x48xf32>
    %300 = arith.addf %295, %299 : vector<24x48xf32>
    %cst_166 = arith.constant 0.797884583 : f32
    %301 = vector.broadcast %cst_166 : f32 to vector<24x48xf32>
    %302 = arith.mulf %301, %300 : vector<24x48xf32>
    %303 = math.tanh %302 : vector<24x48xf32>
    %cst_167 = arith.constant 1.000000e+00 : f32
    %304 = vector.broadcast %cst_167 : f32 to vector<24x48xf32>
    %305 = arith.addf %304, %303 : vector<24x48xf32>
    %cst_168 = arith.constant 5.000000e-01 : f32
    %306 = vector.broadcast %cst_168 : f32 to vector<24x48xf32>
    %307 = arith.mulf %306, %305 : vector<24x48xf32>
    %308 = arith.mulf %295, %307 : vector<24x48xf32>
    %309 = arith.truncf %308 : vector<24x48xf32> to vector<24x48xbf16>
    %c0_169 = arith.constant 0 : index
    %c0_170 = arith.constant 0 : index
    %310 = vector.load %arg27[%c0_169, %c0_170] : memref<48x48xbf16, #tpu.memory_space<vmem>>, vector<48x48xbf16>
    %cst_171 = arith.constant dense<0.000000e+00> : vector<24x48xf32>
    %311 = tpu.matmul %309, %310, %cst_171 {dimension_numbers = #tpu.dot_dimension_numbers<[1], [0], [0], [1], [0, 0, 1, 1], [], []>} : vector<24x48xbf16>, vector<48x48xbf16>, vector<24x48xf32> -> vector<24x48xf32>
    %c0_172 = arith.constant 0 : index
    %c0_173 = arith.constant 0 : index
    %312 = vector.load %arg28[%c0_172, %c0_173] : memref<1x48xf32, #tpu.memory_space<vmem>>, vector<1x48xf32>
    %313 = vector.broadcast %312 : vector<1x48xf32> to vector<24x48xf32>
    %314 = arith.addf %311, %313 : vector<24x48xf32>
    %c0_174 = arith.constant 0 : index
    %c0_175 = arith.constant 0 : index
    %c0_176 = arith.constant 0 : index
    %315 = vector.load %arg29[%c0_174, %c0_175, %c0_176] : memref<1x24x48xf32, #tpu.memory_space<vmem>>, vector<1x24x48xf32>
    %316 = vector.shape_cast %315 : vector<1x24x48xf32> to vector<24x48xf32>
    %317 = vector.shape_cast %314 : vector<24x48xf32> to vector<1x24x48xf32>
    tpu.vector_store %arg29[%c0_174, %c0_175, %c0_176], %317 {strides = array<i32>} : memref<1x24x48xf32, #tpu.memory_space<vmem>>, vector<1x24x48xf32>,
    return
  }
  func.func @transform_0(%arg0: i32) -> (i32, i32, i32) {
    %c0_i32 = arith.constant 0 : i32
    %c0_i32_0 = arith.constant 0 : i32
    %c0_i32_1 = arith.constant 0 : i32
    return %arg0, %c0_i32, %c0_i32_0 : i32, i32, i32
  }
  func.func @transform_1(%arg0: i32) -> (i32, i32) {
    %c0_i32 = arith.constant 0 : i32
    %c0_i32_0 = arith.constant 0 : i32
    %c0_i32_1 = arith.constant 0 : i32
    return %c0_i32, %c0_i32_0 : i32, i32
  }
  func.func @transform_2(%arg0: i32) -> (i32, i32) {
    %c0_i32 = arith.constant 0 : i32
    %c0_i32_0 = arith.constant 0 : i32
    %c0_i32_1 = arith.constant 0 : i32
    return %c0_i32, %c0_i32_0 : i32, i32
  }
  func.func @transform_3(%arg0: i32) -> (i32, i32) {
    %c0_i32 = arith.constant 0 : i32
    %c0_i32_0 = arith.constant 0 : i32
    %c0_i32_1 = arith.constant 0 : i32
    return %c0_i32, %c0_i32_0 : i32, i32
  }
  func.func @transform_4(%arg0: i32) -> (i32, i32) {
    %c0_i32 = arith.constant 0 : i32
    %c0_i32_0 = arith.constant 0 : i32
    %c0_i32_1 = arith.constant 0 : i32
    return %c0_i32, %c0_i32_0 : i32, i32
  }
  func.func @transform_5(%arg0: i32) -> (i32, i32) {
    %c0_i32 = arith.constant 0 : i32
    %c0_i32_0 = arith.constant 0 : i32
    %c0_i32_1 = arith.constant 0 : i32
    return %c0_i32, %c0_i32_0 : i32, i32
  }
  func.func @transform_6(%arg0: i32) -> (i32, i32) {
    %c0_i32 = arith.constant 0 : i32
    %c0_i32_0 = arith.constant 0 : i32
    %c0_i32_1 = arith.constant 0 : i32
    return %c0_i32, %c0_i32_0 : i32, i32
  }
  func.func @transform_7(%arg0: i32) -> (i32, i32) {
    %c0_i32 = arith.constant 0 : i32
    %c0_i32_0 = arith.constant 0 : i32
    %c0_i32_1 = arith.constant 0 : i32
    return %c0_i32, %c0_i32_0 : i32, i32
  }
  func.func @transform_8(%arg0: i32) -> (i32, i32, i32) {
    %c0_i32 = arith.constant 0 : i32
    %c0_i32_0 = arith.constant 0 : i32
    %c0_i32_1 = arith.constant 0 : i32
    %c0_i32_2 = arith.constant 0 : i32
    return %c0_i32, %c0_i32_0, %c0_i32_1 : i32, i32, i32
  }
  func.func @transform_9(%arg0: i32) -> (i32, i32, i32) {
    %c0_i32 = arith.constant 0 : i32
    %c0_i32_0 = arith.constant 0 : i32
    %c0_i32_1 = arith.constant 0 : i32
    %c0_i32_2 = arith.constant 0 : i32
    return %c0_i32, %c0_i32_0, %c0_i32_1 : i32, i32, i32
  }
  func.func @transform_10(%arg0: i32) -> (i32, i32, i32) {
    %c0_i32 = arith.constant 0 : i32
    %c0_i32_0 = arith.constant 0 : i32
    %c0_i32_1 = arith.constant 0 : i32
    %c0_i32_2 = arith.constant 0 : i32
    return %c0_i32, %c0_i32_0, %c0_i32_1 : i32, i32, i32
  }
  func.func @transform_11(%arg0: i32) -> (i32, i32, i32) {
    %c0_i32 = arith.constant 0 : i32
    %c0_i32_0 = arith.constant 0 : i32
    %c0_i32_1 = arith.constant 0 : i32
    %c0_i32_2 = arith.constant 0 : i32
    return %c0_i32, %c0_i32_0, %c0_i32_1 : i32, i32, i32
  }
  func.func @transform_12(%arg0: i32) -> (i32, i32, i32) {
    %c0_i32 = arith.constant 0 : i32
    %c0_i32_0 = arith.constant 0 : i32
    %c0_i32_1 = arith.constant 0 : i32
    %c0_i32_2 = arith.constant 0 : i32
    return %c0_i32, %c0_i32_0, %c0_i32_1 : i32, i32, i32
  }
  func.func @transform_13(%arg0: i32) -> (i32, i32, i32) {
    %c0_i32 = arith.constant 0 : i32
    %c0_i32_0 = arith.constant 0 : i32
    %c0_i32_1 = arith.constant 0 : i32
    %c0_i32_2 = arith.constant 0 : i32
    return %c0_i32, %c0_i32_0, %c0_i32_1 : i32, i32, i32
  }
  func.func @transform_14(%arg0: i32) -> (i32, i32, i32) {
    %c0_i32 = arith.constant 0 : i32
    %c0_i32_0 = arith.constant 0 : i32
    %c0_i32_1 = arith.constant 0 : i32
    %c0_i32_2 = arith.constant 0 : i32
    return %c0_i32, %c0_i32_0, %c0_i32_1 : i32, i32, i32
  }
  func.func @transform_15(%arg0: i32) -> (i32, i32, i32) {
    %c0_i32 = arith.constant 0 : i32
    %c0_i32_0 = arith.constant 0 : i32
    %c0_i32_1 = arith.constant 0 : i32
    %c0_i32_2 = arith.constant 0 : i32
    return %c0_i32, %c0_i32_0, %c0_i32_1 : i32, i32, i32
  }
  func.func @transform_16(%arg0: i32) -> (i32, i32, i32) {
    %c0_i32 = arith.constant 0 : i32
    %c0_i32_0 = arith.constant 0 : i32
    %c0_i32_1 = arith.constant 0 : i32
    %c0_i32_2 = arith.constant 0 : i32
    return %c0_i32, %c0_i32_0, %c0_i32_1 : i32, i32, i32
  }
  func.func @transform_17(%arg0: i32) -> (i32, i32, i32) {
    %c0_i32 = arith.constant 0 : i32
    %c0_i32_0 = arith.constant 0 : i32
    %c0_i32_1 = arith.constant 0 : i32
    %c0_i32_2 = arith.constant 0 : i32
    return %c0_i32, %c0_i32_0, %c0_i32_1 : i32, i32, i32
  }
  func.func @transform_18(%arg0: i32) -> (i32, i32, i32) {
    %c0_i32 = arith.constant 0 : i32
    %c0_i32_0 = arith.constant 0 : i32
    %c0_i32_1 = arith.constant 0 : i32
    %c0_i32_2 = arith.constant 0 : i32
    return %c0_i32, %c0_i32_0, %c0_i32_1 : i32, i32, i32
  }
  func.func @transform_19(%arg0: i32) -> (i32, i32, i32) {
    %c0_i32 = arith.constant 0 : i32
    %c0_i32_0 = arith.constant 0 : i32
    %c0_i32_1 = arith.constant 0 : i32
    %c0_i32_2 = arith.constant 0 : i32
    return %c0_i32, %c0_i32_0, %c0_i32_1 : i32, i32, i32
  }
  func.func @transform_20(%arg0: i32) -> (i32, i32, i32) {
    %c0_i32 = arith.constant 0 : i32
    %c0_i32_0 = arith.constant 0 : i32
    %c0_i32_1 = arith.constant 0 : i32
    %c0_i32_2 = arith.constant 0 : i32
    return %c0_i32, %c0_i32_0, %c0_i32_1 : i32, i32, i32
  }
  func.func @transform_21(%arg0: i32) -> (i32, i32, i32) {
    %c0_i32 = arith.constant 0 : i32
    %c0_i32_0 = arith.constant 0 : i32
    %c0_i32_1 = arith.constant 0 : i32
    %c0_i32_2 = arith.constant 0 : i32
    return %c0_i32, %c0_i32_0, %c0_i32_1 : i32, i32, i32
  }
  func.func @transform_22(%arg0: i32) -> (i32, i32, i32) {
    %c0_i32 = arith.constant 0 : i32
    %c0_i32_0 = arith.constant 0 : i32
    %c0_i32_1 = arith.constant 0 : i32
    %c0_i32_2 = arith.constant 0 : i32
    return %c0_i32, %c0_i32_0, %c0_i32_1 : i32, i32, i32
  }
  func.func @transform_23(%arg0: i32) -> (i32, i32, i32) {
    %c0_i32 = arith.constant 0 : i32
    %c0_i32_0 = arith.constant 0 : i32
    %c0_i32_1 = arith.constant 0 : i32
    %c0_i32_2 = arith.constant 0 : i32
    return %c0_i32, %c0_i32_0, %c0_i32_1 : i32, i32, i32
  }
  func.func @transform_24(%arg0: i32) -> (i32, i32) {
    %c0_i32 = arith.constant 0 : i32
    %c0_i32_0 = arith.constant 0 : i32
    %c0_i32_1 = arith.constant 0 : i32
    return %c0_i32, %c0_i32_0 : i32, i32
  }
  func.func @transform_25(%arg0: i32) -> (i32, i32) {
    %c0_i32 = arith.constant 0 : i32
    %c0_i32_0 = arith.constant 0 : i32
    %c0_i32_1 = arith.constant 0 : i32
    return %c0_i32, %c0_i32_0 : i32, i32
  }
  func.func @transform_26(%arg0: i32) -> (i32, i32) {
    %c0_i32 = arith.constant 0 : i32
    %c0_i32_0 = arith.constant 0 : i32
    %c0_i32_1 = arith.constant 0 : i32
    return %c0_i32, %c0_i32_0 : i32, i32
  }
  func.func @transform_27(%arg0: i32) -> (i32, i32) {
    %c0_i32 = arith.constant 0 : i32
    %c0_i32_0 = arith.constant 0 : i32
    %c0_i32_1 = arith.constant 0 : i32
    return %c0_i32, %c0_i32_0 : i32, i32
  }
  func.func @transform_28(%arg0: i32) -> (i32, i32, i32) {
    %c0_i32 = arith.constant 0 : i32
    %c0_i32_0 = arith.constant 0 : i32
    %c0_i32_1 = arith.constant 0 : i32
    return %arg0, %c0_i32, %c0_i32_0 : i32, i32, i32
  }
}

</mosaic_0001>

<llo_original>
// kernel: llava_phi_vision_encoder.1
$region0: #{llava_phi_vision_encoder.1}
  #allocation0 [shape = 'u32[]', space=smem, size = 0x4, offset = 0x4, fixed_abs, tag = 'smem constant byte address 0x4 - core index']
  #allocation1 [shape = 'u32[72,128]{1,0:T(1,128)}', space=vmem, size = 0x9000, scoped, tag = 'internal scratch']
  %s0 = inlined_call_operand.vmem [shape: f32[2,24,48], index: 0, kind: input, shape index: {}]
  %s1 = inlined_call_operand.vmem [shape: bf16[48,32], index: 1, kind: input, shape index: {}]
  %s2 = inlined_call_operand.vmem [shape: f32[24,32], index: 2, kind: input, shape index: {}]
  %s3 = inlined_call_operand.vmem [shape: f32[24,96], index: 3, kind: input, shape index: {}]
  %s4 = inlined_call_operand.vmem [shape: f32[96,32], index: 4, kind: input, shape index: {}]
  %s5 = inlined_call_operand.vmem [shape: bf16[96,96], index: 5, kind: input, shape index: {}]
  %s6 = inlined_call_operand.vmem [shape: f32[1,32], index: 6, kind: input, shape index: {}]
  %s7 = inlined_call_operand.vmem [shape: f32[1,32], index: 7, kind: input, shape index: {}]
  %s8 = inlined_call_operand.vmem [shape: f32[2,1,32], index: 8, kind: input, shape index: {}]
  %s9 = inlined_call_operand.vmem [shape: f32[2,1,32], index: 9, kind: input, shape index: {}]
  %s10 = inlined_call_operand.vmem [shape: bf16[2,32,32], index: 10, kind: input, shape index: {}]
  %s11 = inlined_call_operand.vmem [shape: f32[2,1,32], index: 11, kind: input, shape index: {}]
  %s12 = inlined_call_operand.vmem [shape: bf16[2,32,32], index: 12, kind: input, shape index: {}]
  %s13 = inlined_call_operand.vmem [shape: f32[2,1,32], index: 13, kind: input, shape index: {}]
  %s14 = inlined_call_operand.vmem [shape: bf16[2,32,32], index: 14, kind: input, shape index: {}]
  %s15 = inlined_call_operand.vmem [shape: f32[2,1,32], index: 15, kind: input, shape index: {}]
  %s16 = inlined_call_operand.vmem [shape: bf16[2,32,32], index: 16, kind: input, shape index: {}]
  %s17 = inlined_call_operand.vmem [shape: f32[2,1,32], index: 17, kind: input, shape index: {}]
  %s18 = inlined_call_operand.vmem [shape: f32[2,1,32], index: 18, kind: input, shape index: {}]
  %s19 = inlined_call_operand.vmem [shape: f32[2,1,32], index: 19, kind: input, shape index: {}]
  %s20 = inlined_call_operand.vmem [shape: bf16[2,32,64], index: 20, kind: input, shape index: {}]
  %s21 = inlined_call_operand.vmem [shape: f32[2,1,64], index: 21, kind: input, shape index: {}]
  %s22 = inlined_call_operand.vmem [shape: bf16[2,64,32], index: 22, kind: input, shape index: {}]
  %s23 = inlined_call_operand.vmem [shape: f32[2,1,32], index: 23, kind: input, shape index: {}]
  %s24 = inlined_call_operand.vmem [shape: bf16[32,48], index: 24, kind: input, shape index: {}]
  %s25 = inlined_call_operand.vmem [shape: f32[1,48], index: 25, kind: input, shape index: {}]
  %s26 = inlined_call_operand.vmem [shape: bf16[48,48], index: 26, kind: input, shape index: {}]
  %s27 = inlined_call_operand.vmem [shape: f32[1,48], index: 27, kind: input, shape index: {}]
  %s28 = inlined_call_operand.vmem [shape: f32[2,24,48], index: 28, kind: output, shape index: {}]
  %s29 = sld [smem:[#allocation0]]
  $region145: #{llava_phi_vision_encoder.1} parent=0
    _
  %s31 = ssub.s32 1, %s29
  %s32 = scalar_select 0, %s31, %s29
  loop: start=0, step=1, limit=4
  $region2: #{llava_phi_vision_encoder.1} parent=0 // loop_pre_header
    _
  $region3: #{llava_phi_vision_encoder.1} parent=0 // loop_header
    %s34 = sphi 0, %s38
    %p35 = scmp.ge.s32.totalorder %s34, 4
    %s44 = sphi 0, %s46
    %s47 = sphi 0, %s44
    %s48 = sphi 0, %s47
    %s64 = sphi 0, %s48
    %s68 = sphi 0, %s68
    %s70 = sphi 0, %s68
    %s71 = sphi 0, %s70
    %s85 = sphi 0, %s71
    %s89 = sphi 0, %s89
    %s91 = sphi 0, %s89
    %s92 = sphi 0, %s91
    %s106 = sphi 0, %s92
    %s110 = sphi 0, %s110
    %s112 = sphi 0, %s110
    %s113 = sphi 0, %s112
    %s127 = sphi 0, %s113
    %s131 = sphi 0, %s131
    %s133 = sphi 0, %s131
    %s134 = sphi 0, %s133
    %s148 = sphi 0, %s134
    %s152 = sphi 0, %s152
    %s154 = sphi 0, %s152
    %s155 = sphi 0, %s154
    %s169 = sphi 0, %s155
    %s173 = sphi 0, %s173
    %s175 = sphi 0, %s173
    %s176 = sphi 0, %s175
    %s190 = sphi 0, %s176
    %s194 = sphi 0, %s194
    %s196 = sphi 0, %s194
    %s197 = sphi 0, %s196
    %s211 = sphi 0, %s197
    %s215 = sphi 0, %s215
    %s217 = sphi 0, %s215
    %s218 = sphi 0, %s217
    %s232 = sphi 0, %s218
    %s236 = sphi 0, %s236
    %s238 = sphi 0, %s236
    %s239 = sphi 0, %s238
    %s253 = sphi 0, %s239
    %s257 = sphi 0, %s257
    %s259 = sphi 0, %s257
    %s260 = sphi 0, %s259
    %s274 = sphi 0, %s260
    %s278 = sphi 0, %s278
    %s280 = sphi 0, %s278
    %s281 = sphi 0, %s280
    %s295 = sphi 0, %s281
    %s299 = sphi 0, %s299
    %s301 = sphi 0, %s299
    %s302 = sphi 0, %s301
    %s316 = sphi 0, %s302
    %s320 = sphi 0, %s320
    %s322 = sphi 0, %s320
    %s323 = sphi 0, %s322
    %s337 = sphi 0, %s323
    %s341 = sphi 0, %s341
    %s343 = sphi 0, %s341
    %s344 = sphi 0, %s343
    %s358 = sphi 0, %s344
    %s362 = sphi 0, %s362
    %s364 = sphi 0, %s362
    %s365 = sphi 0, %s364
    %s379 = sphi 0, %s365
    %s383 = sphi 0, %s383
    %s385 = sphi 0, %s383
    %s386 = sphi 0, %s385
    %s400 = sphi 0, %s386
    %s404 = sphi 0, %s404
    %s406 = sphi 0, %s404
    %s407 = sphi 0, %s406
    %s421 = sphi 0, %s407
    %s425 = sphi 0, %s425
    %s427 = sphi 0, %s425
    %s428 = sphi 0, %s427
    %s442 = sphi 0, %s428
    %s446 = sphi 0, %s446
    %s448 = sphi 0, %s446
    %s449 = sphi 0, %s448
    %s463 = sphi 0, %s449
    %s467 = sphi 0, %s467
    %s469 = sphi 0, %s467
    %s470 = sphi 0, %s469
    %s484 = sphi 0, %s470
    %s488 = sphi 0, %s488
    %s490 = sphi 0, %s488
    %s491 = sphi 0, %s490
    %s505 = sphi 0, %s491
    %s509 = sphi 0, %s509
    %s511 = sphi 0, %s509
    %s512 = sphi 0, %s511
    %s526 = sphi 0, %s512
    %s530 = sphi 0, %s530
    %s532 = sphi 0, %s530
    %s533 = sphi 0, %s532
    %s547 = sphi 0, %s533
    %s551 = sphi 0, %s551
    %s553 = sphi 0, %s551
    %s554 = sphi 0, %s553
    %s568 = sphi 0, %s554
    %s572 = sphi 0, %s572
    %s574 = sphi 0, %s572
    %s575 = sphi 0, %s574
    %s589 = sphi 0, %s575
    %s593 = sphi 0, %s593
    %s595 = sphi 0, %s593
    %s596 = sphi 0, %s595
    %s610 = sphi 0, %s596
    %s614 = sphi 0, %s614
    %s616 = sphi 0, %s614
    %s617 = sphi 0, %s616
    %s631 = sphi 0, %s617
    %s637 = sphi 0, %s639
    %s640 = sphi 0, %s637
    %s641 = sphi 0, %s640
    %s657 = sphi 0, %s641
  $region4: #{llava_phi_vision_encoder.1} parent=0 // loop_header_branch
    %37 = sbr.rel (%p35) target = $region8
  $region5: #{llava_phi_vision_encoder.1} parent=0 // loop_body
    %s39 = ssub.s32 %s34, 1
    %s40 = ssub.s32 %s34, 2
    %s41 = sadd.s32 %s34, 1
    %s42 = ssub.s32 %s34, %s41
    %p43 = scmp.eq.s32.totalorder %s42, 0
    %s45 = sadd.s32 %s44, 1
    %s46 = scalar_select %p43, %s44, %s45
    %p49 = pneg %p43
    %p50 = scmp.eq.s32.totalorder %s34, 1
    %p51 = por %p49, %p50
    %p52 = scmp.ne.s32.totalorder %s44, %s47
    %p53 = scmp.eq.s32.totalorder %s34, 0
    %p54 = por %p52, %p53
    %p55 = scmp.ne.s32.totalorder %s44, %s47
    %p56 = scmp.eq.s32.totalorder %s39, 1
    %p57 = por %p55, %p56
    %p58 = scmp.ne.s32.totalorder %s47, %s48
    %p59 = scmp.eq.s32.totalorder %s39, 0
    %p60 = por %p58, %p59
    %p61 = scmp.ne.s32.totalorder %s47, %s48
    %p62 = scmp.eq.s32.totalorder %s40, 1
    %p63 = por %p61, %p62
    %p65 = scmp.ne.s32.totalorder %s48, %s64
    %p66 = scmp.eq.s32.totalorder %s40, 0
    %p67 = por %p65, %p66
    %s69 = sadd.s32 %s68, 1
    %p72 = scmp.eq.s32.totalorder %s34, 1
    %p73 = scmp.ne.s32.totalorder %s68, %s70
    %p74 = scmp.eq.s32.totalorder %s34, 0
    %p75 = por %p73, %p74
    %p76 = scmp.ne.s32.totalorder %s68, %s70
    %p77 = scmp.eq.s32.totalorder %s39, 1
    %p78 = por %p76, %p77
    %p79 = scmp.ne.s32.totalorder %s70, %s71
    %p80 = scmp.eq.s32.totalorder %s39, 0
    %p81 = por %p79, %p80
    %p82 = scmp.ne.s32.totalorder %s70, %s71
    %p83 = scmp.eq.s32.totalorder %s40, 1
    %p84 = por %p82, %p83
    %p86 = scmp.ne.s32.totalorder %s71, %s85
    %p87 = scmp.eq.s32.totalorder %s40, 0
    %p88 = por %p86, %p87
    %s90 = sadd.s32 %s89, 1
    %p93 = scmp.eq.s32.totalorder %s34, 1
    %p94 = scmp.ne.s32.totalorder %s89, %s91
    %p95 = scmp.eq.s32.totalorder %s34, 0
    %p96 = por %p94, %p95
    %p97 = scmp.ne.s32.totalorder %s89, %s91
    %p98 = scmp.eq.s32.totalorder %s39, 1
    %p99 = por %p97, %p98
    %p100 = scmp.ne.s32.totalorder %s91, %s92
    %p101 = scmp.eq.s32.totalorder %s39, 0
    %p102 = por %p100, %p101
    %p103 = scmp.ne.s32.totalorder %s91, %s92
    %p104 = scmp.eq.s32.totalorder %s40, 1
    %p105 = por %p103, %p104
    %p107 = scmp.ne.s32.totalorder %s92, %s106
    %p108 = scmp.eq.s32.totalorder %s40, 0
    %p109 = por %p107, %p108
    %s111 = sadd.s32 %s110, 1
    %p114 = scmp.eq.s32.totalorder %s34, 1
    %p115 = scmp.ne.s32.totalorder %s110, %s112
    %p116 = scmp.eq.s32.totalorder %s34, 0
    %p117 = por %p115, %p116
    %p118 = scmp.ne.s32.totalorder %s110, %s112
    %p119 = scmp.eq.s32.totalorder %s39, 1
    %p120 = por %p118, %p119
    %p121 = scmp.ne.s32.totalorder %s112, %s113
    %p122 = scmp.eq.s32.totalorder %s39, 0
    %p123 = por %p121, %p122
    %p124 = scmp.ne.s32.totalorder %s112, %s113
    %p125 = scmp.eq.s32.totalorder %s40, 1
    %p126 = por %p124, %p125
    %p128 = scmp.ne.s32.totalorder %s113, %s127
    %p129 = scmp.eq.s32.totalorder %s40, 0
    %p130 = por %p128, %p129
    %s132 = sadd.s32 %s131, 1
    %p135 = scmp.eq.s32.totalorder %s34, 1
    %p136 = scmp.ne.s32.totalorder %s131, %s133
    %p137 = scmp.eq.s32.totalorder %s34, 0
    %p138 = por %p136, %p137
    %p139 = scmp.ne.s32.totalorder %s131, %s133
    %p140 = scmp.eq.s32.totalorder %s39, 1
    %p141 = por %p139, %p140
    %p142 = scmp.ne.s32.totalorder %s133, %s134
    %p143 = scmp.eq.s32.totalorder %s39, 0
    %p144 = por %p142, %p143
    %p145 = scmp.ne.s32.totalorder %s133, %s134
    %p146 = scmp.eq.s32.totalorder %s40, 1
    %p147 = por %p145, %p146
    %p149 = scmp.ne.s32.totalorder %s134, %s148
    %p150 = scmp.eq.s32.totalorder %s40, 0
    %p151 = por %p149, %p150
    %s153 = sadd.s32 %s152, 1
    %p156 = scmp.eq.s32.totalorder %s34, 1
    %p157 = scmp.ne.s32.totalorder %s152, %s154
    %p158 = scmp.eq.s32.totalorder %s34, 0
    %p159 = por %p157, %p158
    %p160 = scmp.ne.s32.totalorder %s152, %s154
    %p161 = scmp.eq.s32.totalorder %s39, 1
    %p162 = por %p160, %p161
    %p163 = scmp.ne.s32.totalorder %s154, %s155
    %p164 = scmp.eq.s32.totalorder %s39, 0
    %p165 = por %p163, %p164
    %p166 = scmp.ne.s32.totalorder %s154, %s155
    %p167 = scmp.eq.s32.totalorder %s40, 1
    %p168 = por %p166, %p167
    %p170 = scmp.ne.s32.totalorder %s155, %s169
    %p171 = scmp.eq.s32.totalorder %s40, 0
    %p172 = por %p170, %p171
    %s174 = sadd.s32 %s173, 1
    %p177 = scmp.eq.s32.totalorder %s34, 1
    %p178 = scmp.ne.s32.totalorder %s173, %s175
    %p179 = scmp.eq.s32.totalorder %s34, 0
    %p180 = por %p178, %p179
    %p181 = scmp.ne.s32.totalorder %s173, %s175
    %p182 = scmp.eq.s32.totalorder %s39, 1
    %p183 = por %p181, %p182
    %p184 = scmp.ne.s32.totalorder %s175, %s176
    %p185 = scmp.eq.s32.totalorder %s39, 0
    %p186 = por %p184, %p185
    %p187 = scmp.ne.s32.totalorder %s175, %s176
    %p188 = scmp.eq.s32.totalorder %s40, 1
    %p189 = por %p187, %p188
    %p191 = scmp.ne.s32.totalorder %s176, %s190
    %p192 = scmp.eq.s32.totalorder %s40, 0
    %p193 = por %p191, %p192
    %s195 = sadd.s32 %s194, 1
    %p198 = scmp.eq.s32.totalorder %s34, 1
    %p199 = scmp.ne.s32.totalorder %s194, %s196
    %p200 = scmp.eq.s32.totalorder %s34, 0
    %p201 = por %p199, %p200
    %p202 = scmp.ne.s32.totalorder %s194, %s196
    %p203 = scmp.eq.s32.totalorder %s39, 1
    %p204 = por %p202, %p203
    %p205 = scmp.ne.s32.totalorder %s196, %s197
    %p206 = scmp.eq.s32.totalorder %s39, 0
    %p207 = por %p205, %p206
    %p208 = scmp.ne.s32.totalorder %s196, %s197
    %p209 = scmp.eq.s32.totalorder %s40, 1
    %p210 = por %p208, %p209
    %p212 = scmp.ne.s32.totalorder %s197, %s211
    %p213 = scmp.eq.s32.totalorder %s40, 0
    %p214 = por %p212, %p213
    %s216 = sadd.s32 %s215, 1
    %p219 = scmp.eq.s32.totalorder %s34, 1
    %p220 = scmp.ne.s32.totalorder %s215, %s217
    %p221 = scmp.eq.s32.totalorder %s34, 0
    %p222 = por %p220, %p221
    %p223 = scmp.ne.s32.totalorder %s215, %s217
    %p224 = scmp.eq.s32.totalorder %s39, 1
    %p225 = por %p223, %p224
    %p226 = scmp.ne.s32.totalorder %s217, %s218
    %p227 = scmp.eq.s32.totalorder %s39, 0
    %p228 = por %p226, %p227
    %p229 = scmp.ne.s32.totalorder %s217, %s218
    %p230 = scmp.eq.s32.totalorder %s40, 1
    %p231 = por %p229, %p230
    %p233 = scmp.ne.s32.totalorder %s218, %s232
    %p234 = scmp.eq.s32.totalorder %s40, 0
    %p235 = por %p233, %p234
    %s237 = sadd.s32 %s236, 1
    %p240 = scmp.eq.s32.totalorder %s34, 1
    %p241 = scmp.ne.s32.totalorder %s236, %s238
    %p242 = scmp.eq.s32.totalorder %s34, 0
    %p243 = por %p241, %p242
    %p244 = scmp.ne.s32.totalorder %s236, %s238
    %p245 = scmp.eq.s32.totalorder %s39, 1
    %p246 = por %p244, %p245
    %p247 = scmp.ne.s32.totalorder %s238, %s239
    %p248 = scmp.eq.s32.totalorder %s39, 0
    %p249 = por %p247, %p248
    %p250 = scmp.ne.s32.totalorder %s238, %s239
    %p251 = scmp.eq.s32.totalorder %s40, 1
    %p252 = por %p250, %p251
    %p254 = scmp.ne.s32.totalorder %s239, %s253
    %p255 = scmp.eq.s32.totalorder %s40, 0
    %p256 = por %p254, %p255
    %s258 = sadd.s32 %s257, 1
    %p261 = scmp.eq.s32.totalorder %s34, 1
    %p262 = scmp.ne.s32.totalorder %s257, %s259
    %p263 = scmp.eq.s32.totalorder %s34, 0
    %p264 = por %p262, %p263
    %p265 = scmp.ne.s32.totalorder %s257, %s259
    %p266 = scmp.eq.s32.totalorder %s39, 1
    %p267 = por %p265, %p266
    %p268 = scmp.ne.s32.totalorder %s259, %s260
    %p269 = scmp.eq.s32.totalorder %s39, 0
    %p270 = por %p268, %p269
    %p271 = scmp.ne.s32.totalorder %s259, %s260
    %p272 = scmp.eq.s32.totalorder %s40, 1
    %p273 = por %p271, %p272
    %p275 = scmp.ne.s32.totalorder %s260, %s274
    %p276 = scmp.eq.s32.totalorder %s40, 0
    %p277 = por %p275, %p276
    %s279 = sadd.s32 %s278, 1
    %p282 = scmp.eq.s32.totalorder %s34, 1
    %p283 = scmp.ne.s32.totalorder %s278, %s280
    %p284 = scmp.eq.s32.totalorder %s34, 0
    %p285 = por %p283, %p284
    %p286 = scmp.ne.s32.totalorder %s278, %s280
    %p287 = scmp.eq.s32.totalorder %s39, 1
    %p288 = por %p286, %p287
    %p289 = scmp.ne.s32.totalorder %s280, %s281
    %p290 = scmp.eq.s32.totalorder %s39, 0
    %p291 = por %p289, %p290
    %p292 = scmp.ne.s32.totalorder %s280, %s281
    %p293 = scmp.eq.s32.totalorder %s40, 1
    %p294 = por %p292, %p293
    %p296 = scmp.ne.s32.totalorder %s281, %s295
    %p297 = scmp.eq.s32.totalorder %s40, 0
    %p298 = por %p296, %p297
    %s300 = sadd.s32 %s299, 1
    %p303 = scmp.eq.s32.totalorder %s34, 1
    %p304 = scmp.ne.s32.totalorder %s299, %s301
    %p305 = scmp.eq.s32.totalorder %s34, 0
    %p306 = por %p304, %p305
    %p307 = scmp.ne.s32.totalorder %s299, %s301
    %p308 = scmp.eq.s32.totalorder %s39, 1
    %p309 = por %p307, %p308
    %p310 = scmp.ne.s32.totalorder %s301, %s302
    %p311 = scmp.eq.s32.totalorder %s39, 0
    %p312 = por %p310, %p311
    %p313 = scmp.ne.s32.totalorder %s301, %s302
    %p314 = scmp.eq.s32.totalorder %s40, 1
    %p315 = por %p313, %p314
    %p317 = scmp.ne.s32.totalorder %s302, %s316
    %p318 = scmp.eq.s32.totalorder %s40, 0
    %p319 = por %p317, %p318
    %s321 = sadd.s32 %s320, 1
    %p324 = scmp.eq.s32.totalorder %s34, 1
    %p325 = scmp.ne.s32.totalorder %s320, %s322
    %p326 = scmp.eq.s32.totalorder %s34, 0
    %p327 = por %p325, %p326
    %p328 = scmp.ne.s32.totalorder %s320, %s322
    %p329 = scmp.eq.s32.totalorder %s39, 1
    %p330 = por %p328, %p329
    %p331 = scmp.ne.s32.totalorder %s322, %s323
    %p332 = scmp.eq.s32.totalorder %s39, 0
    %p333 = por %p331, %p332
    %p334 = scmp.ne.s32.totalorder %s322, %s323
    %p335 = scmp.eq.s32.totalorder %s40, 1
    %p336 = por %p334, %p335
    %p338 = scmp.ne.s32.totalorder %s323, %s337
    %p339 = scmp.eq.s32.totalorder %s40, 0
    %p340 = por %p338, %p339
    %s342 = sadd.s32 %s341, 1
    %p345 = scmp.eq.s32.totalorder %s34, 1
    %p346 = scmp.ne.s32.totalorder %s341, %s343
    %p347 = scmp.eq.s32.totalorder %s34, 0
    %p348 = por %p346, %p347
    %p349 = scmp.ne.s32.totalorder %s341, %s343
    %p350 = scmp.eq.s32.totalorder %s39, 1
    %p351 = por %p349, %p350
    %p352 = scmp.ne.s32.totalorder %s343, %s344
    %p353 = scmp.eq.s32.totalorder %s39, 0
    %p354 = por %p352, %p353
    %p355 = scmp.ne.s32.totalorder %s343, %s344
    %p356 = scmp.eq.s32.totalorder %s40, 1
    %p357 = por %p355, %p356
    %p359 = scmp.ne.s32.totalorder %s344, %s358
    %p360 = scmp.eq.s32.totalorder %s40, 0
    %p361 = por %p359, %p360
    %s363 = sadd.s32 %s362, 1
    %p366 = scmp.eq.s32.totalorder %s34, 1
    %p367 = scmp.ne.s32.totalorder %s362, %s364
    %p368 = scmp.eq.s32.totalorder %s34, 0
    %p369 = por %p367, %p368
    %p370 = scmp.ne.s32.totalorder %s362, %s364
    %p371 = scmp.eq.s32.totalorder %s39, 1
    %p372 = por %p370, %p371
    %p373 = scmp.ne.s32.totalorder %s364, %s365
    %p374 = scmp.eq.s32.totalorder %s39, 0
    %p375 = por %p373, %p374
    %p376 = scmp.ne.s32.totalorder %s364, %s365
    %p377 = scmp.eq.s32.totalorder %s40, 1
    %p378 = por %p376, %p377
    %p380 = scmp.ne.s32.totalorder %s365, %s379
    %p381 = scmp.eq.s32.totalorder %s40, 0
    %p382 = por %p380, %p381
    %s384 = sadd.s32 %s383, 1
    %p387 = scmp.eq.s32.totalorder %s34, 1
    %p388 = scmp.ne.s32.totalorder %s383, %s385
    %p389 = scmp.eq.s32.totalorder %s34, 0
    %p390 = por %p388, %p389
    %p391 = scmp.ne.s32.totalorder %s383, %s385
    %p392 = scmp.eq.s32.totalorder %s39, 1
    %p393 = por %p391, %p392
    %p394 = scmp.ne.s32.totalorder %s385, %s386
    %p395 = scmp.eq.s32.totalorder %s39, 0
    %p396 = por %p394, %p395
    %p397 = scmp.ne.s32.totalorder %s385, %s386
    %p398 = scmp.eq.s32.totalorder %s40, 1
    %p399 = por %p397, %p398
    %p401 = scmp.ne.s32.totalorder %s386, %s400
    %p402 = scmp.eq.s32.totalorder %s40, 0
    %p403 = por %p401, %p402
    %s405 = sadd.s32 %s404, 1
    %p408 = scmp.eq.s32.totalorder %s34, 1
    %p409 = scmp.ne.s32.totalorder %s404, %s406
    %p410 = scmp.eq.s32.totalorder %s34, 0
    %p411 = por %p409, %p410
    %p412 = scmp.ne.s32.totalorder %s404, %s406
    %p413 = scmp.eq.s32.totalorder %s39, 1
    %p414 = por %p412, %p413
    %p415 = scmp.ne.s32.totalorder %s406, %s407
    %p416 = scmp.eq.s32.totalorder %s39, 0
    %p417 = por %p415, %p416
    %p418 = scmp.ne.s32.totalorder %s406, %s407
    %p419 = scmp.eq.s32.totalorder %s40, 1
    %p420 = por %p418, %p419
    %p422 = scmp.ne.s32.totalorder %s407, %s421
    %p423 = scmp.eq.s32.totalorder %s40, 0
    %p424 = por %p422, %p423
    %s426 = sadd.s32 %s425, 1
    %p429 = scmp.eq.s32.totalorder %s34, 1
    %p430 = scmp.ne.s32.totalorder %s425, %s427
    %p431 = scmp.eq.s32.totalorder %s34, 0
    %p432 = por %p430, %p431
    %p433 = scmp.ne.s32.totalorder %s425, %s427
    %p434 = scmp.eq.s32.totalorder %s39, 1
    %p435 = por %p433, %p434
    %p436 = scmp.ne.s32.totalorder %s427, %s428
    %p437 = scmp.eq.s32.totalorder %s39, 0
    %p438 = por %p436, %p437
    %p439 = scmp.ne.s32.totalorder %s427, %s428
    %p440 = scmp.eq.s32.totalorder %s40, 1
    %p441 = por %p439, %p440
    %p443 = scmp.ne.s32.totalorder %s428, %s442
    %p444 = scmp.eq.s32.totalorder %s40, 0
    %p445 = por %p443, %p444
    %s447 = sadd.s32 %s446, 1
    %p450 = scmp.eq.s32.totalorder %s34, 1
    %p451 = scmp.ne.s32.totalorder %s446, %s448
    %p452 = scmp.eq.s32.totalorder %s34, 0
    %p453 = por %p451, %p452
    %p454 = scmp.ne.s32.totalorder %s446, %s448
    %p455 = scmp.eq.s32.totalorder %s39, 1
    %p456 = por %p454, %p455
    %p457 = scmp.ne.s32.totalorder %s448, %s449
    %p458 = scmp.eq.s32.totalorder %s39, 0
    %p459 = por %p457, %p458
    %p460 = scmp.ne.s32.totalorder %s448, %s449
    %p461 = scmp.eq.s32.totalorder %s40, 1
    %p462 = por %p460, %p461
    %p464 = scmp.ne.s32.totalorder %s449, %s463
    %p465 = scmp.eq.s32.totalorder %s40, 0
    %p466 = por %p464, %p465
    %s468 = sadd.s32 %s467, 1
    %p471 = scmp.eq.s32.totalorder %s34, 1
    %p472 = scmp.ne.s32.totalorder %s467, %s469
    %p473 = scmp.eq.s32.totalorder %s34, 0
    %p474 = por %p472, %p473
    %p475 = scmp.ne.s32.totalorder %s467, %s469
    %p476 = scmp.eq.s32.totalorder %s39, 1
    %p477 = por %p475, %p476
    %p478 = scmp.ne.s32.totalorder %s469, %s470
    %p479 = scmp.eq.s32.totalorder %s39, 0
    %p480 = por %p478, %p479
    %p481 = scmp.ne.s32.totalorder %s469, %s470
    %p482 = scmp.eq.s32.totalorder %s40, 1
    %p483 = por %p481, %p482
    %p485 = scmp.ne.s32.totalorder %s470, %s484
    %p486 = scmp.eq.s32.totalorder %s40, 0
    %p487 = por %p485, %p486
    %s489 = sadd.s32 %s488, 1
    %p492 = scmp.eq.s32.totalorder %s34, 1
    %p493 = scmp.ne.s32.totalorder %s488, %s490
    %p494 = scmp.eq.s32.totalorder %s34, 0
    %p495 = por %p493, %p494
    %p496 = scmp.ne.s32.totalorder %s488, %s490
    %p497 = scmp.eq.s32.totalorder %s39, 1
    %p498 = por %p496, %p497
    %p499 = scmp.ne.s32.totalorder %s490, %s491
    %p500 = scmp.eq.s32.totalorder %s39, 0
    %p501 = por %p499, %p500
    %p502 = scmp.ne.s32.totalorder %s490, %s491
    %p503 = scmp.eq.s32.totalorder %s40, 1
    %p504 = por %p502, %p503
    %p506 = scmp.ne.s32.totalorder %s491, %s505
    %p507 = scmp.eq.s32.totalorder %s40, 0
    %p508 = por %p506, %p507
    %s510 = sadd.s32 %s509, 1
    %p513 = scmp.eq.s32.totalorder %s34, 1
    %p514 = scmp.ne.s32.totalorder %s509, %s511
    %p515 = scmp.eq.s32.totalorder %s34, 0
    %p516 = por %p514, %p515
    %p517 = scmp.ne.s32.totalorder %s509, %s511
    %p518 = scmp.eq.s32.totalorder %s39, 1
    %p519 = por %p517, %p518
    %p520 = scmp.ne.s32.totalorder %s511, %s512
    %p521 = scmp.eq.s32.totalorder %s39, 0
    %p522 = por %p520, %p521
    %p523 = scmp.ne.s32.totalorder %s511, %s512
    %p524 = scmp.eq.s32.totalorder %s40, 1
    %p525 = por %p523, %p524
    %p527 = scmp.ne.s32.totalorder %s512, %s526
    %p528 = scmp.eq.s32.totalorder %s40, 0
    %p529 = por %p527, %p528
    %s531 = sadd.s32 %s530, 1
    %p534 = scmp.eq.s32.totalorder %s34, 1
    %p535 = scmp.ne.s32.totalorder %s530, %s532
    %p536 = scmp.eq.s32.totalorder %s34, 0
    %p537 = por %p535, %p536
    %p538 = scmp.ne.s32.totalorder %s530, %s532
    %p539 = scmp.eq.s32.totalorder %s39, 1
    %p540 = por %p538, %p539
    %p541 = scmp.ne.s32.totalorder %s532, %s533
    %p542 = scmp.eq.s32.totalorder %s39, 0
    %p543 = por %p541, %p542
    %p544 = scmp.ne.s32.totalorder %s532, %s533
    %p545 = scmp.eq.s32.totalorder %s40, 1
    %p546 = por %p544, %p545
    %p548 = scmp.ne.s32.totalorder %s533, %s547
    %p549 = scmp.eq.s32.totalorder %s40, 0
    %p550 = por %p548, %p549
    %s552 = sadd.s32 %s551, 1
    %p555 = scmp.eq.s32.totalorder %s34, 1
    %p556 = scmp.ne.s32.totalorder %s551, %s553
    %p557 = scmp.eq.s32.totalorder %s34, 0
    %p558 = por %p556, %p557
    %p559 = scmp.ne.s32.totalorder %s551, %s553
    %p560 = scmp.eq.s32.totalorder %s39, 1
    %p561 = por %p559, %p560
    %p562 = scmp.ne.s32.totalorder %s553, %s554
    %p563 = scmp.eq.s32.totalorder %s39, 0
    %p564 = por %p562, %p563
    %p565 = scmp.ne.s32.totalorder %s553, %s554
    %p566 = scmp.eq.s32.totalorder %s40, 1
    %p567 = por %p565, %p566
    %p569 = scmp.ne.s32.totalorder %s554, %s568
    %p570 = scmp.eq.s32.totalorder %s40, 0
    %p571 = por %p569, %p570
    %s573 = sadd.s32 %s572, 1
    %p576 = scmp.eq.s32.totalorder %s34, 1
    %p577 = scmp.ne.s32.totalorder %s572, %s574
    %p578 = scmp.eq.s32.totalorder %s34, 0
    %p579 = por %p577, %p578
    %p580 = scmp.ne.s32.totalorder %s572, %s574
    %p581 = scmp.eq.s32.totalorder %s39, 1
    %p582 = por %p580, %p581
    %p583 = scmp.ne.s32.totalorder %s574, %s575
    %p584 = scmp.eq.s32.totalorder %s39, 0
    %p585 = por %p583, %p584
    %p586 = scmp.ne.s32.totalorder %s574, %s575
    %p587 = scmp.eq.s32.totalorder %s40, 1
    %p588 = por %p586, %p587
    %p590 = scmp.ne.s32.totalorder %s575, %s589
    %p591 = scmp.eq.s32.totalorder %s40, 0
    %p592 = por %p590, %p591
    %s594 = sadd.s32 %s593, 1
    %p597 = scmp.eq.s32.totalorder %s34, 1
    %p598 = scmp.ne.s32.totalorder %s593, %s595
    %p599 = scmp.eq.s32.totalorder %s34, 0
    %p600 = por %p598, %p599
    %p601 = scmp.ne.s32.totalorder %s593, %s595
    %p602 = scmp.eq.s32.totalorder %s39, 1
    %p603 = por %p601, %p602
    %p604 = scmp.ne.s32.totalorder %s595, %s596
    %p605 = scmp.eq.s32.totalorder %s39, 0
    %p606 = por %p604, %p605
    %p607 = scmp.ne.s32.totalorder %s595, %s596
    %p608 = scmp.eq.s32.totalorder %s40, 1
    %p609 = por %p607, %p608
    %p611 = scmp.ne.s32.totalorder %s596, %s610
    %p612 = scmp.eq.s32.totalorder %s40, 0
    %p613 = por %p611, %p612
    %s615 = sadd.s32 %s614, 1
    %p618 = scmp.eq.s32.totalorder %s34, 1
    %p619 = scmp.ne.s32.totalorder %s614, %s616
    %p620 = scmp.eq.s32.totalorder %s34, 0
    %p621 = por %p619, %p620
    %p622 = scmp.ne.s32.totalorder %s614, %s616
    %p623 = scmp.eq.s32.totalorder %s39, 1
    %p624 = por %p622, %p623
    %p625 = scmp.ne.s32.totalorder %s616, %s617
    %p626 = scmp.eq.s32.totalorder %s39, 0
    %p627 = por %p625, %p626
    %p628 = scmp.ne.s32.totalorder %s616, %s617
    %p629 = scmp.eq.s32.totalorder %s40, 1
    %p630 = por %p628, %p629
    %p632 = scmp.ne.s32.totalorder %s617, %s631
    %p633 = scmp.eq.s32.totalorder %s40, 0
    %p634 = por %p632, %p633
    %s635 = ssub.s32 %s34, %s41
    %p636 = scmp.eq.s32.totalorder %s635, 0
    %s638 = sadd.s32 %s637, 1
    %s639 = scalar_select %p636, %s637, %s638
    %p642 = pneg %p636
    %p643 = scmp.eq.s32.totalorder %s34, 1
    %p644 = por %p642, %p643
    %p645 = scmp.ne.s32.totalorder %s637, %s640
    %p646 = scmp.eq.s32.totalorder %s34, 0
    %p647 = por %p645, %p646
    %p648 = scmp.ne.s32.totalorder %s637, %s640
    %p649 = scmp.eq.s32.totalorder %s39, 1
    %p650 = por %p648, %p649
    %p651 = scmp.ne.s32.totalorder %s640, %s641
    %p652 = scmp.eq.s32.totalorder %s39, 0
    %p653 = por %p651, %p652
    %p654 = scmp.ne.s32.totalorder %s640, %s641
    %p655 = scmp.eq.s32.totalorder %s40, 1
    %p656 = por %p654, %p655
    %p658 = scmp.ne.s32.totalorder %s641, %s657
    %p659 = scmp.eq.s32.totalorder %s40, 0
    %p660 = por %p658, %p659
    %p661 = scmp.le.s32.totalorder 1, %s34
    %p662 = scmp.lt.s32.totalorder %s34, 3
    %p663 = pnand %p661, %p662
    %p664 = pneg %p663
    // Predicated region
    $region9: #{llava_phi_vision_encoder.1} parent=5 // pred_check
      _
    $region10: #{llava_phi_vision_encoder.1} parent=5 // pred_check_branch
      %666 = sbr.rel (%p663) target = $region12
    $region11: #{llava_phi_vision_encoder.1} parent=5 // pred_region
      %s667 = ssub.s32 %s34, 1
      // Predicated region
      $region13: #{llava_phi_vision_encoder.1} parent=11 // pred_check
        %p668 = pneg %p81
      $region14: #{llava_phi_vision_encoder.1} parent=11 // pred_check_branch
        %670 = sbr.rel (%p668) target = $region16
      $region15: #{llava_phi_vision_encoder.1} parent=11 // pred_region
        _
      $region16: #{llava_phi_vision_encoder.1} parent=11 // pred_fallthru
        _
      // Predicated region
      $region17: #{llava_phi_vision_encoder.1} parent=11 // pred_check
        %p671 = pneg %p102
      $region18: #{llava_phi_vision_encoder.1} parent=11 // pred_check_branch
        %673 = sbr.rel (%p671) target = $region20
      $region19: #{llava_phi_vision_encoder.1} parent=11 // pred_region
        _
      $region20: #{llava_phi_vision_encoder.1} parent=11 // pred_fallthru
        _
      // Predicated region
      $region21: #{llava_phi_vision_encoder.1} parent=11 // pred_check
        %p674 = pneg %p123
      $region22: #{llava_phi_vision_encoder.1} parent=11 // pred_check_branch
        %676 = sbr.rel (%p674) target = $region24
      $region23: #{llava_phi_vision_encoder.1} parent=11 // pred_region
        _
      $region24: #{llava_phi_vision_encoder.1} parent=11 // pred_fallthru
        _
      // Predicated region
      $region25: #{llava_phi_vision_encoder.1} parent=11 // pred_check
        %p677 = pneg %p144
      $region26: #{llava_phi_vision_encoder.1} parent=11 // pred_check_branch
        %679 = sbr.rel (%p677) target = $region28
      $region27: #{llava_phi_vision_encoder.1} parent=11 // pred_region
        _
      $region28: #{llava_phi_vision_encoder.1} parent=11 // pred_fallthru
        _
      // Predicated region
      $region29: #{llava_phi_vision_encoder.1} parent=11 // pred_check
        %p680 = pneg %p165
      $region30: #{llava_phi_vision_encoder.1} parent=11 // pred_check_branch
        %682 = sbr.rel (%p680) target = $region32
      $region31: #{llava_phi_vision_encoder.1} parent=11 // pred_region
        _
      $region32: #{llava_phi_vision_encoder.1} parent=11 // pred_fallthru
        _
      // Predicated region
      $region33: #{llava_phi_vision_encoder.1} parent=11 // pred_check
        %p683 = pneg %p186
      $region34: #{llava_phi_vision_encoder.1} parent=11 // pred_check_branch
        %685 = sbr.rel (%p683) target = $region36
      $region35: #{llava_phi_vision_encoder.1} parent=11 // pred_region
        _
      $region36: #{llava_phi_vision_encoder.1} parent=11 // pred_fallthru
        _
      // Predicated region
      $region37: #{llava_phi_vision_encoder.1} parent=11 // pred_check
        %p686 = pneg %p207
      $region38: #{llava_phi_vision_encoder.1} parent=11 // pred_check_branch
        %688 = sbr.rel (%p686) target = $region40
      $region39: #{llava_phi_vision_encoder.1} parent=11 // pred_region
        _
      $region40: #{llava_phi_vision_encoder.1} parent=11 // pred_fallthru
        _
      // Predicated region
      $region41: #{llava_phi_vision_encoder.1} parent=11 // pred_check
        %p689 = pneg %p228
      $region42: #{llava_phi_vision_encoder.1} parent=11 // pred_check_branch
        %691 = sbr.rel (%p689) target = $region44
      $region43: #{llava_phi_vision_encoder.1} parent=11 // pred_region
        _
      $region44: #{llava_phi_vision_encoder.1} parent=11 // pred_fallthru
        _
      // Predicated region
      $region45: #{llava_phi_vision_encoder.1} parent=11 // pred_check
        %p692 = pneg %p249
      $region46: #{llava_phi_vision_encoder.1} parent=11 // pred_check_branch
        %694 = sbr.rel (%p692) target = $region48
      $region47: #{llava_phi_vision_encoder.1} parent=11 // pred_region
        _
      $region48: #{llava_phi_vision_encoder.1} parent=11 // pred_fallthru
        _
      // Predicated region
      $region49: #{llava_phi_vision_encoder.1} parent=11 // pred_check
        %p695 = pneg %p270
      $region50: #{llava_phi_vision_encoder.1} parent=11 // pred_check_branch
        %697 = sbr.rel (%p695) target = $region52
      $region51: #{llava_phi_vision_encoder.1} parent=11 // pred_region
        _
      $region52: #{llava_phi_vision_encoder.1} parent=11 // pred_fallthru
        _
      // Predicated region
      $region53: #{llava_phi_vision_encoder.1} parent=11 // pred_check
        %p698 = pneg %p291
      $region54: #{llava_phi_vision_encoder.1} parent=11 // pred_check_branch
        %700 = sbr.rel (%p698) target = $region56
      $region55: #{llava_phi_vision_encoder.1} parent=11 // pred_region
        _
      $region56: #{llava_phi_vision_encoder.1} parent=11 // pred_fallthru
        _
      // Predicated region
      $region57: #{llava_phi_vision_encoder.1} parent=11 // pred_check
        %p701 = pneg %p312
      $region58: #{llava_phi_vision_encoder.1} parent=11 // pred_check_branch
        %703 = sbr.rel (%p701) target = $region60
      $region59: #{llava_phi_vision_encoder.1} parent=11 // pred_region
        _
      $region60: #{llava_phi_vision_encoder.1} parent=11 // pred_fallthru
        _
      // Predicated region
      $region61: #{llava_phi_vision_encoder.1} parent=11 // pred_check
        %p704 = pneg %p333
      $region62: #{llava_phi_vision_encoder.1} parent=11 // pred_check_branch
        %706 = sbr.rel (%p704) target = $region64
      $region63: #{llava_phi_vision_encoder.1} parent=11 // pred_region
        _
      $region64: #{llava_phi_vision_encoder.1} parent=11 // pred_fallthru
        _
      // Predicated region
      $region65: #{llava_phi_vision_encoder.1} parent=11 // pred_check
        %p707 = pneg %p354
      $region66: #{llava_phi_vision_encoder.1} parent=11 // pred_check_branch
        %709 = sbr.rel (%p707) target = $region68
      $region67: #{llava_phi_vision_encoder.1} parent=11 // pred_region
        _
      $region68: #{llava_phi_vision_encoder.1} parent=11 // pred_fallthru
        _
      // Predicated region
      $region69: #{llava_phi_vision_encoder.1} parent=11 // pred_check
        %p710 = pneg %p375
      $region70: #{llava_phi_vision_encoder.1} parent=11 // pred_check_branch
        %712 = sbr.rel (%p710) target = $region72
      $region71: #{llava_phi_vision_encoder.1} parent=11 // pred_region
        _
      $region72: #{llava_phi_vision_encoder.1} parent=11 // pred_fallthru
        _
      // Predicated region
      $region73: #{llava_phi_vision_encoder.1} parent=11 // pred_check
        %p713 = pneg %p396
      $region74: #{llava_phi_vision_encoder.1} parent=11 // pred_check_branch
        %715 = sbr.rel (%p713) target = $region76
      $region75: #{llava_phi_vision_encoder.1} parent=11 // pred_region
        _
      $region76: #{llava_phi_vision_encoder.1} parent=11 // pred_fallthru
        _
      // Predicated region
      $region77: #{llava_phi_vision_encoder.1} parent=11 // pred_check
        %p716 = pneg %p417
      $region78: #{llava_phi_vision_encoder.1} parent=11 // pred_check_branch
        %718 = sbr.rel (%p716) target = $region80
      $region79: #{llava_phi_vision_encoder.1} parent=11 // pred_region
        _
      $region80: #{llava_phi_vision_encoder.1} parent=11 // pred_fallthru
        _
      // Predicated region
      $region81: #{llava_phi_vision_encoder.1} parent=11 // pred_check
        %p719 = pneg %p438
      $region82: #{llava_phi_vision_encoder.1} parent=11 // pred_check_branch
        %721 = sbr.rel (%p719) target = $region84
      $region83: #{llava_phi_vision_encoder.1} parent=11 // pred_region
        _
      $region84: #{llava_phi_vision_encoder.1} parent=11 // pred_fallthru
        _
      // Predicated region
      $region85: #{llava_phi_vision_encoder.1} parent=11 // pred_check
        %p722 = pneg %p459
      $region86: #{llava_phi_vision_encoder.1} parent=11 // pred_check_branch
        %724 = sbr.rel (%p722) target = $region88
      $region87: #{llava_phi_vision_encoder.1} parent=11 // pred_region
        _
      $region88: #{llava_phi_vision_encoder.1} parent=11 // pred_fallthru
        _
      // Predicated region
      $region89: #{llava_phi_vision_encoder.1} parent=11 // pred_check
        %p725 = pneg %p480
      $region90: #{llava_phi_vision_encoder.1} parent=11 // pred_check_branch
        %727 = sbr.rel (%p725) target = $region92
      $region91: #{llava_phi_vision_encoder.1} parent=11 // pred_region
        _
      $region92: #{llava_phi_vision_encoder.1} parent=11 // pred_fallthru
        _
      // Predicated region
      $region93: #{llava_phi_vision_encoder.1} parent=11 // pred_check
        %p728 = pneg %p501
      $region94: #{llava_phi_vision_encoder.1} parent=11 // pred_check_branch
        %730 = sbr.rel (%p728) target = $region96
      $region95: #{llava_phi_vision_encoder.1} parent=11 // pred_region
        _
      $region96: #{llava_phi_vision_encoder.1} parent=11 // pred_fallthru
        _
      // Predicated region
      $region97: #{llava_phi_vision_encoder.1} parent=11 // pred_check
        %p731 = pneg %p522
      $region98: #{llava_phi_vision_encoder.1} parent=11 // pred_check_branch
        %733 = sbr.rel (%p731) target = $region100
      $region99: #{llava_phi_vision_encoder.1} parent=11 // pred_region
        _
      $region100: #{llava_phi_vision_encoder.1} parent=11 // pred_fallthru
        _
      // Predicated region
      $region101: #{llava_phi_vision_encoder.1} parent=11 // pred_check
        %p734 = pneg %p543
      $region102: #{llava_phi_vision_encoder.1} parent=11 // pred_check_branch
        %736 = sbr.rel (%p734) target = $region104
      $region103: #{llava_phi_vision_encoder.1} parent=11 // pred_region
        _
      $region104: #{llava_phi_vision_encoder.1} parent=11 // pred_fallthru
        _
      // Predicated region
      $region105: #{llava_phi_vision_encoder.1} parent=11 // pred_check
        %p737 = pneg %p564
      $region106: #{llava_phi_vision_encoder.1} parent=11 // pred_check_branch
        %739 = sbr.rel (%p737) target = $region108
      $region107: #{llava_phi_vision_encoder.1} parent=11 // pred_region
        _
      $region108: #{llava_phi_vision_encoder.1} parent=11 // pred_fallthru
        _
      // Predicated region
      $region109: #{llava_phi_vision_encoder.1} parent=11 // pred_check
        %p740 = pneg %p585
      $region110: #{llava_phi_vision_encoder.1} parent=11 // pred_check_branch
        %742 = sbr.rel (%p740) target = $region112
      $region111: #{llava_phi_vision_encoder.1} parent=11 // pred_region
        _
      $region112: #{llava_phi_vision_encoder.1} parent=11 // pred_fallthru
        _
      // Predicated region
      $region113: #{llava_phi_vision_encoder.1} parent=11 // pred_check
        %p743 = pneg %p606
      $region114: #{llava_phi_vision_encoder.1} parent=11 // pred_check_branch
        %745 = sbr.rel (%p743) target = $region116
      $region115: #{llava_phi_vision_encoder.1} parent=11 // pred_region
        _
      $region116: #{llava_phi_vision_encoder.1} parent=11 // pred_fallthru
        _
      // Predicated region
      $region117: #{llava_phi_vision_encoder.1} parent=11 // pred_check
        %p746 = pneg %p627
      $region118: #{llava_phi_vision_encoder.1} parent=11 // pred_check_branch
        %748 = sbr.rel (%p746) target = $region120
      $region119: #{llava_phi_vision_encoder.1} parent=11 // pred_region
        _
      $region120: #{llava_phi_vision_encoder.1} parent=11 // pred_fallthru
        _
    $region12: #{llava_phi_vision_encoder.1} parent=5 // pred_fallthru
      _
    %p749 = scmp.lt.s32.totalorder %s34, 2
    // Predicated region
    $region121: #{llava_phi_vision_encoder.1} parent=5 // pred_check
      %p750 = pneg %p749
    $region122: #{llava_phi_vision_encoder.1} parent=5 // pred_check_branch
      %752 = sbr.rel (%p750) target = $region124
    $region123: #{llava_phi_vision_encoder.1} parent=5 // pred_region
      // Predicated region
      $region125: #{llava_phi_vision_encoder.1} parent=123 // pred_check
        %p753 = pneg %p54
      $region126: #{llava_phi_vision_encoder.1} parent=123 // pred_check_branch
        %755 = sbr.rel (%p753) target = $region128
      $region127: #{llava_phi_vision_encoder.1} parent=123 // pred_region
        %p756 = scmp.lt.s32.totalorder %s34, 1
        %s757 = scalar_select %p756, %s34, 1
        %s758 = smul.addr %s757, 3
        %s759 = smul.addr %s758, 8
        %s760 = scalar_lea.vmem %s0, %s759
      $region128: #{llava_phi_vision_encoder.1} parent=123 // pred_fallthru
        _
    $region124: #{llava_phi_vision_encoder.1} parent=5 // pred_fallthru
      _
    %p761 = scmp.le.s32.totalorder 1, %s34
    %p762 = scmp.lt.s32.totalorder %s34, 3
    %p763 = pnand %p761, %p762
    %p764 = pneg %p763
    // Predicated region
    $region129: #{llava_phi_vision_encoder.1} parent=5 // pred_check
      _
    $region130: #{llava_phi_vision_encoder.1} parent=5 // pred_check_branch
      %766 = sbr.rel (%p763) target = $region132
    $region131: #{llava_phi_vision_encoder.1} parent=5 // pred_region
      %s767 = ssub.s32 %s34, 1
      %p768 = scmp.lt.s32.totalorder %s39, 1
      %s769 = scalar_select %p768, %s39, 1
      %s770 = smul.addr %s769, 3
      %s771 = smul.addr %s770, 8
      %s772 = scalar_lea.vmem %s0, %s771
      %p773 = pneg %p60
      %p774 = pneg %p57
      %p775 = pneg %p81
      %p776 = pneg %p78
      %p777 = pneg %p102
      %p778 = pneg %p99
      %p779 = pneg %p123
      %p780 = pneg %p120
      %p781 = pneg %p144
      %p782 = pneg %p141
      %p783 = pneg %p165
      %p784 = pneg %p162
      %p785 = pneg %p186
      %p786 = pneg %p183
      %p787 = pneg %p207
      %p788 = pneg %p204
      %p789 = pneg %p228
      %p790 = pneg %p225
      %p791 = pneg %p249
      %p792 = pneg %p246
      %p793 = pneg %p270
      %p794 = pneg %p267
      %p795 = pneg %p291
      %p796 = pneg %p288
      %p797 = pneg %p312
      %p798 = pneg %p309
      %p799 = pneg %p333
      %p800 = pneg %p330
      %p801 = pneg %p354
      %p802 = pneg %p351
      %p803 = pneg %p375
      %p804 = pneg %p372
      %p805 = pneg %p396
      %p806 = pneg %p393
      %p807 = pneg %p417
      %p808 = pneg %p414
      %p809 = pneg %p438
      %p810 = pneg %p435
      %p811 = pneg %p459
      %p812 = pneg %p456
      %p813 = pneg %p480
      %p814 = pneg %p477
      %p815 = pneg %p501
      %p816 = pneg %p498
      %p817 = pneg %p522
      %p818 = pneg %p519
      %p819 = pneg %p543
      %p820 = pneg %p540
      %p821 = pneg %p564
      %p822 = pneg %p561
      %p823 = pneg %p585
      %p824 = pneg %p582
      %p825 = pneg %p606
      %p826 = pneg %p603
      %p827 = pneg %p627
      %p828 = pneg %p624
      %p829 = pneg %p653
      %p830 = pneg %p650
      %p831 = scmp.lt.s32.totalorder %s39, 1
      %s832 = scalar_select %p831, %s39, 1
      %s833 = smul.addr %s832, 3
      %s834 = smul.addr %s833, 8
      %s835 = scalar_lea.vmem %s28, %s834
      %p836 = scmp.lt.s32.totalorder %s39, 1
      %s837 = scalar_select %p836, %s39, 1
      %s838 = smul.addr %s837, 3
      %s839 = smul.addr %s838, 8
      %s840 = scalar_lea.vmem %s0, %s839
      %p841 = scmp.lt.s32.totalorder %s39, 1
      %s842 = scalar_select %p841, %s39, 1
      %s843 = smul.addr %s842, 3
      %s844 = smul.addr %s843, 8
      %s845 = scalar_lea.vmem %s28, %s844
      %v847 = vld [vmem:[%s3] sm:$0xff]
      %v848 = vld [vmem:[%s3 + $0x8] sm:$0xff]
      %v849 = vld [vmem:[%s3 + $0x10] sm:$0xff]
      %v850 = vld [vmem:[%s4] sm:$0xff]
      %v851 = vld [vmem:[%s4 + $0x8] sm:$0xff]
      %v852 = vld [vmem:[%s4 + $0x10] sm:$0xff]
      %v853 = vld [vmem:[%s4 + $0x18] sm:$0xff]
      %v854 = vld [vmem:[%s4 + $0x20] sm:$0xff]
      %v855 = vld [vmem:[%s4 + $0x28] sm:$0xff]
      %v856 = vld [vmem:[%s4 + $0x30] sm:$0xff]
      %v857 = vld [vmem:[%s4 + $0x38] sm:$0xff]
      %v858 = vld [vmem:[%s4 + $0x40] sm:$0xff]
      %v859 = vld [vmem:[%s4 + $0x48] sm:$0xff]
      %v860 = vld [vmem:[%s4 + $0x50] sm:$0xff]
      %v861 = vld [vmem:[%s4 + $0x58] sm:$0xff]
      %v862 = vld [vmem:[%s5] sm:$0xf]
      %v863 = vld [vmem:[%s5 + $0x4] sm:$0xf]
      %v864 = vld [vmem:[%s5 + $0x8] sm:$0xf]
      %v865 = vld [vmem:[%s5 + $0xc] sm:$0xf]
      %v866 = vld [vmem:[%s5 + $0x10] sm:$0xf]
      %v867 = vld [vmem:[%s5 + $0x14] sm:$0xf]
      %v868 = vld [vmem:[%s5 + $0x18] sm:$0xf]
      %v869 = vld [vmem:[%s5 + $0x1c] sm:$0xf]
      %v870 = vld [vmem:[%s5 + $0x20] sm:$0xf]
      %v871 = vld [vmem:[%s5 + $0x24] sm:$0xf]
      %v872 = vld [vmem:[%s5 + $0x28] sm:$0xf]
      %v873 = vld [vmem:[%s5 + $0x2c] sm:$0xf]
      %v874 = vld [vmem:[%s840] sm:$0xff]
      %v875 = vld [vmem:[%s840 + $0x8] sm:$0xff]
      %v876 = vld [vmem:[%s840 + $0x10] sm:$0xff]
      %v877 = vpack.c.bf16 %v875, %v874
      %v878 = vpack.c.bf16 %v876, %v876
      %v879 = vld [vmem:[%s1] sm:$0xf]
      %v880 = vld [vmem:[%s1 + $0x4] sm:$0xf]
      %v881 = vld [vmem:[%s1 + $0x8] sm:$0xf]
      %v882 = vld [vmem:[%s1 + $0xc] sm:$0xf]
      %v883 = vld [vmem:[%s1 + $0x10] sm:$0xf]
      %v884 = vld [vmem:[%s1 + $0x14] sm:$0xf]
      %v885 = vld [vmem:[%s2] sm:$0xff]
      %v886 = vld [vmem:[%s2 + $0x8] sm:$0xff]
      %v887 = vld [vmem:[%s2 + $0x10] sm:$0xff]
      %v894 = vunpack.c.l.b16 %v879
      %v895 = vunpack.c.l.b16 %v880
      %v896 = vunpack.c.l.b16 %v881
      %v897 = vunpack.c.l.b16 %v882
      %v898 = vunpack.c.l.b16 %v883
      %v899 = vunpack.c.l.b16 %v884
      %v900 = vpack.c.b16 %v895, %v894
      %v901 = vpack.c.b16 %v897, %v896
      %v902 = vpack.c.b16 %v899, %v898
      %vm906 = vcmask 392192
      %v908 = vsel %vm906, %v877, 0
      %v911 = vsel %vm906, %v878, 0
      %913 = vmatpush.bf16.msra.mxu0 0
      %914 = vmatpush.bf16.msra.mxu0 0
      %915 = vmatpush.bf16.msra.mxu0 0
      %916 = vmatpush.bf16.msra.mxu0 0
      %917 = vmatpush.bf16.msra.mxu0 0
      %918 = vmatpush.bf16.msra.mxu0 %v902
      %919 = vmatpush.bf16.msra.mxu0 %v901
      %920 = vmatpush.bf16.msra.mxu0 %v900
      %921 = vmatmul.bf16.gmra.mxu0 %v908
      %v922 = vpop.f32.mrf.mxu0
      %v923 = vadd.f32 %v885, %v922
      %v924 = vpop.f32.mrf.mxu0
      %v925 = vadd.f32 %v886, %v924
      %926 = vmatmul.bf16.gmra.mxu0 %v911
      %v927 = vpop.f32.mrf.mxu0
      %v928 = vadd.f32 %v887, %v927
      %v929 = vpop.f32.mrf.mxu0
      %930 = vdwg.mxu0
      %v931 = vld [vmem:[%s6] sm:$0x1]
      %v932 = vld [vmem:[%s7] sm:$0x1]
      %vm933 = vcmask 261120
      %v934 = vsel %vm933, %v923, 0.0
      %935 = vadd.xlane.f32.xlu0 %v934
      %v936 = vpop.xlane.xlu0 %935
      %v937 = vsel %vm933, %v925, 0.0
      %938 = vadd.xlane.f32.xlu0 %v937
      %v939 = vpop.xlane.xlu0 %938
      %v940 = vsel %vm933, %v928, 0.0
      %941 = vadd.xlane.f32.xlu0 %v940
      %v942 = vpop.xlane.xlu0 %941
      %v943 = vrcp.pop 32.0
      %v944 = vmul.f32 32.0, %v943
      %v945 = vsub.f32 1.0, %v944
      %v946 = vmul.f32 %v943, %v945
      %v947 = vadd.f32 %v943, %v946
      %vm948 = vweird.f32 %v943
      %v949 = vsel %vm948, %v943, %v947
      %v950 = vmul.f32 %v936, %v949
      %v951 = vmul.f32 %v939, %v949
      %v952 = vmul.f32 %v942, %v949
      %v953 = vmul.f32 %v923, %v923
      %v954 = vmul.f32 %v925, %v925
      %v955 = vmul.f32 %v928, %v928
      %v956 = vsel %vm933, %v953, 0.0
      %957 = vadd.xlane.f32.xlu0 %v956
      %v958 = vpop.xlane.xlu0 %957
      %v959 = vsel %vm933, %v954, 0.0
      %960 = vadd.xlane.f32.xlu0 %v959
      %v961 = vpop.xlane.xlu0 %960
      %v962 = vsel %vm933, %v955, 0.0
      %963 = vadd.xlane.f32.xlu0 %v962
      %v964 = vpop.xlane.xlu0 %963
      %v965 = vmul.f32 %v958, %v949
      %v966 = vmul.f32 %v961, %v949
      %v967 = vmul.f32 %v964, %v949
      %v968 = vmul.f32 %v950, %v950
      %v969 = vmul.f32 %v951, %v951
      %v970 = vmul.f32 %v952, %v952
      %v971 = vsub.f32 %v965, %v968
      %v972 = vsub.f32 %v966, %v969
      %v973 = vsub.f32 %v967, %v970
      %v974 = vsub.f32 %v923, %v950
      %v975 = vsub.f32 %v925, %v951
      %v976 = vsub.f32 %v928, %v952
      %v977 = vadd.f32 %v971, 1e-05
      %v978 = vadd.f32 %v972, 1e-05
      %v979 = vadd.f32 %v973, 1e-05
      %v980 = vrsqrt.pop %v977
      %v981 = vmul.f32 %v980, %v977
      %v982 = vmul.f32 %v981, %v980
      %v983 = vmul.f32 0.5, %v982
      %v984 = vsub.f32 1.5, %v983
      %v985 = vmul.f32 %v980, %v984
      %vm986 = vweird.f32 %v977
      %vm987 = vweird.f32 %v980
      %vm988 = vmor %vm986, %vm987
      %v989 = vsel %vm988, %v980, %v985
      %v990 = vrsqrt.pop %v978
      %v991 = vmul.f32 %v990, %v978
      %v992 = vmul.f32 %v991, %v990
      %v993 = vmul.f32 0.5, %v992
      %v994 = vsub.f32 1.5, %v993
      %v995 = vmul.f32 %v990, %v994
      %vm996 = vweird.f32 %v978
      %vm997 = vweird.f32 %v990
      %vm998 = vmor %vm996, %vm997
      %v999 = vsel %vm998, %v990, %v995
      %v1000 = vrsqrt.pop %v979
      %v1001 = vmul.f32 %v1000, %v979
      %v1002 = vmul.f32 %v1001, %v1000
      %v1003 = vmul.f32 0.5, %v1002
      %v1004 = vsub.f32 1.5, %v1003
      %v1005 = vmul.f32 %v1000, %v1004
      %vm1006 = vweird.f32 %v979
      %vm1007 = vweird.f32 %v1000
      %vm1008 = vmor %vm1006, %vm1007
      %v1009 = vsel %vm1008, %v1000, %v1005
      %v1010 = vmul.f32 %v974, %v989
      %v1011 = vmul.f32 %v975, %v999
      %v1012 = vmul.f32 %v976, %v1009
      %v1014 = vperm.slane %v931, 0
      %v1016 = vmul.f32 %v1010, %v1014
      %v1017 = vmul.f32 %v1011, %v1014
      %v1018 = vmul.f32 %v1012, %v1014
      %v1020 = vperm.slane %v932, 0
      %v1022 = vadd.f32 %v1016, %v1020
      %v1023 = vadd.f32 %v1017, %v1020
      %v1024 = vadd.f32 %v1018, %v1020
      %v1025 = vld [vmem:[%s8] sm:$0x1]
      %v1026 = vld [vmem:[%s9] sm:$0x1]
      %v1027 = vsel %vm933, %v1022, 0.0
      %1028 = vadd.xlane.f32.xlu0 %v1027
      %v1029 = vpop.xlane.xlu0 %1028
      %v1030 = vsel %vm933, %v1023, 0.0
      %1031 = vadd.xlane.f32.xlu0 %v1030
      %v1032 = vpop.xlane.xlu0 %1031
      %v1033 = vsel %vm933, %v1024, 0.0
      %1034 = vadd.xlane.f32.xlu0 %v1033
      %v1035 = vpop.xlane.xlu0 %1034
      %v1036 = vmul.f32 %v1029, %v949
      %v1037 = vmul.f32 %v1032, %v949
      %v1038 = vmul.f32 %v1035, %v949
      %v1039 = vmul.f32 %v1022, %v1022
      %v1040 = vmul.f32 %v1023, %v1023
      %v1041 = vmul.f32 %v1024, %v1024
      %v1042 = vsel %vm933, %v1039, 0.0
      %1043 = vadd.xlane.f32.xlu0 %v1042
      %v1044 = vpop.xlane.xlu0 %1043
      %v1045 = vsel %vm933, %v1040, 0.0
      %1046 = vadd.xlane.f32.xlu0 %v1045
      %v1047 = vpop.xlane.xlu0 %1046
      %v1048 = vsel %vm933, %v1041, 0.0
      %1049 = vadd.xlane.f32.xlu0 %v1048
      %v1050 = vpop.xlane.xlu0 %1049
      %v1051 = vmul.f32 %v1044, %v949
      %v1052 = vmul.f32 %v1047, %v949
      %v1053 = vmul.f32 %v1050, %v949
      %v1054 = vmul.f32 %v1036, %v1036
      %v1055 = vmul.f32 %v1037, %v1037
      %v1056 = vmul.f32 %v1038, %v1038
      %v1057 = vsub.f32 %v1051, %v1054
      %v1058 = vsub.f32 %v1052, %v1055
      %v1059 = vsub.f32 %v1053, %v1056
      %v1060 = vsub.f32 %v1022, %v1036
      %v1061 = vsub.f32 %v1023, %v1037
      %v1062 = vsub.f32 %v1024, %v1038
      %v1063 = vadd.f32 %v1057, 1e-05
      %v1064 = vadd.f32 %v1058, 1e-05
      %v1065 = vadd.f32 %v1059, 1e-05
      %v1066 = vrsqrt.pop %v1063
      %v1067 = vmul.f32 %v1066, %v1063
      %v1068 = vmul.f32 %v1067, %v1066
      %v1069 = vmul.f32 0.5, %v1068
      %v1070 = vsub.f32 1.5, %v1069
      %v1071 = vmul.f32 %v1066, %v1070
      %vm1072 = vweird.f32 %v1063
      %vm1073 = vweird.f32 %v1066
      %vm1074 = vmor %vm1072, %vm1073
      %v1075 = vsel %vm1074, %v1066, %v1071
      %v1076 = vrsqrt.pop %v1064
      %v1077 = vmul.f32 %v1076, %v1064
      %v1078 = vmul.f32 %v1077, %v1076
      %v1079 = vmul.f32 0.5, %v1078
      %v1080 = vsub.f32 1.5, %v1079
      %v1081 = vmul.f32 %v1076, %v1080
      %vm1082 = vweird.f32 %v1064
      %vm1083 = vweird.f32 %v1076
      %vm1084 = vmor %vm1082, %vm1083
      %v1085 = vsel %vm1084, %v1076, %v1081
      %v1086 = vrsqrt.pop %v1065
      %v1087 = vmul.f32 %v1086, %v1065
      %v1088 = vmul.f32 %v1087, %v1086
      %v1089 = vmul.f32 0.5, %v1088
      %v1090 = vsub.f32 1.5, %v1089
      %v1091 = vmul.f32 %v1086, %v1090
      %vm1092 = vweird.f32 %v1065
      %vm1093 = vweird.f32 %v1086
      %vm1094 = vmor %vm1092, %vm1093
      %v1095 = vsel %vm1094, %v1086, %v1091
      %v1096 = vmul.f32 %v1060, %v1075
      %v1097 = vmul.f32 %v1061, %v1085
      %v1098 = vmul.f32 %v1062, %v1095
      %v1100 = vperm.slane %v1025, 0
      %v1102 = vmul.f32 %v1096, %v1100
      %v1103 = vmul.f32 %v1097, %v1100
      %v1104 = vmul.f32 %v1098, %v1100
      %v1106 = vperm.slane %v1026, 0
      %v1108 = vadd.f32 %v1102, %v1106
      %v1109 = vadd.f32 %v1103, %v1106
      %v1110 = vadd.f32 %v1104, %v1106
      %v1111 = vpack.c.bf16 %v1109, %v1108
      %v1112 = vpack.c.bf16 %v1110, %v1110
      %v1113 = vld [vmem:[%s10] sm:$0xf]
      %v1114 = vld [vmem:[%s10 + $0x4] sm:$0xf]
      %v1115 = vld [vmem:[%s10 + $0x8] sm:$0xf]
      %v1116 = vld [vmem:[%s10 + $0xc] sm:$0xf]
      %v1117 = vld [vmem:[%s11] sm:$0x1]
      %v1119 = vperm.slane %v1117, 0
      %v1125 = vunpack.c.l.b16 %v1113
      %v1126 = vunpack.c.l.b16 %v1114
      %v1127 = vunpack.c.l.b16 %v1115
      %v1128 = vunpack.c.l.b16 %v1116
      %v1129 = vpack.c.b16 %v1126, %v1125
      %v1130 = vpack.c.b16 %v1128, %v1127
      %v1134 = vsel %vm933, %v1111, 0
      %v1137 = vsel %vm933, %v1112, 0
      %1139 = vmatpush.bf16.msra.mxu0 0
      %1140 = vmatpush.bf16.msra.mxu0 0
      %1141 = vmatpush.bf16.msra.mxu0 0
      %1142 = vmatpush.bf16.msra.mxu0 0
      %1143 = vmatpush.bf16.msra.mxu0 0
      %1144 = vmatpush.bf16.msra.mxu0 0
      %1145 = vmatpush.bf16.msra.mxu0 %v1130
      %1146 = vmatpush.bf16.msra.mxu0 %v1129
      %1147 = vmatmul.bf16.gmra.mxu0 %v1134
      %v1148 = vpop.f32.mrf.mxu0
      %v1149 = vadd.f32 %v1119, %v1148
      %v1150 = vpop.f32.mrf.mxu0
      %v1151 = vadd.f32 %v1119, %v1150
      %1152 = vmatmul.bf16.gmra.mxu0 %v1137
      %v1153 = vpop.f32.mrf.mxu0
      %v1154 = vadd.f32 %v1119, %v1153
      %v1155 = vpop.f32.mrf.mxu0
      %1156 = vdwg.mxu0
      %v1157 = vld [vmem:[%s12] sm:$0xf]
      %v1158 = vld [vmem:[%s12 + $0x4] sm:$0xf]
      %v1159 = vld [vmem:[%s12 + $0x8] sm:$0xf]
      %v1160 = vld [vmem:[%s12 + $0xc] sm:$0xf]
      %v1161 = vld [vmem:[%s13] sm:$0x1]
      %v1163 = vperm.slane %v1161, 0
      %v1169 = vunpack.c.l.b16 %v1157
      %v1170 = vunpack.c.l.b16 %v1158
      %v1171 = vunpack.c.l.b16 %v1159
      %v1172 = vunpack.c.l.b16 %v1160
      %v1173 = vpack.c.b16 %v1170, %v1169
      %v1174 = vpack.c.b16 %v1172, %v1171
      %1177 = vmatpush.bf16.msra.mxu0 0
      %1178 = vmatpush.bf16.msra.mxu0 0
      %1179 = vmatpush.bf16.msra.mxu0 0
      %1180 = vmatpush.bf16.msra.mxu0 0
      %1181 = vmatpush.bf16.msra.mxu0 0
      %1182 = vmatpush.bf16.msra.mxu0 0
      %1183 = vmatpush.bf16.msra.mxu0 %v1174
      %1184 = vmatpush.bf16.msra.mxu0 %v1173
      %1185 = vmatmul.bf16.gmra.mxu0 %v1134
      %v1186 = vpop.f32.mrf.mxu0
      %v1187 = vadd.f32 %v1163, %v1186
      %v1188 = vpop.f32.mrf.mxu0
      %v1189 = vadd.f32 %v1163, %v1188
      %1190 = vmatmul.bf16.gmra.mxu0 %v1137
      %v1191 = vpop.f32.mrf.mxu0
      %v1192 = vadd.f32 %v1163, %v1191
      %v1193 = vpop.f32.mrf.mxu0
      %1194 = vdwg.mxu0
      %v1195 = vld [vmem:[%s14] sm:$0xf]
      %v1196 = vld [vmem:[%s14 + $0x4] sm:$0xf]
      %v1197 = vld [vmem:[%s14 + $0x8] sm:$0xf]
      %v1198 = vld [vmem:[%s14 + $0xc] sm:$0xf]
      %v1199 = vld [vmem:[%s15] sm:$0x1]
      %v1201 = vperm.slane %v1199, 0
      %v1207 = vunpack.c.l.b16 %v1195
      %v1208 = vunpack.c.l.b16 %v1196
      %v1209 = vunpack.c.l.b16 %v1197
      %v1210 = vunpack.c.l.b16 %v1198
      %v1211 = vpack.c.b16 %v1208, %v1207
      %v1212 = vpack.c.b16 %v1210, %v1209
      %1215 = vmatpush.bf16.msra.mxu0 0
      %1216 = vmatpush.bf16.msra.mxu0 0
      %1217 = vmatpush.bf16.msra.mxu0 0
      %1218 = vmatpush.bf16.msra.mxu0 0
      %1219 = vmatpush.bf16.msra.mxu0 0
      %1220 = vmatpush.bf16.msra.mxu0 0
      %1221 = vmatpush.bf16.msra.mxu0 %v1212
      %1222 = vmatpush.bf16.msra.mxu0 %v1211
      %1223 = vmatmul.bf16.gmra.mxu0 %v1134
      %v1224 = vpop.f32.mrf.mxu0
      %v1225 = vadd.f32 %v1201, %v1224
      %v1226 = vpop.f32.mrf.mxu0
      %v1227 = vadd.f32 %v1201, %v1226
      %1228 = vmatmul.bf16.gmra.mxu0 %v1137
      %v1229 = vpop.f32.mrf.mxu0
      %v1230 = vadd.f32 %v1201, %v1229
      %v1231 = vpop.f32.mrf.mxu0
      %1232 = vdwg.mxu0
      %v1233 = vmul.f32 %v1187, %v850
      %v1234 = vmul.f32 %v1189, %v851
      %v1235 = vmul.f32 %v1192, %v852
      %v1236 = vmul.f32 %v1187, %v853
      %v1237 = vmul.f32 %v1189, %v854
      %v1238 = vmul.f32 %v1192, %v855
      %v1239 = vmul.f32 %v1187, %v856
      %v1240 = vmul.f32 %v1189, %v857
      %v1241 = vmul.f32 %v1192, %v858
      %v1242 = vmul.f32 %v1187, %v859
      %v1243 = vmul.f32 %v1189, %v860
      %v1244 = vmul.f32 %v1192, %v861
      %v1245 = vpack.c.bf16 %v1234, %v1233
      %v1246 = vpack.c.bf16 %v1236, %v1235
      %v1247 = vpack.c.bf16 %v1238, %v1237
      %v1248 = vpack.c.bf16 %v1240, %v1239
      %v1249 = vpack.c.bf16 %v1242, %v1241
      %v1250 = vpack.c.bf16 %v1244, %v1243
      %v1251 = vmul.f32 %v1225, %v850
      %v1252 = vmul.f32 %v1227, %v851
      %v1253 = vmul.f32 %v1230, %v852
      %v1254 = vmul.f32 %v1225, %v853
      %v1255 = vmul.f32 %v1227, %v854
      %v1256 = vmul.f32 %v1230, %v855
      %v1257 = vmul.f32 %v1225, %v856
      %v1258 = vmul.f32 %v1227, %v857
      %v1259 = vmul.f32 %v1230, %v858
      %v1260 = vmul.f32 %v1225, %v859
      %v1261 = vmul.f32 %v1227, %v860
      %v1262 = vmul.f32 %v1230, %v861
      %v1263 = vpack.c.bf16 %v1252, %v1251
      %v1264 = vpack.c.bf16 %v1254, %v1253
      %v1265 = vpack.c.bf16 %v1256, %v1255
      %v1266 = vpack.c.bf16 %v1258, %v1257
      %v1267 = vpack.c.bf16 %v1260, %v1259
      %v1268 = vpack.c.bf16 %v1262, %v1261
      %v1269 = vpack.c.bf16 %v1151, %v1149
      %v1270 = vpack.c.bf16 %v1154, %v1154
      %v1272 = vsel %vm933, %v1269, 0
      %v1275 = vsel %vm933, %v1270, 0
      %v1278 = vsel %vm933, %v1245, 0
      %v1281 = vsel %vm933, %v1246, 0
      %v1284 = vsel %vm933, %v1247, 0
      %v1287 = vsel %vm933, %v1248, 0
      %v1290 = vsel %vm933, %v1249, 0
      %v1293 = vsel %vm933, %v1250, 0
      %1295 = vmatpush.bf16.xpose.msra.mxu0 0
      %1296 = vmatpush.bf16.xpose.msra.mxu0 0
      %1297 = vmatpush.bf16.xpose.msra.mxu0 %v1293
      %1298 = vmatpush.bf16.xpose.msra.mxu0 %v1290
      %1299 = vmatpush.bf16.xpose.msra.mxu0 %v1287
      %1300 = vmatpush.bf16.xpose.msra.mxu0 %v1284
      %1301 = vmatpush.bf16.xpose.msra.mxu0 %v1281
      %1302 = vmatpush.bf16.xpose.msra.mxu0 %v1278
      %1303 = vmatmul.bf16.gmra.mxu0 %v1272
      %v1304 = vpop.f32.mrf.mxu0
      %v1305 = vadd.f32 %v847, %v1304
      %v1306 = vpop.f32.mrf.mxu0
      %v1307 = vadd.f32 %v848, %v1306
      %1308 = vmatmul.bf16.gmra.mxu0 %v1275
      %v1309 = vpop.f32.mrf.mxu0
      %v1310 = vadd.f32 %v849, %v1309
      %v1311 = vpop.f32.mrf.mxu0
      %1312 = vdwg.mxu0
      %vm1313 = vcmask 785408
      %v1314 = vsel %vm1313, %v1305, -inf
      %1315 = vmax.xlane.f32.xlu0 %v1314
      %v1316 = vpop.xlane.xlu0 %1315
      %v1317 = vsel %vm1313, %v1307, -inf
      %1318 = vmax.xlane.f32.xlu0 %v1317
      %v1319 = vpop.xlane.xlu0 %1318
      %v1320 = vsel %vm1313, %v1310, -inf
      %1321 = vmax.xlane.f32.xlu0 %v1320
      %v1322 = vpop.xlane.xlu0 %1321
      %v1323 = vsub.f32 %v1305, %v1316
      %v1324 = vsub.f32 %v1307, %v1319
      %v1325 = vsub.f32 %v1310, %v1322
      %v1326 = vmul.f32 %v1323, 1.442695
      %v1327 = vpow.pop %v1326
      %v1328 = vmul.f32 %v1324, 1.442695
      %v1329 = vpow.pop %v1328
      %v1330 = vmul.f32 %v1325, 1.442695
      %v1331 = vpow.pop %v1330
      %v1332 = vpack.c.bf16 %v1329, %v1327
      %v1333 = vpack.c.bf16 %v1331, %v1331
      %v1346 = vunpack.c.l.b16 %v862
      %v1347 = vunpack.c.l.b16 %v863
      %v1348 = vunpack.c.l.b16 %v864
      %v1349 = vunpack.c.l.b16 %v865
      %v1350 = vunpack.c.l.b16 %v866
      %v1351 = vunpack.c.l.b16 %v867
      %v1352 = vunpack.c.l.b16 %v868
      %v1353 = vunpack.c.l.b16 %v869
      %v1354 = vunpack.c.l.b16 %v870
      %v1355 = vunpack.c.l.b16 %v871
      %v1356 = vunpack.c.l.b16 %v872
      %v1357 = vunpack.c.l.b16 %v873
      %v1358 = vpack.c.b16 %v1347, %v1346
      %v1359 = vpack.c.b16 %v1349, %v1348
      %v1360 = vpack.c.b16 %v1351, %v1350
      %v1361 = vpack.c.b16 %v1353, %v1352
      %v1362 = vpack.c.b16 %v1355, %v1354
      %v1363 = vpack.c.b16 %v1357, %v1356
      %v1371 = vsel %vm1313, %v1332, 0
      %v1374 = vsel %vm1313, %v1333, 0
      %1376 = vmatpush.bf16.msra.mxu0 0
      %1377 = vmatpush.bf16.msra.mxu0 0
      %1378 = vmatpush.bf16.msra.mxu0 %v1363
      %1379 = vmatpush.bf16.msra.mxu0 %v1362
      %1380 = vmatpush.bf16.msra.mxu0 %v1361
      %1381 = vmatpush.bf16.msra.mxu0 %v1360
      %1382 = vmatpush.bf16.msra.mxu0 %v1359
      %1383 = vmatpush.bf16.msra.mxu0 %v1358
      %1384 = vmatmul.bf16.gmra.mxu0 %v1371
      %v1385 = vpop.f32.mrf.mxu0
      %v1386 = vadd.f32 0.0, %v1385
      %v1387 = vpop.f32.mrf.mxu0
      %v1388 = vadd.f32 0.0, %v1387
      %1389 = vmatmul.bf16.gmra.mxu0 %v1374
      %v1390 = vpop.f32.mrf.mxu0
      %v1391 = vadd.f32 0.0, %v1390
      %v1392 = vpop.f32.mrf.mxu0
      %1393 = vdwg.mxu0
      %v1394 = vrcp.pop %v1386
      %v1395 = vrcp.pop %v1388
      %v1396 = vrcp.pop %v1391
      %v1397 = vmul.f32 %v1327, %v1394
      %v1398 = vmul.f32 %v1329, %v1395
      %v1399 = vmul.f32 %v1331, %v1396
      %v1400 = vpack.c.bf16 %v1398, %v1397
      %v1401 = vpack.c.bf16 %v1399, %v1399
      %v1403 = vsel %vm1313, %v1400, 0
      %v1406 = vsel %vm1313, %v1401, 0
      %1408 = vmatpush.bf16.msra.mxu0 0
      %1409 = vmatpush.bf16.msra.mxu0 0
      %1410 = vmatpush.bf16.msra.mxu0 %v1268
      %1411 = vmatpush.bf16.msra.mxu0 %v1267
      %1412 = vmatpush.bf16.msra.mxu0 %v1266
      %1413 = vmatpush.bf16.msra.mxu0 %v1265
      %1414 = vmatpush.bf16.msra.mxu0 %v1264
      %1415 = vmatpush.bf16.msra.mxu0 %v1263
      %1416 = vmatmul.bf16.gmra.mxu0 %v1403
      %v1417 = vpop.f32.mrf.mxu0
      %v1418 = vadd.f32 0.0, %v1417
      %v1419 = vpop.f32.mrf.mxu0
      %v1420 = vadd.f32 0.0, %v1419
      %1421 = vmatmul.bf16.gmra.mxu0 %v1406
      %v1422 = vpop.f32.mrf.mxu0
      %v1423 = vadd.f32 0.0, %v1422
      %v1424 = vpop.f32.mrf.mxu0
      %1425 = vdwg.mxu0
      %v1426 = vpack.c.bf16 %v1420, %v1418
      %v1427 = vpack.c.bf16 %v1423, %v1423
      %v1428 = vld [vmem:[%s16] sm:$0xf]
      %v1429 = vld [vmem:[%s16 + $0x4] sm:$0xf]
      %v1430 = vld [vmem:[%s16 + $0x8] sm:$0xf]
      %v1431 = vld [vmem:[%s16 + $0xc] sm:$0xf]
      %v1436 = vunpack.c.l.b16 %v1428
      %v1437 = vunpack.c.l.b16 %v1429
      %v1438 = vunpack.c.l.b16 %v1430
      %v1439 = vunpack.c.l.b16 %v1431
      %v1440 = vpack.c.b16 %v1437, %v1436
      %v1441 = vpack.c.b16 %v1439, %v1438
      %v1445 = vsel %vm933, %v1426, 0
      %v1448 = vsel %vm933, %v1427, 0
      %1450 = vmatpush.bf16.msra.mxu0 0
      %1451 = vmatpush.bf16.msra.mxu0 0
      %1452 = vmatpush.bf16.msra.mxu0 0
      %1453 = vmatpush.bf16.msra.mxu0 0
      %1454 = vmatpush.bf16.msra.mxu0 0
      %1455 = vmatpush.bf16.msra.mxu0 0
      %1456 = vmatpush.bf16.msra.mxu0 %v1441
      %1457 = vmatpush.bf16.msra.mxu0 %v1440
      %1458 = vmatmul.bf16.gmra.mxu0 %v1445
      %v1459 = vpop.f32.mrf.mxu0
      %v1460 = vadd.f32 0.0, %v1459
      %v1461 = vpop.f32.mrf.mxu0
      %v1462 = vadd.f32 0.0, %v1461
      %1463 = vmatmul.bf16.gmra.mxu0 %v1448
      %v1464 = vpop.f32.mrf.mxu0
      %v1465 = vadd.f32 0.0, %v1464
      %v1466 = vpop.f32.mrf.mxu0
      %1467 = vdwg.mxu0
      %v1468 = vadd.f32 %v1022, %v1460
      %v1469 = vadd.f32 %v1023, %v1462
      %v1470 = vadd.f32 %v1024, %v1465
      %v1471 = vld [vmem:[%s17] sm:$0x1]
      %v1473 = vperm.slane %v1471, 0
      %v1475 = vadd.f32 %v1468, %v1473
      %v1476 = vadd.f32 %v1469, %v1473
      %v1477 = vadd.f32 %v1470, %v1473
      %v1478 = vld [vmem:[%s18] sm:$0x1]
      %v1479 = vld [vmem:[%s19] sm:$0x1]
      %v1480 = vsel %vm933, %v1475, 0.0
      %1481 = vadd.xlane.f32.xlu0 %v1480
      %v1482 = vpop.xlane.xlu0 %1481
      %v1483 = vsel %vm933, %v1476, 0.0
      %1484 = vadd.xlane.f32.xlu0 %v1483
      %v1485 = vpop.xlane.xlu0 %1484
      %v1486 = vsel %vm933, %v1477, 0.0
      %1487 = vadd.xlane.f32.xlu0 %v1486
      %v1488 = vpop.xlane.xlu0 %1487
      %v1489 = vmul.f32 %v1482, %v949
      %v1490 = vmul.f32 %v1485, %v949
      %v1491 = vmul.f32 %v1488, %v949
      %v1492 = vmul.f32 %v1475, %v1475
      %v1493 = vmul.f32 %v1476, %v1476
      %v1494 = vmul.f32 %v1477, %v1477
      %v1495 = vsel %vm933, %v1492, 0.0
      %1496 = vadd.xlane.f32.xlu0 %v1495
      %v1497 = vpop.xlane.xlu0 %1496
      %v1498 = vsel %vm933, %v1493, 0.0
      %1499 = vadd.xlane.f32.xlu0 %v1498
      %v1500 = vpop.xlane.xlu0 %1499
      %v1501 = vsel %vm933, %v1494, 0.0
      %1502 = vadd.xlane.f32.xlu0 %v1501
      %v1503 = vpop.xlane.xlu0 %1502
      %v1504 = vmul.f32 %v1497, %v949
      %v1505 = vmul.f32 %v1500, %v949
      %v1506 = vmul.f32 %v1503, %v949
      %v1507 = vmul.f32 %v1489, %v1489
      %v1508 = vmul.f32 %v1490, %v1490
      %v1509 = vmul.f32 %v1491, %v1491
      %v1510 = vsub.f32 %v1504, %v1507
      %v1511 = vsub.f32 %v1505, %v1508
      %v1512 = vsub.f32 %v1506, %v1509
      %v1513 = vsub.f32 %v1475, %v1489
      %v1514 = vsub.f32 %v1476, %v1490
      %v1515 = vsub.f32 %v1477, %v1491
      %v1516 = vadd.f32 %v1510, 1e-05
      %v1517 = vadd.f32 %v1511, 1e-05
      %v1518 = vadd.f32 %v1512, 1e-05
      %v1519 = vrsqrt.pop %v1516
      %v1520 = vmul.f32 %v1519, %v1516
      %v1521 = vmul.f32 %v1520, %v1519
      %v1522 = vmul.f32 0.5, %v1521
      %v1523 = vsub.f32 1.5, %v1522
      %v1524 = vmul.f32 %v1519, %v1523
      %vm1525 = vweird.f32 %v1516
      %vm1526 = vweird.f32 %v1519
      %vm1527 = vmor %vm1525, %vm1526
      %v1528 = vsel %vm1527, %v1519, %v1524
      %v1529 = vrsqrt.pop %v1517
      %v1530 = vmul.f32 %v1529, %v1517
      %v1531 = vmul.f32 %v1530, %v1529
      %v1532 = vmul.f32 0.5, %v1531
      %v1533 = vsub.f32 1.5, %v1532
      %v1534 = vmul.f32 %v1529, %v1533
      %vm1535 = vweird.f32 %v1517
      %vm1536 = vweird.f32 %v1529
      %vm1537 = vmor %vm1535, %vm1536
      %v1538 = vsel %vm1537, %v1529, %v1534
      %v1539 = vrsqrt.pop %v1518
      %v1540 = vmul.f32 %v1539, %v1518
      %v1541 = vmul.f32 %v1540, %v1539
      %v1542 = vmul.f32 0.5, %v1541
      %v1543 = vsub.f32 1.5, %v1542
      %v1544 = vmul.f32 %v1539, %v1543
      %vm1545 = vweird.f32 %v1518
      %vm1546 = vweird.f32 %v1539
      %vm1547 = vmor %vm1545, %vm1546
      %v1548 = vsel %vm1547, %v1539, %v1544
      %v1549 = vmul.f32 %v1513, %v1528
      %v1550 = vmul.f32 %v1514, %v1538
      %v1551 = vmul.f32 %v1515, %v1548
      %v1553 = vperm.slane %v1478, 0
      %v1555 = vmul.f32 %v1549, %v1553
      %v1556 = vmul.f32 %v1550, %v1553
      %v1557 = vmul.f32 %v1551, %v1553
      %v1559 = vperm.slane %v1479, 0
      %v1561 = vadd.f32 %v1555, %v1559
      %v1562 = vadd.f32 %v1556, %v1559
      %v1563 = vadd.f32 %v1557, %v1559
      %v1564 = vpack.c.bf16 %v1562, %v1561
      %v1565 = vpack.c.bf16 %v1563, %v1563
      %v1566 = vld [vmem:[%s20] sm:$0xf]
      %v1567 = vld [vmem:[%s20 + $0x4] sm:$0xf]
      %v1568 = vld [vmem:[%s20 + $0x8] sm:$0xf]
      %v1569 = vld [vmem:[%s20 + $0xc] sm:$0xf]
      %v1570 = vld [vmem:[%s21] sm:$0x1]
      %v1572 = vperm.slane %v1570, 0
      %v1578 = vunpack.c.l.b16 %v1566
      %v1579 = vunpack.c.l.b16 %v1567
      %v1580 = vunpack.c.l.b16 %v1568
      %v1581 = vunpack.c.l.b16 %v1569
      %v1582 = vpack.c.b16 %v1579, %v1578
      %v1583 = vpack.c.b16 %v1581, %v1580
      %v1587 = vsel %vm933, %v1564, 0
      %v1590 = vsel %vm933, %v1565, 0
      %1592 = vmatpush.bf16.msra.mxu0 0
      %1593 = vmatpush.bf16.msra.mxu0 0
      %1594 = vmatpush.bf16.msra.mxu0 0
      %1595 = vmatpush.bf16.msra.mxu0 0
      %1596 = vmatpush.bf16.msra.mxu0 0
      %1597 = vmatpush.bf16.msra.mxu0 0
      %1598 = vmatpush.bf16.msra.mxu0 %v1583
      %1599 = vmatpush.bf16.msra.mxu0 %v1582
      %1600 = vmatmul.bf16.gmra.mxu0 %v1587
      %v1601 = vpop.f32.mrf.mxu0
      %v1602 = vadd.f32 %v1572, %v1601
      %v1603 = vpop.f32.mrf.mxu0
      %v1604 = vadd.f32 %v1572, %v1603
      %1605 = vmatmul.bf16.gmra.mxu0 %v1590
      %v1606 = vpop.f32.mrf.mxu0
      %v1607 = vadd.f32 %v1572, %v1606
      %v1608 = vpop.f32.mrf.mxu0
      %1609 = vdwg.mxu0
      %v1610 = vmul.f32 %v1602, 1.702
      %v1611 = vmul.f32 %v1604, 1.702
      %v1612 = vmul.f32 %v1607, 1.702
      %v1613 = vxor.u32 %v1610, 2147483648
      %v1614 = vxor.u32 %v1611, 2147483648
      %v1615 = vxor.u32 %v1612, 2147483648
      %v1616 = vmul.f32 %v1613, 1.442695
      %v1617 = vpow.pop %v1616
      %v1618 = vmul.f32 %v1614, 1.442695
      %v1619 = vpow.pop %v1618
      %v1620 = vmul.f32 %v1615, 1.442695
      %v1621 = vpow.pop %v1620
      %v1622 = vadd.f32 %v1617, 1.0
      %v1623 = vadd.f32 %v1619, 1.0
      %v1624 = vadd.f32 %v1621, 1.0
      %v1625 = vrcp.pop %v1622
      %v1626 = vmul.f32 %v1622, %v1625
      %v1627 = vsub.f32 1.0, %v1626
      %v1628 = vmul.f32 %v1625, %v1627
      %v1629 = vadd.f32 %v1625, %v1628
      %vm1630 = vweird.f32 %v1622
      %vm1631 = vweird.f32 %v1625
      %vm1632 = vmor %vm1630, %vm1631
      %v1633 = vsel %vm1632, %v1625, %v1629
      %v1634 = vand.u32 2147483647, %v1622
      %vm1635 = vcmp.eq.f32.partialorder %v1634, 8.507059e+37
      %v1636 = vand.u32 %v1622, 2147483648
      %v1637 = vor.u32 1.1754944e-38, %v1636
      %v1638 = vsel %vm1635, %v1637, %v1633
      %v1639 = vmul.f32 1.0, %v1638
      %v1640 = vrcp.pop %v1623
      %v1641 = vmul.f32 %v1623, %v1640
      %v1642 = vsub.f32 1.0, %v1641
      %v1643 = vmul.f32 %v1640, %v1642
      %v1644 = vadd.f32 %v1640, %v1643
      %vm1645 = vweird.f32 %v1623
      %vm1646 = vweird.f32 %v1640
      %vm1647 = vmor %vm1645, %vm1646
      %v1648 = vsel %vm1647, %v1640, %v1644
      %v1649 = vand.u32 2147483647, %v1623
      %vm1650 = vcmp.eq.f32.partialorder %v1649, 8.507059e+37
      %v1651 = vand.u32 %v1623, 2147483648
      %v1652 = vor.u32 1.1754944e-38, %v1651
      %v1653 = vsel %vm1650, %v1652, %v1648
      %v1654 = vmul.f32 1.0, %v1653
      %v1655 = vrcp.pop %v1624
      %v1656 = vmul.f32 %v1624, %v1655
      %v1657 = vsub.f32 1.0, %v1656
      %v1658 = vmul.f32 %v1655, %v1657
      %v1659 = vadd.f32 %v1655, %v1658
      %vm1660 = vweird.f32 %v1624
      %vm1661 = vweird.f32 %v1655
      %vm1662 = vmor %vm1660, %vm1661
      %v1663 = vsel %vm1662, %v1655, %v1659
      %v1664 = vand.u32 2147483647, %v1624
      %vm1665 = vcmp.eq.f32.partialorder %v1664, 8.507059e+37
      %v1666 = vand.u32 %v1624, 2147483648
      %v1667 = vor.u32 1.1754944e-38, %v1666
      %v1668 = vsel %vm1665, %v1667, %v1663
      %v1669 = vmul.f32 1.0, %v1668
      %v1670 = vmul.f32 %v1602, %v1639
      %v1671 = vmul.f32 %v1604, %v1654
      %v1672 = vmul.f32 %v1607, %v1669
      %v1673 = vpack.c.bf16 %v1671, %v1670
      %v1674 = vpack.c.bf16 %v1672, %v1672
      %v1675 = vld [vmem:[%s22] sm:$0xf]
      %v1676 = vld [vmem:[%s22 + $0x4] sm:$0xf]
      %v1677 = vld [vmem:[%s22 + $0x8] sm:$0xf]
      %v1678 = vld [vmem:[%s22 + $0xc] sm:$0xf]
      %v1679 = vld [vmem:[%s22 + $0x10] sm:$0xf]
      %v1680 = vld [vmem:[%s22 + $0x14] sm:$0xf]
      %v1681 = vld [vmem:[%s22 + $0x18] sm:$0xf]
      %v1682 = vld [vmem:[%s22 + $0x1c] sm:$0xf]
      %v1691 = vunpack.c.l.b16 %v1675
      %v1692 = vunpack.c.l.b16 %v1676
      %v1693 = vunpack.c.l.b16 %v1677
      %v1694 = vunpack.c.l.b16 %v1678
      %v1695 = vunpack.c.l.b16 %v1679
      %v1696 = vunpack.c.l.b16 %v1680
      %v1697 = vunpack.c.l.b16 %v1681
      %v1698 = vunpack.c.l.b16 %v1682
      %v1699 = vpack.c.b16 %v1692, %v1691
      %v1700 = vpack.c.b16 %v1694, %v1693
      %v1701 = vpack.c.b16 %v1696, %v1695
      %v1702 = vpack.c.b16 %v1698, %v1697
      %vm1707 = vcmask 523264
      %v1709 = vsel %vm1707, %v1673, 0
      %v1712 = vsel %vm1707, %v1674, 0
      %1714 = vmatpush.bf16.msra.mxu0 0
      %1715 = vmatpush.bf16.msra.mxu0 0
      %1716 = vmatpush.bf16.msra.mxu0 0
      %1717 = vmatpush.bf16.msra.mxu0 0
      %1718 = vmatpush.bf16.msra.mxu0 %v1702
      %1719 = vmatpush.bf16.msra.mxu0 %v1701
      %1720 = vmatpush.bf16.msra.mxu0 %v1700
      %1721 = vmatpush.bf16.msra.mxu0 %v1699
      %1722 = vmatmul.bf16.gmra.mxu0 %v1709
      %v1723 = vpop.f32.mrf.mxu0
      %v1724 = vadd.f32 0.0, %v1723
      %v1725 = vpop.f32.mrf.mxu0
      %v1726 = vadd.f32 0.0, %v1725
      %1727 = vmatmul.bf16.gmra.mxu0 %v1712
      %v1728 = vpop.f32.mrf.mxu0
      %v1729 = vadd.f32 0.0, %v1728
      %v1730 = vpop.f32.mrf.mxu0
      %1731 = vdwg.mxu0
      %v1732 = vadd.f32 %v1475, %v1724
      %v1733 = vadd.f32 %v1476, %v1726
      %v1734 = vadd.f32 %v1477, %v1729
      %v1735 = vld [vmem:[%s23] sm:$0x1]
      %v1737 = vperm.slane %v1735, 0
      %v1739 = vadd.f32 %v1732, %v1737
      %v1740 = vadd.f32 %v1733, %v1737
      %v1741 = vadd.f32 %v1734, %v1737
      %s1742 = scalar_lea.vmem %s8, 1
      %v1743 = vld [vmem:[%s1742] sm:$0x1]
      %s1744 = scalar_lea.vmem %s9, 1
      %v1745 = vld [vmem:[%s1744] sm:$0x1]
      %v1746 = vsel %vm933, %v1739, 0.0
      %1747 = vadd.xlane.f32.xlu0 %v1746
      %v1748 = vpop.xlane.xlu0 %1747
      %v1749 = vsel %vm933, %v1740, 0.0
      %1750 = vadd.xlane.f32.xlu0 %v1749
      %v1751 = vpop.xlane.xlu0 %1750
      %v1752 = vsel %vm933, %v1741, 0.0
      %1753 = vadd.xlane.f32.xlu0 %v1752
      %v1754 = vpop.xlane.xlu0 %1753
      %v1755 = vmul.f32 %v1748, %v949
      %v1756 = vmul.f32 %v1751, %v949
      %v1757 = vmul.f32 %v1754, %v949
      %v1758 = vmul.f32 %v1739, %v1739
      %v1759 = vmul.f32 %v1740, %v1740
      %v1760 = vmul.f32 %v1741, %v1741
      %v1761 = vsel %vm933, %v1758, 0.0
      %1762 = vadd.xlane.f32.xlu0 %v1761
      %v1763 = vpop.xlane.xlu0 %1762
      %v1764 = vsel %vm933, %v1759, 0.0
      %1765 = vadd.xlane.f32.xlu0 %v1764
      %v1766 = vpop.xlane.xlu0 %1765
      %v1767 = vsel %vm933, %v1760, 0.0
      %1768 = vadd.xlane.f32.xlu0 %v1767
      %v1769 = vpop.xlane.xlu0 %1768
      %v1770 = vmul.f32 %v1763, %v949
      %v1771 = vmul.f32 %v1766, %v949
      %v1772 = vmul.f32 %v1769, %v949
      %v1773 = vmul.f32 %v1755, %v1755
      %v1774 = vmul.f32 %v1756, %v1756
      %v1775 = vmul.f32 %v1757, %v1757
      %v1776 = vsub.f32 %v1770, %v1773
      %v1777 = vsub.f32 %v1771, %v1774
      %v1778 = vsub.f32 %v1772, %v1775
      %v1779 = vsub.f32 %v1739, %v1755
      %v1780 = vsub.f32 %v1740, %v1756
      %v1781 = vsub.f32 %v1741, %v1757
      %v1782 = vadd.f32 %v1776, 1e-05
      %v1783 = vadd.f32 %v1777, 1e-05
      %v1784 = vadd.f32 %v1778, 1e-05
      %v1785 = vrsqrt.pop %v1782
      %v1786 = vmul.f32 %v1785, %v1782
      %v1787 = vmul.f32 %v1786, %v1785
      %v1788 = vmul.f32 0.5, %v1787
      %v1789 = vsub.f32 1.5, %v1788
      %v1790 = vmul.f32 %v1785, %v1789
      %vm1791 = vweird.f32 %v1782
      %vm1792 = vweird.f32 %v1785
      %vm1793 = vmor %vm1791, %vm1792
      %v1794 = vsel %vm1793, %v1785, %v1790
      %v1795 = vrsqrt.pop %v1783
      %v1796 = vmul.f32 %v1795, %v1783
      %v1797 = vmul.f32 %v1796, %v1795
      %v1798 = vmul.f32 0.5, %v1797
      %v1799 = vsub.f32 1.5, %v1798
      %v1800 = vmul.f32 %v1795, %v1799
      %vm1801 = vweird.f32 %v1783
      %vm1802 = vweird.f32 %v1795
      %vm1803 = vmor %vm1801, %vm1802
      %v1804 = vsel %vm1803, %v1795, %v1800
      %v1805 = vrsqrt.pop %v1784
      %v1806 = vmul.f32 %v1805, %v1784
      %v1807 = vmul.f32 %v1806, %v1805
      %v1808 = vmul.f32 0.5, %v1807
      %v1809 = vsub.f32 1.5, %v1808
      %v1810 = vmul.f32 %v1805, %v1809
      %vm1811 = vweird.f32 %v1784
      %vm1812 = vweird.f32 %v1805
      %vm1813 = vmor %vm1811, %vm1812
      %v1814 = vsel %vm1813, %v1805, %v1810
      %v1815 = vmul.f32 %v1779, %v1794
      %v1816 = vmul.f32 %v1780, %v1804
      %v1817 = vmul.f32 %v1781, %v1814
      %v1819 = vperm.slane %v1743, 0
      %v1821 = vmul.f32 %v1815, %v1819
      %v1822 = vmul.f32 %v1816, %v1819
      %v1823 = vmul.f32 %v1817, %v1819
      %v1825 = vperm.slane %v1745, 0
      %v1827 = vadd.f32 %v1821, %v1825
      %v1828 = vadd.f32 %v1822, %v1825
      %v1829 = vadd.f32 %v1823, %v1825
      %v1830 = vpack.c.bf16 %v1828, %v1827
      %v1831 = vpack.c.bf16 %v1829, %v1829
      %s1832 = scalar_lea.vmem %s10, 16
      %v1833 = vld [vmem:[%s1832] sm:$0xf]
      %v1834 = vld [vmem:[%s1832 + $0x4] sm:$0xf]
      %v1835 = vld [vmem:[%s1832 + $0x8] sm:$0xf]
      %v1836 = vld [vmem:[%s1832 + $0xc] sm:$0xf]
      %s1837 = scalar_lea.vmem %s11, 1
      %v1838 = vld [vmem:[%s1837] sm:$0x1]
      %v1840 = vperm.slane %v1838, 0
      %v1846 = vunpack.c.l.b16 %v1833
      %v1847 = vunpack.c.l.b16 %v1834
      %v1848 = vunpack.c.l.b16 %v1835
      %v1849 = vunpack.c.l.b16 %v1836
      %v1850 = vpack.c.b16 %v1847, %v1846
      %v1851 = vpack.c.b16 %v1849, %v1848
      %v1855 = vsel %vm933, %v1830, 0
      %v1858 = vsel %vm933, %v1831, 0
      %1860 = vmatpush.bf16.msra.mxu0 0
      %1861 = vmatpush.bf16.msra.mxu0 0
      %1862 = vmatpush.bf16.msra.mxu0 0
      %1863 = vmatpush.bf16.msra.mxu0 0
      %1864 = vmatpush.bf16.msra.mxu0 0
      %1865 = vmatpush.bf16.msra.mxu0 0
      %1866 = vmatpush.bf16.msra.mxu0 %v1851
      %1867 = vmatpush.bf16.msra.mxu0 %v1850
      %1868 = vmatmul.bf16.gmra.mxu0 %v1855
      %v1869 = vpop.f32.mrf.mxu0
      %v1870 = vadd.f32 %v1840, %v1869
      %v1871 = vpop.f32.mrf.mxu0
      %v1872 = vadd.f32 %v1840, %v1871
      %1873 = vmatmul.bf16.gmra.mxu0 %v1858
      %v1874 = vpop.f32.mrf.mxu0
      %v1875 = vadd.f32 %v1840, %v1874
      %v1876 = vpop.f32.mrf.mxu0
      %1877 = vdwg.mxu0
      %s1878 = scalar_lea.vmem %s12, 16
      %v1879 = vld [vmem:[%s1878] sm:$0xf]
      %v1880 = vld [vmem:[%s1878 + $0x4] sm:$0xf]
      %v1881 = vld [vmem:[%s1878 + $0x8] sm:$0xf]
      %v1882 = vld [vmem:[%s1878 + $0xc] sm:$0xf]
      %s1883 = scalar_lea.vmem %s13, 1
      %v1884 = vld [vmem:[%s1883] sm:$0x1]
      %v1886 = vperm.slane %v1884, 0
      %v1892 = vunpack.c.l.b16 %v1879
      %v1893 = vunpack.c.l.b16 %v1880
      %v1894 = vunpack.c.l.b16 %v1881
      %v1895 = vunpack.c.l.b16 %v1882
      %v1896 = vpack.c.b16 %v1893, %v1892
      %v1897 = vpack.c.b16 %v1895, %v1894
      %1900 = vmatpush.bf16.msra.mxu0 0
      %1901 = vmatpush.bf16.msra.mxu0 0
      %1902 = vmatpush.bf16.msra.mxu0 0
      %1903 = vmatpush.bf16.msra.mxu0 0
      %1904 = vmatpush.bf16.msra.mxu0 0
      %1905 = vmatpush.bf16.msra.mxu0 0
      %1906 = vmatpush.bf16.msra.mxu0 %v1897
      %1907 = vmatpush.bf16.msra.mxu0 %v1896
      %1908 = vmatmul.bf16.gmra.mxu0 %v1855
      %v1909 = vpop.f32.mrf.mxu0
      %v1910 = vadd.f32 %v1886, %v1909
      %v1911 = vpop.f32.mrf.mxu0
      %v1912 = vadd.f32 %v1886, %v1911
      %1913 = vmatmul.bf16.gmra.mxu0 %v1858
      %v1914 = vpop.f32.mrf.mxu0
      %v1915 = vadd.f32 %v1886, %v1914
      %v1916 = vpop.f32.mrf.mxu0
      %1917 = vdwg.mxu0
      %s1918 = scalar_lea.vmem %s14, 16
      %v1919 = vld [vmem:[%s1918] sm:$0xf]
      %v1920 = vld [vmem:[%s1918 + $0x4] sm:$0xf]
      %v1921 = vld [vmem:[%s1918 + $0x8] sm:$0xf]
      %v1922 = vld [vmem:[%s1918 + $0xc] sm:$0xf]
      %s1923 = scalar_lea.vmem %s15, 1
      %v1924 = vld [vmem:[%s1923] sm:$0x1]
      %v1926 = vperm.slane %v1924, 0
      %v1932 = vunpack.c.l.b16 %v1919
      %v1933 = vunpack.c.l.b16 %v1920
      %v1934 = vunpack.c.l.b16 %v1921
      %v1935 = vunpack.c.l.b16 %v1922
      %v1936 = vpack.c.b16 %v1933, %v1932
      %v1937 = vpack.c.b16 %v1935, %v1934
      %1940 = vmatpush.bf16.msra.mxu0 0
      %1941 = vmatpush.bf16.msra.mxu0 0
      %1942 = vmatpush.bf16.msra.mxu0 0
      %1943 = vmatpush.bf16.msra.mxu0 0
      %1944 = vmatpush.bf16.msra.mxu0 0
      %1945 = vmatpush.bf16.msra.mxu0 0
      %1946 = vmatpush.bf16.msra.mxu0 %v1937
      %1947 = vmatpush.bf16.msra.mxu0 %v1936
      %1948 = vmatmul.bf16.gmra.mxu0 %v1855
      %v1949 = vpop.f32.mrf.mxu0
      %v1950 = vadd.f32 %v1926, %v1949
      %v1951 = vpop.f32.mrf.mxu0
      %v1952 = vadd.f32 %v1926, %v1951
      %1953 = vmatmul.bf16.gmra.mxu0 %v1858
      %v1954 = vpop.f32.mrf.mxu0
      %v1955 = vadd.f32 %v1926, %v1954
      %v1956 = vpop.f32.mrf.mxu0
      %1957 = vdwg.mxu0
      %v1958 = vmul.f32 %v1910, %v850
      %v1959 = vmul.f32 %v1912, %v851
      %v1960 = vmul.f32 %v1915, %v852
      %v1961 = vmul.f32 %v1910, %v853
      %v1962 = vmul.f32 %v1912, %v854
      %v1963 = vmul.f32 %v1915, %v855
      %v1964 = vmul.f32 %v1910, %v856
      %v1965 = vmul.f32 %v1912, %v857
      %v1966 = vmul.f32 %v1915, %v858
      %v1967 = vmul.f32 %v1910, %v859
      %v1968 = vmul.f32 %v1912, %v860
      %v1969 = vmul.f32 %v1915, %v861
      %v1970 = vpack.c.bf16 %v1959, %v1958
      %v1971 = vpack.c.bf16 %v1961, %v1960
      %v1972 = vpack.c.bf16 %v1963, %v1962
      %v1973 = vpack.c.bf16 %v1965, %v1964
      %v1974 = vpack.c.bf16 %v1967, %v1966
      %v1975 = vpack.c.bf16 %v1969, %v1968
      %v1976 = vmul.f32 %v1950, %v850
      %v1977 = vmul.f32 %v1952, %v851
      %v1978 = vmul.f32 %v1955, %v852
      %v1979 = vmul.f32 %v1950, %v853
      %v1980 = vmul.f32 %v1952, %v854
      %v1981 = vmul.f32 %v1955, %v855
      %v1982 = vmul.f32 %v1950, %v856
      %v1983 = vmul.f32 %v1952, %v857
      %v1984 = vmul.f32 %v1955, %v858
      %v1985 = vmul.f32 %v1950, %v859
      %v1986 = vmul.f32 %v1952, %v860
      %v1987 = vmul.f32 %v1955, %v861
      %v1988 = vpack.c.bf16 %v1977, %v1976
      %v1989 = vpack.c.bf16 %v1979, %v1978
      %v1990 = vpack.c.bf16 %v1981, %v1980
      %v1991 = vpack.c.bf16 %v1983, %v1982
      %v1992 = vpack.c.bf16 %v1985, %v1984
      %v1993 = vpack.c.bf16 %v1987, %v1986
      %v1994 = vpack.c.bf16 %v1872, %v1870
      %v1995 = vpack.c.bf16 %v1875, %v1875
      %v1997 = vsel %vm933, %v1994, 0
      %v2000 = vsel %vm933, %v1995, 0
      %v2003 = vsel %vm933, %v1970, 0
      %v2006 = vsel %vm933, %v1971, 0
      %v2009 = vsel %vm933, %v1972, 0
      %v2012 = vsel %vm933, %v1973, 0
      %v2015 = vsel %vm933, %v1974, 0
      %v2018 = vsel %vm933, %v1975, 0
      %2020 = vmatpush.bf16.xpose.msra.mxu0 0
      %2021 = vmatpush.bf16.xpose.msra.mxu0 0
      %2022 = vmatpush.bf16.xpose.msra.mxu0 %v2018
      %2023 = vmatpush.bf16.xpose.msra.mxu0 %v2015
      %2024 = vmatpush.bf16.xpose.msra.mxu0 %v2012
      %2025 = vmatpush.bf16.xpose.msra.mxu0 %v2009
      %2026 = vmatpush.bf16.xpose.msra.mxu0 %v2006
      %2027 = vmatpush.bf16.xpose.msra.mxu0 %v2003
      %2028 = vmatmul.bf16.gmra.mxu0 %v1997
      %v2029 = vpop.f32.mrf.mxu0
      %v2030 = vadd.f32 %v847, %v2029
      %v2031 = vpop.f32.mrf.mxu0
      %v2032 = vadd.f32 %v848, %v2031
      %2033 = vmatmul.bf16.gmra.mxu0 %v2000
      %v2034 = vpop.f32.mrf.mxu0
      %v2035 = vadd.f32 %v849, %v2034
      %v2036 = vpop.f32.mrf.mxu0
      %2037 = vdwg.mxu0
      %v2038 = vsel %vm1313, %v2030, -inf
      %2039 = vmax.xlane.f32.xlu0 %v2038
      %v2040 = vpop.xlane.xlu0 %2039
      %v2041 = vsel %vm1313, %v2032, -inf
      %2042 = vmax.xlane.f32.xlu0 %v2041
      %v2043 = vpop.xlane.xlu0 %2042
      %v2044 = vsel %vm1313, %v2035, -inf
      %2045 = vmax.xlane.f32.xlu0 %v2044
      %v2046 = vpop.xlane.xlu0 %2045
      %v2047 = vsub.f32 %v2030, %v2040
      %v2048 = vsub.f32 %v2032, %v2043
      %v2049 = vsub.f32 %v2035, %v2046
      %v2050 = vmul.f32 %v2047, 1.442695
      %v2051 = vpow.pop %v2050
      %v2052 = vmul.f32 %v2048, 1.442695
      %v2053 = vpow.pop %v2052
      %v2054 = vmul.f32 %v2049, 1.442695
      %v2055 = vpow.pop %v2054
      %v2056 = vpack.c.bf16 %v2053, %v2051
      %v2057 = vpack.c.bf16 %v2055, %v2055
      %v2059 = vsel %vm1313, %v2056, 0
      %v2062 = vsel %vm1313, %v2057, 0
      %2064 = vmatpush.bf16.msra.mxu0 0
      %2065 = vmatpush.bf16.msra.mxu0 0
      %2066 = vmatpush.bf16.msra.mxu0 %v1363
      %2067 = vmatpush.bf16.msra.mxu0 %v1362
      %2068 = vmatpush.bf16.msra.mxu0 %v1361
      %2069 = vmatpush.bf16.msra.mxu0 %v1360
      %2070 = vmatpush.bf16.msra.mxu0 %v1359
      %2071 = vmatpush.bf16.msra.mxu0 %v1358
      %2072 = vmatmul.bf16.gmra.mxu0 %v2059
      %v2073 = vpop.f32.mrf.mxu0
      %v2074 = vadd.f32 0.0, %v2073
      %v2075 = vpop.f32.mrf.mxu0
      %v2076 = vadd.f32 0.0, %v2075
      %2077 = vmatmul.bf16.gmra.mxu0 %v2062
      %v2078 = vpop.f32.mrf.mxu0
      %v2079 = vadd.f32 0.0, %v2078
      %v2080 = vpop.f32.mrf.mxu0
      %2081 = vdwg.mxu0
      %v2082 = vrcp.pop %v2074
      %v2083 = vrcp.pop %v2076
      %v2084 = vrcp.pop %v2079
      %v2085 = vmul.f32 %v2051, %v2082
      %v2086 = vmul.f32 %v2053, %v2083
      %v2087 = vmul.f32 %v2055, %v2084
      %v2088 = vpack.c.bf16 %v2086, %v2085
      %v2089 = vpack.c.bf16 %v2087, %v2087
      %v2091 = vsel %vm1313, %v2088, 0
      %v2094 = vsel %vm1313, %v2089, 0
      %2096 = vmatpush.bf16.msra.mxu0 0
      %2097 = vmatpush.bf16.msra.mxu0 0
      %2098 = vmatpush.bf16.msra.mxu0 %v1993
      %2099 = vmatpush.bf16.msra.mxu0 %v1992
      %2100 = vmatpush.bf16.msra.mxu0 %v1991
      %2101 = vmatpush.bf16.msra.mxu0 %v1990
      %2102 = vmatpush.bf16.msra.mxu0 %v1989
      %2103 = vmatpush.bf16.msra.mxu0 %v1988
      %2104 = vmatmul.bf16.gmra.mxu0 %v2091
      %v2105 = vpop.f32.mrf.mxu0
      %v2106 = vadd.f32 0.0, %v2105
      %v2107 = vpop.f32.mrf.mxu0
      %v2108 = vadd.f32 0.0, %v2107
      %2109 = vmatmul.bf16.gmra.mxu0 %v2094
      %v2110 = vpop.f32.mrf.mxu0
      %v2111 = vadd.f32 0.0, %v2110
      %v2112 = vpop.f32.mrf.mxu0
      %2113 = vdwg.mxu0
      %v2114 = vpack.c.bf16 %v2108, %v2106
      %v2115 = vpack.c.bf16 %v2111, %v2111
      %s2116 = scalar_lea.vmem %s16, 16
      %v2117 = vld [vmem:[%s2116] sm:$0xf]
      %v2118 = vld [vmem:[%s2116 + $0x4] sm:$0xf]
      %v2119 = vld [vmem:[%s2116 + $0x8] sm:$0xf]
      %v2120 = vld [vmem:[%s2116 + $0xc] sm:$0xf]
      %v2125 = vunpack.c.l.b16 %v2117
      %v2126 = vunpack.c.l.b16 %v2118
      %v2127 = vunpack.c.l.b16 %v2119
      %v2128 = vunpack.c.l.b16 %v2120
      %v2129 = vpack.c.b16 %v2126, %v2125
      %v2130 = vpack.c.b16 %v2128, %v2127
      %v2134 = vsel %vm933, %v2114, 0
      %v2137 = vsel %vm933, %v2115, 0
      %2139 = vmatpush.bf16.msra.mxu0 0
      %2140 = vmatpush.bf16.msra.mxu0 0
      %2141 = vmatpush.bf16.msra.mxu0 0
      %2142 = vmatpush.bf16.msra.mxu0 0
      %2143 = vmatpush.bf16.msra.mxu0 0
      %2144 = vmatpush.bf16.msra.mxu0 0
      %2145 = vmatpush.bf16.msra.mxu0 %v2130
      %2146 = vmatpush.bf16.msra.mxu0 %v2129
      %2147 = vmatmul.bf16.gmra.mxu0 %v2134
      %v2148 = vpop.f32.mrf.mxu0
      %v2149 = vadd.f32 0.0, %v2148
      %v2150 = vpop.f32.mrf.mxu0
      %v2151 = vadd.f32 0.0, %v2150
      %2152 = vmatmul.bf16.gmra.mxu0 %v2137
      %v2153 = vpop.f32.mrf.mxu0
      %v2154 = vadd.f32 0.0, %v2153
      %v2155 = vpop.f32.mrf.mxu0
      %2156 = vdwg.mxu0
      %v2157 = vadd.f32 %v1739, %v2149
      %v2158 = vadd.f32 %v1740, %v2151
      %v2159 = vadd.f32 %v1741, %v2154
      %s2160 = scalar_lea.vmem %s17, 1
      %v2161 = vld [vmem:[%s2160] sm:$0x1]
      %v2163 = vperm.slane %v2161, 0
      %v2165 = vadd.f32 %v2157, %v2163
      %v2166 = vadd.f32 %v2158, %v2163
      %v2167 = vadd.f32 %v2159, %v2163
      %s2168 = scalar_lea.vmem %s18, 1
      %v2169 = vld [vmem:[%s2168] sm:$0x1]
      %s2170 = scalar_lea.vmem %s19, 1
      %v2171 = vld [vmem:[%s2170] sm:$0x1]
      %v2172 = vsel %vm933, %v2165, 0.0
      %2173 = vadd.xlane.f32.xlu0 %v2172
      %v2174 = vpop.xlane.xlu0 %2173
      %v2175 = vsel %vm933, %v2166, 0.0
      %2176 = vadd.xlane.f32.xlu0 %v2175
      %v2177 = vpop.xlane.xlu0 %2176
      %v2178 = vsel %vm933, %v2167, 0.0
      %2179 = vadd.xlane.f32.xlu0 %v2178
      %v2180 = vpop.xlane.xlu0 %2179
      %v2181 = vmul.f32 %v2174, %v949
      %v2182 = vmul.f32 %v2177, %v949
      %v2183 = vmul.f32 %v2180, %v949
      %v2184 = vmul.f32 %v2165, %v2165
      %v2185 = vmul.f32 %v2166, %v2166
      %v2186 = vmul.f32 %v2167, %v2167
      %v2187 = vsel %vm933, %v2184, 0.0
      %2188 = vadd.xlane.f32.xlu0 %v2187
      %v2189 = vpop.xlane.xlu0 %2188
      %v2190 = vsel %vm933, %v2185, 0.0
      %2191 = vadd.xlane.f32.xlu0 %v2190
      %v2192 = vpop.xlane.xlu0 %2191
      %v2193 = vsel %vm933, %v2186, 0.0
      %2194 = vadd.xlane.f32.xlu0 %v2193
      %v2195 = vpop.xlane.xlu0 %2194
      %v2196 = vmul.f32 %v2189, %v949
      %v2197 = vmul.f32 %v2192, %v949
      %v2198 = vmul.f32 %v2195, %v949
      %v2199 = vmul.f32 %v2181, %v2181
      %v2200 = vmul.f32 %v2182, %v2182
      %v2201 = vmul.f32 %v2183, %v2183
      %v2202 = vsub.f32 %v2196, %v2199
      %v2203 = vsub.f32 %v2197, %v2200
      %v2204 = vsub.f32 %v2198, %v2201
      %v2205 = vsub.f32 %v2165, %v2181
      %v2206 = vsub.f32 %v2166, %v2182
      %v2207 = vsub.f32 %v2167, %v2183
      %v2208 = vadd.f32 %v2202, 1e-05
      %v2209 = vadd.f32 %v2203, 1e-05
      %v2210 = vadd.f32 %v2204, 1e-05
      %v2211 = vrsqrt.pop %v2208
      %v2212 = vmul.f32 %v2211, %v2208
      %v2213 = vmul.f32 %v2212, %v2211
      %v2214 = vmul.f32 0.5, %v2213
      %v2215 = vsub.f32 1.5, %v2214
      %v2216 = vmul.f32 %v2211, %v2215
      %vm2217 = vweird.f32 %v2208
      %vm2218 = vweird.f32 %v2211
      %vm2219 = vmor %vm2217, %vm2218
      %v2220 = vsel %vm2219, %v2211, %v2216
      %v2221 = vrsqrt.pop %v2209
      %v2222 = vmul.f32 %v2221, %v2209
      %v2223 = vmul.f32 %v2222, %v2221
      %v2224 = vmul.f32 0.5, %v2223
      %v2225 = vsub.f32 1.5, %v2224
      %v2226 = vmul.f32 %v2221, %v2225
      %vm2227 = vweird.f32 %v2209
      %vm2228 = vweird.f32 %v2221
      %vm2229 = vmor %vm2227, %vm2228
      %v2230 = vsel %vm2229, %v2221, %v2226
      %v2231 = vrsqrt.pop %v2210
      %v2232 = vmul.f32 %v2231, %v2210
      %v2233 = vmul.f32 %v2232, %v2231
      %v2234 = vmul.f32 0.5, %v2233
      %v2235 = vsub.f32 1.5, %v2234
      %v2236 = vmul.f32 %v2231, %v2235
      %vm2237 = vweird.f32 %v2210
      %vm2238 = vweird.f32 %v2231
      %vm2239 = vmor %vm2237, %vm2238
      %v2240 = vsel %vm2239, %v2231, %v2236
      %v2241 = vmul.f32 %v2205, %v2220
      %v2242 = vmul.f32 %v2206, %v2230
      %v2243 = vmul.f32 %v2207, %v2240
      %v2245 = vperm.slane %v2169, 0
      %v2247 = vmul.f32 %v2241, %v2245
      %v2248 = vmul.f32 %v2242, %v2245
      %v2249 = vmul.f32 %v2243, %v2245
      %v2251 = vperm.slane %v2171, 0
      %v2253 = vadd.f32 %v2247, %v2251
      %v2254 = vadd.f32 %v2248, %v2251
      %v2255 = vadd.f32 %v2249, %v2251
      %v2256 = vpack.c.bf16 %v2254, %v2253
      %v2257 = vpack.c.bf16 %v2255, %v2255
      %s2258 = scalar_lea.vmem %s20, 16
      %v2259 = vld [vmem:[%s2258] sm:$0xf]
      %v2260 = vld [vmem:[%s2258 + $0x4] sm:$0xf]
      %v2261 = vld [vmem:[%s2258 + $0x8] sm:$0xf]
      %v2262 = vld [vmem:[%s2258 + $0xc] sm:$0xf]
      %s2263 = scalar_lea.vmem %s21, 1
      %v2264 = vld [vmem:[%s2263] sm:$0x1]
      %v2266 = vperm.slane %v2264, 0
      %v2272 = vunpack.c.l.b16 %v2259
      %v2273 = vunpack.c.l.b16 %v2260
      %v2274 = vunpack.c.l.b16 %v2261
      %v2275 = vunpack.c.l.b16 %v2262
      %v2276 = vpack.c.b16 %v2273, %v2272
      %v2277 = vpack.c.b16 %v2275, %v2274
      %v2281 = vsel %vm933, %v2256, 0
      %v2284 = vsel %vm933, %v2257, 0
      %2286 = vmatpush.bf16.msra.mxu0 0
      %2287 = vmatpush.bf16.msra.mxu0 0
      %2288 = vmatpush.bf16.msra.mxu0 0
      %2289 = vmatpush.bf16.msra.mxu0 0
      %2290 = vmatpush.bf16.msra.mxu0 0
      %2291 = vmatpush.bf16.msra.mxu0 0
      %2292 = vmatpush.bf16.msra.mxu0 %v2277
      %2293 = vmatpush.bf16.msra.mxu0 %v2276
      %2294 = vmatmul.bf16.gmra.mxu0 %v2281
      %v2295 = vpop.f32.mrf.mxu0
      %v2296 = vadd.f32 %v2266, %v2295
      %v2297 = vpop.f32.mrf.mxu0
      %v2298 = vadd.f32 %v2266, %v2297
      %2299 = vmatmul.bf16.gmra.mxu0 %v2284
      %v2300 = vpop.f32.mrf.mxu0
      %v2301 = vadd.f32 %v2266, %v2300
      %v2302 = vpop.f32.mrf.mxu0
      %2303 = vdwg.mxu0
      %v2304 = vmul.f32 %v2296, 1.702
      %v2305 = vmul.f32 %v2298, 1.702
      %v2306 = vmul.f32 %v2301, 1.702
      %v2307 = vxor.u32 %v2304, 2147483648
      %v2308 = vxor.u32 %v2305, 2147483648
      %v2309 = vxor.u32 %v2306, 2147483648
      %v2310 = vmul.f32 %v2307, 1.442695
      %v2311 = vpow.pop %v2310
      %v2312 = vmul.f32 %v2308, 1.442695
      %v2313 = vpow.pop %v2312
      %v2314 = vmul.f32 %v2309, 1.442695
      %v2315 = vpow.pop %v2314
      %v2316 = vadd.f32 %v2311, 1.0
      %v2317 = vadd.f32 %v2313, 1.0
      %v2318 = vadd.f32 %v2315, 1.0
      %v2319 = vrcp.pop %v2316
      %v2320 = vmul.f32 %v2316, %v2319
      %v2321 = vsub.f32 1.0, %v2320
      %v2322 = vmul.f32 %v2319, %v2321
      %v2323 = vadd.f32 %v2319, %v2322
      %vm2324 = vweird.f32 %v2316
      %vm2325 = vweird.f32 %v2319
      %vm2326 = vmor %vm2324, %vm2325
      %v2327 = vsel %vm2326, %v2319, %v2323
      %v2328 = vand.u32 2147483647, %v2316
      %vm2329 = vcmp.eq.f32.partialorder %v2328, 8.507059e+37
      %v2330 = vand.u32 %v2316, 2147483648
      %v2331 = vor.u32 1.1754944e-38, %v2330
      %v2332 = vsel %vm2329, %v2331, %v2327
      %v2333 = vmul.f32 1.0, %v2332
      %v2334 = vrcp.pop %v2317
      %v2335 = vmul.f32 %v2317, %v2334
      %v2336 = vsub.f32 1.0, %v2335
      %v2337 = vmul.f32 %v2334, %v2336
      %v2338 = vadd.f32 %v2334, %v2337
      %vm2339 = vweird.f32 %v2317
      %vm2340 = vweird.f32 %v2334
      %vm2341 = vmor %vm2339, %vm2340
      %v2342 = vsel %vm2341, %v2334, %v2338
      %v2343 = vand.u32 2147483647, %v2317
      %vm2344 = vcmp.eq.f32.partialorder %v2343, 8.507059e+37
      %v2345 = vand.u32 %v2317, 2147483648
      %v2346 = vor.u32 1.1754944e-38, %v2345
      %v2347 = vsel %vm2344, %v2346, %v2342
      %v2348 = vmul.f32 1.0, %v2347
      %v2349 = vrcp.pop %v2318
      %v2350 = vmul.f32 %v2318, %v2349
      %v2351 = vsub.f32 1.0, %v2350
      %v2352 = vmul.f32 %v2349, %v2351
      %v2353 = vadd.f32 %v2349, %v2352
      %vm2354 = vweird.f32 %v2318
      %vm2355 = vweird.f32 %v2349
      %vm2356 = vmor %vm2354, %vm2355
      %v2357 = vsel %vm2356, %v2349, %v2353
      %v2358 = vand.u32 2147483647, %v2318
      %vm2359 = vcmp.eq.f32.partialorder %v2358, 8.507059e+37
      %v2360 = vand.u32 %v2318, 2147483648
      %v2361 = vor.u32 1.1754944e-38, %v2360
      %v2362 = vsel %vm2359, %v2361, %v2357
      %v2363 = vmul.f32 1.0, %v2362
      %v2364 = vmul.f32 %v2296, %v2333
      %v2365 = vmul.f32 %v2298, %v2348
      %v2366 = vmul.f32 %v2301, %v2363
      %v2367 = vpack.c.bf16 %v2365, %v2364
      %v2368 = vpack.c.bf16 %v2366, %v2366
      %s2369 = scalar_lea.vmem %s22, 32
      %v2370 = vld [vmem:[%s2369] sm:$0xf]
      %v2371 = vld [vmem:[%s2369 + $0x4] sm:$0xf]
      %v2372 = vld [vmem:[%s2369 + $0x8] sm:$0xf]
      %v2373 = vld [vmem:[%s2369 + $0xc] sm:$0xf]
      %v2374 = vld [vmem:[%s2369 + $0x10] sm:$0xf]
      %v2375 = vld [vmem:[%s2369 + $0x14] sm:$0xf]
      %v2376 = vld [vmem:[%s2369 + $0x18] sm:$0xf]
      %v2377 = vld [vmem:[%s2369 + $0x1c] sm:$0xf]
      %v2386 = vunpack.c.l.b16 %v2370
      %v2387 = vunpack.c.l.b16 %v2371
      %v2388 = vunpack.c.l.b16 %v2372
      %v2389 = vunpack.c.l.b16 %v2373
      %v2390 = vunpack.c.l.b16 %v2374
      %v2391 = vunpack.c.l.b16 %v2375
      %v2392 = vunpack.c.l.b16 %v2376
      %v2393 = vunpack.c.l.b16 %v2377
      %v2394 = vpack.c.b16 %v2387, %v2386
      %v2395 = vpack.c.b16 %v2389, %v2388
      %v2396 = vpack.c.b16 %v2391, %v2390
      %v2397 = vpack.c.b16 %v2393, %v2392
      %v2403 = vsel %vm1707, %v2367, 0
      %v2406 = vsel %vm1707, %v2368, 0
      %2408 = vmatpush.bf16.msra.mxu0 0
      %2409 = vmatpush.bf16.msra.mxu0 0
      %2410 = vmatpush.bf16.msra.mxu0 0
      %2411 = vmatpush.bf16.msra.mxu0 0
      %2412 = vmatpush.bf16.msra.mxu0 %v2397
      %2413 = vmatpush.bf16.msra.mxu0 %v2396
      %2414 = vmatpush.bf16.msra.mxu0 %v2395
      %2415 = vmatpush.bf16.msra.mxu0 %v2394
      %2416 = vmatmul.bf16.gmra.mxu0 %v2403
      %v2417 = vpop.f32.mrf.mxu0
      %v2418 = vadd.f32 0.0, %v2417
      %v2419 = vpop.f32.mrf.mxu0
      %v2420 = vadd.f32 0.0, %v2419
      %2421 = vmatmul.bf16.gmra.mxu0 %v2406
      %v2422 = vpop.f32.mrf.mxu0
      %v2423 = vadd.f32 0.0, %v2422
      %v2424 = vpop.f32.mrf.mxu0
      %2425 = vdwg.mxu0
      %v2426 = vadd.f32 %v2165, %v2418
      %v2427 = vadd.f32 %v2166, %v2420
      %v2428 = vadd.f32 %v2167, %v2423
      %s2429 = scalar_lea.vmem %s23, 1
      %v2430 = vld [vmem:[%s2429] sm:$0x1]
      %v2432 = vperm.slane %v2430, 0
      %v2434 = vadd.f32 %v2426, %v2432
      %v2435 = vadd.f32 %v2427, %v2432
      %v2436 = vadd.f32 %v2428, %v2432
      %v2437 = vpack.c.bf16 %v2435, %v2434
      %v2438 = vpack.c.bf16 %v2436, %v2436
      %v2439 = vld [vmem:[%s24] sm:$0xf]
      %v2440 = vld [vmem:[%s24 + $0x4] sm:$0xf]
      %v2441 = vld [vmem:[%s24 + $0x8] sm:$0xf]
      %v2442 = vld [vmem:[%s24 + $0xc] sm:$0xf]
      %v2443 = vld [vmem:[%s25] sm:$0x1]
      %v2445 = vperm.slane %v2443, 0
      %v2451 = vunpack.c.l.b16 %v2439
      %v2452 = vunpack.c.l.b16 %v2440
      %v2453 = vunpack.c.l.b16 %v2441
      %v2454 = vunpack.c.l.b16 %v2442
      %v2455 = vpack.c.b16 %v2452, %v2451
      %v2456 = vpack.c.b16 %v2454, %v2453
      %v2460 = vsel %vm933, %v2437, 0
      %v2463 = vsel %vm933, %v2438, 0
      %2465 = vmatpush.bf16.msra.mxu0 0
      %2466 = vmatpush.bf16.msra.mxu0 0
      %2467 = vmatpush.bf16.msra.mxu0 0
      %2468 = vmatpush.bf16.msra.mxu0 0
      %2469 = vmatpush.bf16.msra.mxu0 0
      %2470 = vmatpush.bf16.msra.mxu0 0
      %2471 = vmatpush.bf16.msra.mxu0 %v2456
      %2472 = vmatpush.bf16.msra.mxu0 %v2455
      %2473 = vmatmul.bf16.gmra.mxu0 %v2460
      %v2474 = vpop.f32.mrf.mxu0
      %v2475 = vadd.f32 %v2445, %v2474
      %v2476 = vpop.f32.mrf.mxu0
      %v2477 = vadd.f32 %v2445, %v2476
      %2478 = vmatmul.bf16.gmra.mxu0 %v2463
      %v2479 = vpop.f32.mrf.mxu0
      %v2480 = vadd.f32 %v2445, %v2479
      %v2481 = vpop.f32.mrf.mxu0
      %2482 = vdwg.mxu0
      %v2483 = vmul.f32 %v2475, %v2475
      %v2484 = vmul.f32 %v2477, %v2477
      %v2485 = vmul.f32 %v2480, %v2480
      %v2486 = vmul.f32 %v2475, %v2483
      %v2487 = vmul.f32 %v2477, %v2484
      %v2488 = vmul.f32 %v2480, %v2485
      %v2489 = vmul.f32 %v2486, 0.044715
      %v2490 = vmul.f32 %v2487, 0.044715
      %v2491 = vmul.f32 %v2488, 0.044715
      %v2492 = vadd.f32 %v2475, %v2489
      %v2493 = vadd.f32 %v2477, %v2490
      %v2494 = vadd.f32 %v2480, %v2491
      %v2495 = vmul.f32 %v2492, 0.7978846
      %v2496 = vmul.f32 %v2493, 0.7978846
      %v2497 = vmul.f32 %v2494, 0.7978846
      %v2498 = vtanh.pop %v2495
      %v2499 = vtanh.pop %v2496
      %v2500 = vtanh.pop %v2497
      %v2501 = vadd.f32 %v2498, 1.0
      %v2502 = vadd.f32 %v2499, 1.0
      %v2503 = vadd.f32 %v2500, 1.0
      %v2504 = vmul.f32 %v2501, 0.5
      %v2505 = vmul.f32 %v2502, 0.5
      %v2506 = vmul.f32 %v2503, 0.5
      %v2507 = vmul.f32 %v2475, %v2504
      %v2508 = vmul.f32 %v2477, %v2505
      %v2509 = vmul.f32 %v2480, %v2506
      %v2510 = vpack.c.bf16 %v2508, %v2507
      %v2511 = vpack.c.bf16 %v2509, %v2509
      %v2512 = vld [vmem:[%s26] sm:$0xf]
      %v2513 = vld [vmem:[%s26 + $0x4] sm:$0xf]
      %v2514 = vld [vmem:[%s26 + $0x8] sm:$0xf]
      %v2515 = vld [vmem:[%s26 + $0xc] sm:$0xf]
      %v2516 = vld [vmem:[%s26 + $0x10] sm:$0xf]
      %v2517 = vld [vmem:[%s26 + $0x14] sm:$0xf]
      %v2518 = vld [vmem:[%s27] sm:$0x1]
      %v2520 = vperm.slane %v2518, 0
      %v2528 = vunpack.c.l.b16 %v2512
      %v2529 = vunpack.c.l.b16 %v2513
      %v2530 = vunpack.c.l.b16 %v2514
      %v2531 = vunpack.c.l.b16 %v2515
      %v2532 = vunpack.c.l.b16 %v2516
      %v2533 = vunpack.c.l.b16 %v2517
      %v2534 = vpack.c.b16 %v2529, %v2528
      %v2535 = vpack.c.b16 %v2531, %v2530
      %v2536 = vpack.c.b16 %v2533, %v2532
      %v2541 = vsel %vm906, %v2510, 0
      %v2544 = vsel %vm906, %v2511, 0
      %2546 = vmatpush.bf16.msra.mxu0 0
      %2547 = vmatpush.bf16.msra.mxu0 0
      %2548 = vmatpush.bf16.msra.mxu0 0
      %2549 = vmatpush.bf16.msra.mxu0 0
      %2550 = vmatpush.bf16.msra.mxu0 0
      %2551 = vmatpush.bf16.msra.mxu0 %v2536
      %2552 = vmatpush.bf16.msra.mxu0 %v2535
      %2553 = vmatpush.bf16.msra.mxu0 %v2534
      %2554 = vmatmul.bf16.gmra.mxu0 %v2541
      %v2555 = vpop.f32.mrf.mxu0
      %v2556 = vadd.f32 %v2520, %v2555
      %v2557 = vpop.f32.mrf.mxu0
      %v2558 = vadd.f32 %v2520, %v2557
      %2559 = vmatmul.bf16.gmra.mxu0 %v2544
      %v2560 = vpop.f32.mrf.mxu0
      %v2561 = vadd.f32 %v2520, %v2560
      %v2562 = vpop.f32.mrf.mxu0
      %2563 = vdwg.mxu0
      %2564 = vst.msk [vmem:[%s845] sm:$0xff] %vm906, %v2556
      %2565 = vst.msk [vmem:[%s845 + $0x8] sm:$0xff] %vm906, %v2558
      %2566 = vst.msk [vmem:[%s845 + $0x10] sm:$0xff] %vm906, %v2561
      %p2567 = scmp.lt.s32.totalorder %s39, 1
      %s2568 = scalar_select %p2567, %s39, 1
      %s2569 = smul.addr %s2568, 3
      %s2570 = smul.addr %s2569, 8
      %s2571 = scalar_lea.vmem %s28, %s2570
      // Predicated region
      $region133: #{llava_phi_vision_encoder.1} parent=131 // pred_check
        %p2572 = pneg %p650
      $region134: #{llava_phi_vision_encoder.1} parent=131 // pred_check_branch
        %2574 = sbr.rel (%p2572) target = $region136
      $region135: #{llava_phi_vision_encoder.1} parent=131 // pred_region
        _
      $region136: #{llava_phi_vision_encoder.1} parent=131 // pred_fallthru
        _
    $region132: #{llava_phi_vision_encoder.1} parent=5 // pred_fallthru
      _
    %p2575 = scmp.le.s32.totalorder 2, %s34
    // Predicated region
    $region137: #{llava_phi_vision_encoder.1} parent=5 // pred_check
      %p2576 = pneg %p2575
    $region138: #{llava_phi_vision_encoder.1} parent=5 // pred_check_branch
      %2578 = sbr.rel (%p2576) target = $region140
    $region139: #{llava_phi_vision_encoder.1} parent=5 // pred_region
      %s2579 = ssub.s32 %s34, 2
      // Predicated region
      $region141: #{llava_phi_vision_encoder.1} parent=139 // pred_check
        %p2580 = pneg %p656
      $region142: #{llava_phi_vision_encoder.1} parent=139 // pred_check_branch
        %2582 = sbr.rel (%p2580) target = $region144
      $region143: #{llava_phi_vision_encoder.1} parent=139 // pred_region
        %p2583 = scmp.lt.s32.totalorder %s40, 1
        %s2584 = scalar_select %p2583, %s40, 1
        %s2585 = smul.addr %s2584, 3
        %s2586 = smul.addr %s2585, 8
        %s2587 = scalar_lea.vmem %s28, %s2586
      $region144: #{llava_phi_vision_encoder.1} parent=139 // pred_fallthru
        _
    $region140: #{llava_phi_vision_encoder.1} parent=5 // pred_fallthru
      _
  $region6: #{llava_phi_vision_encoder.1} parent=0 // loop_footer
    %s38 = sadd.s32 1, %s34
  $region7: #{llava_phi_vision_encoder.1} parent=0 // loop_footer_branch
    %33 = sbr.rel target = $region3
  $region8: #{llava_phi_vision_encoder.1} parent=0 // loop_exit
    _

</llo_original>
